<compile_context>
chip_gen: v7x
topology: tpu7x:2x2x1
jax: 0.10.0
libtpu: 0.0.40
codegen_flags: <defaults>
</compile_context>

<pallas_src>
import jax
import jax.numpy as jnp
from jax.experimental import pallas as pl
from jax.experimental.pallas import tpu as pltpu

Z_DIM = 100
N_CLASSES = 10
N_CLASSES_PAD = 16            # sublane-friendly padding of the label slice of W1
H1, H2, H3 = 256, 512, 1024
OUT_DIM = 784                 # 1 * 28 * 28
OUT_PAD = 896                 # 7 * 128 -> lane-dense final matmul + stores


def _leaky_relu(x, slope=0.2):
    return jnp.where(x > 0, x, slope * x)


def generator_kernel(z_ref, lbl_ref,
                     w1z_ref, w1l_ref, b1_ref,
                     w2_ref, b2_ref,
                     w3_ref, b3_ref,
                     w4_ref, b4_ref,
                     o_ref):
    z = z_ref[...]                                    # (TB, 100) f32
    lbl = lbl_ref[...]                                # (TB, 1)   int32

    # In-kernel one-hot (replaces XLA one_hot + concat prologue).
    classes = jax.lax.broadcasted_iota(jnp.int32, (z.shape[0], N_CLASSES_PAD), 1)
    one_hot = (classes == lbl).astype(jnp.float32)    # (TB, 16)

    # Layer 1: split matmul  ==  concat([z, one_hot]) @ W1.
    h = (jnp.dot(z, w1z_ref[...].astype(jnp.float32),
                 preferred_element_type=jnp.float32)
         + jnp.dot(one_hot, w1l_ref[...].astype(jnp.float32),
                   preferred_element_type=jnp.float32)
         + b1_ref[...])
    h = _leaky_relu(h)                                # (TB, 256)

    h = jnp.dot(h, w2_ref[...].astype(jnp.float32),
                preferred_element_type=jnp.float32) + b2_ref[...]
    h = _leaky_relu(h)                                # (TB, 512)

    h = jnp.dot(h, w3_ref[...].astype(jnp.float32),
                preferred_element_type=jnp.float32) + b3_ref[...]
    h = _leaky_relu(h)                                # (TB, 1024)

    h = jnp.dot(h, w4_ref[...].astype(jnp.float32),
                preferred_element_type=jnp.float32) + b4_ref[...]
    o_ref[...] = jnp.tanh(h)                          # (TB, 896) lane-dense store


def prepare_params(params):
    """Convert f32 PyTorch-style params into kernel-ready (bf16 weights, padded)."""
    (w1, b1), (w2, b2), (w3, b3), (w4, b4) = params
    w1z = w1[:Z_DIM].astype(jnp.bfloat16)                              # (100, 256)
    w1l = jnp.zeros((N_CLASSES_PAD, H1), jnp.bfloat16)
    w1l = w1l.at[:N_CLASSES].set(w1[Z_DIM:].astype(jnp.bfloat16))      # (16, 256)
    w4p = jnp.zeros((H3, OUT_PAD), jnp.bfloat16)
    w4p = w4p.at[:, :OUT_DIM].set(w4.astype(jnp.bfloat16))             # (1024, 896)
    b4p = jnp.zeros((1, OUT_PAD), jnp.float32).at[:, :OUT_DIM].set(b4)
    return (w1z, w1l, b1.reshape(1, -1).astype(jnp.float32),
            w2.astype(jnp.bfloat16), b2.reshape(1, -1).astype(jnp.float32),
            w3.astype(jnp.bfloat16), b3.reshape(1, -1).astype(jnp.float32),
            w4p, b4p)


@jax.jit
def generator_forward(z, label, kparams):
    """z: (B, 100) f32, label: (B,) int -> (B, 1, 28, 28) f32."""
    (w1z, w1l, b1, w2, b2, w3, b3, w4, b4) = kparams
    B = z.shape[0]

    # Batch tiling: small batches -> one sublane-aligned tile; large batches ->
    # 256-row tiles (MXU depth on v6e/v7x), pipelined + "parallel" across cores.
    if B >= 256:
        tile_b = 256
    else:
        tile_b = ((B + 7) // 8) * 8
    b_pad = ((B + tile_b - 1) // tile_b) * tile_b

    zp = jnp.pad(z.astype(jnp.float32), ((0, b_pad - B), (0, 0)))
    lp = jnp.pad(label.astype(jnp.int32), (0, b_pad - B)).reshape(b_pad, 1)

    def resident(arr):  # weights/biases stay in VMEM across all grid steps
        return pl.BlockSpec(arr.shape, lambda i: (0, 0))

    out = pl.pallas_call(
        generator_kernel,
        out_shape=jax.ShapeDtypeStruct((b_pad, OUT_PAD), jnp.float32),
        grid=(b_pad // tile_b,),
        in_specs=[pl.BlockSpec((tile_b, Z_DIM), lambda i: (i, 0)),
                  pl.BlockSpec((tile_b, 1), lambda i: (i, 0)),
                  resident(w1z), resident(w1l), resident(b1),
                  resident(w2), resident(b2),
                  resident(w3), resident(b3),
                  resident(w4), resident(b4)],
        out_specs=pl.BlockSpec((tile_b, OUT_PAD), lambda i: (i, 0)),
        compiler_params=pltpu.CompilerParams(
            dimension_semantics=("parallel",),
            vmem_limit_bytes=32 * 1024 * 1024),
    )(zp, lp, w1z, w1l, b1, w2, b2, w3, b3, w4, b4)

    return out[:B, :OUT_DIM].reshape(B, 1, 28, 28)    # NCHW, matches nn.Unflatten


def init_params(key):
    """Deterministic init mimicking PyTorch nn.Linear default U[-1/sqrt(fan_in), +]."""
    dims = [(Z_DIM + N_CLASSES, H1), (H1, H2), (H2, H3), (H3, OUT_DIM)]
    params = []
    for i, (fan_in, fan_out) in enumerate(dims):
        kw, kb = jax.random.split(jax.random.fold_in(key, i))
        bound = 1.0 / jnp.sqrt(float(fan_in))
        w = jax.random.uniform(kw, (fan_in, fan_out), jnp.float32, -bound, bound)
        b = jax.random.uniform(kb, (fan_out,), jnp.float32, -bound, bound)
        params.append((w, b))
    return tuple(params)


def reference_forward(z, label, params, bf16_weights=True):
    """Pure-JAX reference. bf16_weights=True mirrors the kernel's quantization."""
    (w1, b1), (w2, b2), (w3, b3), (w4, b4) = params
    if bf16_weights:
        q = lambda w: w.astype(jnp.bfloat16).astype(jnp.float32)
    else:
        q = lambda w: w
    one_hot = jax.nn.one_hot(label, N_CLASSES, dtype=z.dtype)
    x = jnp.concatenate([z, one_hot], axis=1)
    h = _leaky_relu(x @ q(w1) + b1)
    h = _leaky_relu(h @ q(w2) + b2)
    h = _leaky_relu(h @ q(w3) + b3)
    h = jnp.tanh(h @ q(w4) + b4)
    return h.reshape(-1, 1, 28, 28)


if __name__ == "__main__":
    key = jax.random.PRNGKey(0)
    k_z, k_lbl, k_p = jax.random.split(key, 3)

    B = 8
    z = jax.random.normal(k_z, (B, Z_DIM), jnp.float32)
    label = jax.random.randint(k_lbl, (B,), 0, N_CLASSES, jnp.int32)
    params = init_params(k_p)
    kparams = prepare_params(params)

    out = generator_forward(z, label, kparams)
    out = jax.block_until_ready(out)
    assert out.shape == (B, 1, 28, 28), out.shape

    # Tight check against a reference using the same bf16-rounded weights.
    ref_bf16 = reference_forward(z, label, params, bf16_weights=True)
    assert jnp.allclose(out, ref_bf16, atol=1e-4, rtol=1e-4), \
        float(jnp.max(jnp.abs(out - ref_bf16)))
    # Loose check against the original full-f32 semantics.
    ref_f32 = reference_forward(z, label, params, bf16_weights=False)
    assert jnp.allclose(out, ref_f32, atol=5e-2, rtol=5e-2), \
        float(jnp.max(jnp.abs(out - ref_f32)))

    print("KERNEL_OK")
</pallas_src>

<mosaic_0001>
module attributes {stable_mosaic.version = 11 : i64} {
  func.func @generator_kernel(%arg0: i32, %arg1: memref<8x100xf32, #tpu.memory_space<vmem>>, %arg2: memref<8x1xi32, #tpu.memory_space<vmem>>, %arg3: memref<100x256xbf16, #tpu.memory_space<vmem>>, %arg4: memref<16x256xbf16, #tpu.memory_space<vmem>>, %arg5: memref<1x256xf32, #tpu.memory_space<vmem>>, %arg6: memref<256x512xbf16, #tpu.memory_space<vmem>>, %arg7: memref<1x512xf32, #tpu.memory_space<vmem>>, %arg8: memref<512x1024xbf16, #tpu.memory_space<vmem>>, %arg9: memref<1x1024xf32, #tpu.memory_space<vmem>>, %arg10: memref<1024x896xbf16, #tpu.memory_space<vmem>>, %arg11: memref<1x896xf32, #tpu.memory_space<vmem>>, %arg12: memref<8x896xf32, #tpu.memory_space<vmem>>) attributes {dimension_semantics = [#tpu.dimension_semantics<parallel>], iteration_bounds = array<i64: 1>, scalar_prefetch = 0 : i64, scratch_operands = 0 : i64, tpu.core_type = #tpu.core_type<tc>, window_params = [{transform_indices = @transform_0, window_bounds = array<i64: 8, 100>}, {transform_indices = @transform_1, window_bounds = array<i64: 8, 1>}, {pipeline_mode = #tpu.pipeline_mode<synchronous>, transform_indices = @transform_2, window_bounds = array<i64: 100, 256>}, {pipeline_mode = #tpu.pipeline_mode<synchronous>, transform_indices = @transform_3, window_bounds = array<i64: 16, 256>}, {pipeline_mode = #tpu.pipeline_mode<synchronous>, transform_indices = @transform_4, window_bounds = array<i64: 1, 256>}, {pipeline_mode = #tpu.pipeline_mode<synchronous>, transform_indices = @transform_5, window_bounds = array<i64: 256, 512>}, {pipeline_mode = #tpu.pipeline_mode<synchronous>, transform_indices = @transform_6, window_bounds = array<i64: 1, 512>}, {pipeline_mode = #tpu.pipeline_mode<synchronous>, transform_indices = @transform_7, window_bounds = array<i64: 512, 1024>}, {pipeline_mode = #tpu.pipeline_mode<synchronous>, transform_indices = @transform_8, window_bounds = array<i64: 1, 1024>}, {pipeline_mode = #tpu.pipeline_mode<synchronous>, transform_indices = @transform_9, window_bounds = array<i64: 1024, 896>}, {pipeline_mode = #tpu.pipeline_mode<synchronous>, transform_indices = @transform_10, window_bounds = array<i64: 1, 896>}, {transform_indices = @transform_11, window_bounds = array<i64: 8, 896>}]} {
    %c0 = arith.constant 0 : index
    %c0_0 = arith.constant 0 : index
    %0 = vector.load %arg1[%c0, %c0_0] : memref<8x100xf32, #tpu.memory_space<vmem>>, vector<8x100xf32>
    %c0_1 = arith.constant 0 : index
    %c0_2 = arith.constant 0 : index
    %1 = vector.load %arg2[%c0_1, %c0_2] : memref<8x1xi32, #tpu.memory_space<vmem>>, vector<8x1xi32>
    %2 = tpu.iota {dimensions = array<i32: 1>} : vector<8x16xi32>
    %3 = vector.broadcast %1 : vector<8x1xi32> to vector<8x16xi32>
    %4 = arith.cmpi eq, %2, %3 : vector<8x16xi32>
    %5 = arith.extui %4 : vector<8x16xi1> to vector<8x16xi32>
    %6 = arith.sitofp %5 : vector<8x16xi32> to vector<8x16xf32>
    %c0_3 = arith.constant 0 : index
    %c0_4 = arith.constant 0 : index
    %7 = vector.load %arg3[%c0_3, %c0_4] : memref<100x256xbf16, #tpu.memory_space<vmem>>, vector<100x256xbf16>
    %8 = arith.extf %7 : vector<100x256xbf16> to vector<100x256xf32>
    %cst = arith.constant dense<0.000000e+00> : vector<8x256xf32>
    %9 = tpu.matmul %0, %8, %cst {dimension_numbers = #tpu.dot_dimension_numbers<[1], [0], [0], [1], [0, 0, 1, 1], [], []>} : vector<8x100xf32>, vector<100x256xf32>, vector<8x256xf32> -> vector<8x256xf32>
    %c0_5 = arith.constant 0 : index
    %c0_6 = arith.constant 0 : index
    %10 = vector.load %arg4[%c0_5, %c0_6] : memref<16x256xbf16, #tpu.memory_space<vmem>>, vector<16x256xbf16>
    %11 = arith.extf %10 : vector<16x256xbf16> to vector<16x256xf32>
    %cst_7 = arith.constant dense<0.000000e+00> : vector<8x256xf32>
    %12 = tpu.matmul %6, %11, %cst_7 {dimension_numbers = #tpu.dot_dimension_numbers<[1], [0], [0], [1], [0, 0, 1, 1], [], []>} : vector<8x16xf32>, vector<16x256xf32>, vector<8x256xf32> -> vector<8x256xf32>
    %13 = arith.addf %9, %12 : vector<8x256xf32>
    %c0_8 = arith.constant 0 : index
    %c0_9 = arith.constant 0 : index
    %14 = vector.load %arg5[%c0_8, %c0_9] : memref<1x256xf32, #tpu.memory_space<vmem>>, vector<1x256xf32>
    %15 = vector.broadcast %14 : vector<1x256xf32> to vector<8x256xf32>
    %16 = arith.addf %13, %15 : vector<8x256xf32>
    %cst_10 = arith.constant 0.000000e+00 : f32
    %17 = vector.broadcast %cst_10 : f32 to vector<8x256xf32>
    %18 = arith.cmpf ogt, %16, %17 : vector<8x256xf32>
    %cst_11 = arith.constant 2.000000e-01 : f32
    %19 = vector.broadcast %cst_11 : f32 to vector<8x256xf32>
    %20 = arith.mulf %19, %16 : vector<8x256xf32>
    %21 = arith.select %18, %16, %20 : vector<8x256xi1>, vector<8x256xf32>
    %c0_12 = arith.constant 0 : index
    %c0_13 = arith.constant 0 : index
    %22 = vector.load %arg6[%c0_12, %c0_13] : memref<256x512xbf16, #tpu.memory_space<vmem>>, vector<256x512xbf16>
    %23 = arith.extf %22 : vector<256x512xbf16> to vector<256x512xf32>
    %cst_14 = arith.constant dense<0.000000e+00> : vector<8x512xf32>
    %24 = tpu.matmul %21, %23, %cst_14 {dimension_numbers = #tpu.dot_dimension_numbers<[1], [0], [0], [1], [0, 0, 1, 1], [], []>} : vector<8x256xf32>, vector<256x512xf32>, vector<8x512xf32> -> vector<8x512xf32>
    %c0_15 = arith.constant 0 : index
    %c0_16 = arith.constant 0 : index
    %25 = vector.load %arg7[%c0_15, %c0_16] : memref<1x512xf32, #tpu.memory_space<vmem>>, vector<1x512xf32>
    %26 = vector.broadcast %25 : vector<1x512xf32> to vector<8x512xf32>
    %27 = arith.addf %24, %26 : vector<8x512xf32>
    %cst_17 = arith.constant 0.000000e+00 : f32
    %28 = vector.broadcast %cst_17 : f32 to vector<8x512xf32>
    %29 = arith.cmpf ogt, %27, %28 : vector<8x512xf32>
    %cst_18 = arith.constant 2.000000e-01 : f32
    %30 = vector.broadcast %cst_18 : f32 to vector<8x512xf32>
    %31 = arith.mulf %30, %27 : vector<8x512xf32>
    %32 = arith.select %29, %27, %31 : vector<8x512xi1>, vector<8x512xf32>
    %c0_19 = arith.constant 0 : index
    %c0_20 = arith.constant 0 : index
    %33 = vector.load %arg8[%c0_19, %c0_20] : memref<512x1024xbf16, #tpu.memory_space<vmem>>, vector<512x1024xbf16>
    %34 = arith.extf %33 : vector<512x1024xbf16> to vector<512x1024xf32>
    %cst_21 = arith.constant dense<0.000000e+00> : vector<8x1024xf32>
    %35 = tpu.matmul %32, %34, %cst_21 {dimension_numbers = #tpu.dot_dimension_numbers<[1], [0], [0], [1], [0, 0, 1, 1], [], []>} : vector<8x512xf32>, vector<512x1024xf32>, vector<8x1024xf32> -> vector<8x1024xf32>
    %c0_22 = arith.constant 0 : index
    %c0_23 = arith.constant 0 : index
    %36 = vector.load %arg9[%c0_22, %c0_23] : memref<1x1024xf32, #tpu.memory_space<vmem>>, vector<1x1024xf32>
    %37 = vector.broadcast %36 : vector<1x1024xf32> to vector<8x1024xf32>
    %38 = arith.addf %35, %37 : vector<8x1024xf32>
    %cst_24 = arith.constant 0.000000e+00 : f32
    %39 = vector.broadcast %cst_24 : f32 to vector<8x1024xf32>
    %40 = arith.cmpf ogt, %38, %39 : vector<8x1024xf32>
    %cst_25 = arith.constant 2.000000e-01 : f32
    %41 = vector.broadcast %cst_25 : f32 to vector<8x1024xf32>
    %42 = arith.mulf %41, %38 : vector<8x1024xf32>
    %43 = arith.select %40, %38, %42 : vector<8x1024xi1>, vector<8x1024xf32>
    %c0_26 = arith.constant 0 : index
    %c0_27 = arith.constant 0 : index
    %44 = vector.load %arg10[%c0_26, %c0_27] : memref<1024x896xbf16, #tpu.memory_space<vmem>>, vector<1024x896xbf16>
    %45 = arith.extf %44 : vector<1024x896xbf16> to vector<1024x896xf32>
    %cst_28 = arith.constant dense<0.000000e+00> : vector<8x896xf32>
    %46 = tpu.matmul %43, %45, %cst_28 {dimension_numbers = #tpu.dot_dimension_numbers<[1], [0], [0], [1], [0, 0, 1, 1], [], []>} : vector<8x1024xf32>, vector<1024x896xf32>, vector<8x896xf32> -> vector<8x896xf32>
    %c0_29 = arith.constant 0 : index
    %c0_30 = arith.constant 0 : index
    %47 = vector.load %arg11[%c0_29, %c0_30] : memref<1x896xf32, #tpu.memory_space<vmem>>, vector<1x896xf32>
    %48 = vector.broadcast %47 : vector<1x896xf32> to vector<8x896xf32>
    %49 = arith.addf %46, %48 : vector<8x896xf32>
    %50 = math.tanh %49 : vector<8x896xf32>
    %c0_31 = arith.constant 0 : index
    %c0_32 = arith.constant 0 : index
    %51 = vector.load %arg12[%c0_31, %c0_32] : memref<8x896xf32, #tpu.memory_space<vmem>>, vector<8x896xf32>
    tpu.vector_store %arg12[%c0_31, %c0_32], %50 {strides = array<i32>} : memref<8x896xf32, #tpu.memory_space<vmem>>, vector<8x896xf32>,
    return
  }
  func.func @transform_0(%arg0: i32) -> (i32, i32) {
    %c0_i32 = arith.constant 0 : i32
    %c0_i32_0 = arith.constant 0 : i32
    return %arg0, %c0_i32 : i32, i32
  }
  func.func @transform_1(%arg0: i32) -> (i32, i32) {
    %c0_i32 = arith.constant 0 : i32
    %c0_i32_0 = arith.constant 0 : i32
    return %arg0, %c0_i32 : i32, i32
  }
  func.func @transform_2(%arg0: i32) -> (i32, i32) {
    %c0_i32 = arith.constant 0 : i32
    %c0_i32_0 = arith.constant 0 : i32
    %c0_i32_1 = arith.constant 0 : i32
    return %c0_i32, %c0_i32_0 : i32, i32
  }
  func.func @transform_3(%arg0: i32) -> (i32, i32) {
    %c0_i32 = arith.constant 0 : i32
    %c0_i32_0 = arith.constant 0 : i32
    %c0_i32_1 = arith.constant 0 : i32
    return %c0_i32, %c0_i32_0 : i32, i32
  }
  func.func @transform_4(%arg0: i32) -> (i32, i32) {
    %c0_i32 = arith.constant 0 : i32
    %c0_i32_0 = arith.constant 0 : i32
    %c0_i32_1 = arith.constant 0 : i32
    return %c0_i32, %c0_i32_0 : i32, i32
  }
  func.func @transform_5(%arg0: i32) -> (i32, i32) {
    %c0_i32 = arith.constant 0 : i32
    %c0_i32_0 = arith.constant 0 : i32
    %c0_i32_1 = arith.constant 0 : i32
    return %c0_i32, %c0_i32_0 : i32, i32
  }
  func.func @transform_6(%arg0: i32) -> (i32, i32) {
    %c0_i32 = arith.constant 0 : i32
    %c0_i32_0 = arith.constant 0 : i32
    %c0_i32_1 = arith.constant 0 : i32
    return %c0_i32, %c0_i32_0 : i32, i32
  }
  func.func @transform_7(%arg0: i32) -> (i32, i32) {
    %c0_i32 = arith.constant 0 : i32
    %c0_i32_0 = arith.constant 0 : i32
    %c0_i32_1 = arith.constant 0 : i32
    return %c0_i32, %c0_i32_0 : i32, i32
  }
  func.func @transform_8(%arg0: i32) -> (i32, i32) {
    %c0_i32 = arith.constant 0 : i32
    %c0_i32_0 = arith.constant 0 : i32
    %c0_i32_1 = arith.constant 0 : i32
    return %c0_i32, %c0_i32_0 : i32, i32
  }
  func.func @transform_9(%arg0: i32) -> (i32, i32) {
    %c0_i32 = arith.constant 0 : i32
    %c0_i32_0 = arith.constant 0 : i32
    %c0_i32_1 = arith.constant 0 : i32
    return %c0_i32, %c0_i32_0 : i32, i32
  }
  func.func @transform_10(%arg0: i32) -> (i32, i32) {
    %c0_i32 = arith.constant 0 : i32
    %c0_i32_0 = arith.constant 0 : i32
    %c0_i32_1 = arith.constant 0 : i32
    return %c0_i32, %c0_i32_0 : i32, i32
  }
  func.func @transform_11(%arg0: i32) -> (i32, i32) {
    %c0_i32 = arith.constant 0 : i32
    %c0_i32_0 = arith.constant 0 : i32
    return %arg0, %c0_i32 : i32, i32
  }
}

</mosaic_0001>

<llo_original>
// kernel: generator_forward.1
$region0: #{generator_forward.1}
  #allocation0 [shape = 'u32[]', space=smem, size = 0x4, offset = 0x4, fixed_abs, tag = 'smem constant byte address 0x4 - core index']
  #allocation1 [shape = 'u32[144,128]{1,0:T(1,128)}', space=vmem, size = 0x12000, scoped, tag = 'internal scratch']
  %s0 = inlined_call_operand.hbm [shape: f32[8,100], index: 0, kind: input, shape index: {}]
  %s1 = inlined_call_operand.vmem [shape: s32[8,1], index: 1, kind: input, shape index: {}]
  %s2 = inlined_call_operand.hbm [shape: bf16[100,256], index: 2, kind: input, shape index: {}]
  %s3 = inlined_call_operand.hbm [shape: bf16[16,256], index: 3, kind: input, shape index: {}]
  %s4 = inlined_call_operand.hbm [shape: f32[1,256], index: 4, kind: input, shape index: {}]
  %s5 = inlined_call_operand.hbm [shape: bf16[256,512], index: 5, kind: input, shape index: {}]
  %s6 = inlined_call_operand.hbm [shape: f32[1,512], index: 6, kind: input, shape index: {}]
  %s7 = inlined_call_operand.hbm [shape: bf16[512,1024], index: 7, kind: input, shape index: {}]
  %s8 = inlined_call_operand.hbm [shape: f32[1,1024], index: 8, kind: input, shape index: {}]
  %s9 = inlined_call_operand.hbm [shape: bf16[1024,896], index: 9, kind: input, shape index: {}]
  %s10 = inlined_call_operand.hbm [shape: f32[1,896], index: 10, kind: input, shape index: {}]
  %s11 = inlined_call_operand.vmem [shape: f32[8,896], index: 11, kind: output, shape index: {}]
  %s12 = sld [smem:[#allocation0]]
  $region94: #{generator_forward.1} parent=0
    _
  %s14 = ssub.s32 1, %s12
  %s15 = scalar_select 0, %s14, %s12
  $region1: #{generator_forward.1} parent=0
    #allocation2 [shape = 'u8[4096]{0}', space=vmem, size = 0x1000, scoped, tag = 'input window, operand 0, single buffered']
    #allocation3 [shape = 's32[1]{0}', space=sflag, size = 0x4, scoped, tag = 'scoped memory for generator_forward.1']
    #allocation4 [shape = 'u8[53248]{0}', space=vmem, size = 0xd000, scoped, tag = 'input window, operand 2, single buffered']
    #allocation5 [shape = 's32[1]{0}', space=sflag, size = 0x4, scoped, tag = 'scoped memory for generator_forward.1']
    #allocation6 [shape = 'u8[8192]{0}', space=vmem, size = 0x2000, scoped, tag = 'input window, operand 3, single buffered']
    #allocation7 [shape = 'u8[1024]{0}', space=vmem, size = 0x400, scoped, tag = 'input window, operand 4, single buffered']
    #allocation8 [shape = 's32[1]{0}', space=sflag, size = 0x4, scoped, tag = 'scoped memory for generator_forward.1']
    #allocation9 [shape = 'u8[262144]{0}', space=vmem, size = 0x40000, scoped, tag = 'input window, operand 5, single buffered']
    #allocation10 [shape = 'u8[2048]{0}', space=vmem, size = 0x800, scoped, tag = 'input window, operand 6, single buffered']
    #allocation11 [shape = 's32[1]{0}', space=sflag, size = 0x4, scoped, tag = 'scoped memory for generator_forward.1']
    #allocation12 [shape = 'u8[1048576]{0}', space=vmem, size = 0x100000, scoped, tag = 'input window, operand 7, single buffered']
    #allocation13 [shape = 'u8[4096]{0}', space=vmem, size = 0x1000, scoped, tag = 'input window, operand 8, single buffered']
    #allocation14 [shape = 's32[1]{0}', space=sflag, size = 0x4, scoped, tag = 'scoped memory for generator_forward.1']
    #allocation15 [shape = 'u8[1835008]{0}', space=vmem, size = 0x1c0000, scoped, tag = 'input window, operand 9, single buffered']
    #allocation16 [shape = 'u8[3584]{0}', space=vmem, size = 0x1000, scoped, tag = 'input window, operand 10, single buffered']
    #allocation17 [shape = 's32[1]{0}', space=sflag, size = 0x4, scoped, tag = 'scoped memory for generator_forward.1']
    %16 = vsyncpa [#allocation3], 0
    %17 = vsyncpa [#allocation5], 0
    %18 = vsyncpa [#allocation8], 0
    %19 = vsyncpa [#allocation11], 0
    %20 = vsyncpa [#allocation14], 0
    %21 = vsyncpa [#allocation17], 0
    // Predicated region
    $region2: #{generator_forward.1} parent=1 // pred_check
      _
    $region3: #{generator_forward.1} parent=1 // pred_check_branch
      %23 = sbr.rel (0) target = $region5
    $region4: #{generator_forward.1} parent=1 // pred_region
      %s25 = ssub.s32 128, 128
      %26 = vsyncadd [#allocation3], %s25
      %s28 = sshll.u32 [#allocation2], 4
      %s29 = int_to_ptr.vmem [resolvable:$true] %s28
      %31 = dma.hbm_to_vmem [thread:$0]  %s0, 128, %s29, [#allocation3]
    $region5: #{generator_forward.1} parent=1 // pred_fallthru
      _
    // Predicated region
    $region6: #{generator_forward.1} parent=1 // pred_check
      _
    $region7: #{generator_forward.1} parent=1 // pred_check_branch
      %33 = sbr.rel (0) target = $region9
    $region8: #{generator_forward.1} parent=1 // pred_region
      _
    $region9: #{generator_forward.1} parent=1 // pred_fallthru
      _
    // Predicated region
    $region10: #{generator_forward.1} parent=1 // pred_check
      _
    $region11: #{generator_forward.1} parent=1 // pred_check_branch
      %35 = sbr.rel (0) target = $region13
    $region12: #{generator_forward.1} parent=1 // pred_region
      %s37 = ssub.s32 1664, 1664
      %38 = vsyncadd [#allocation5], %s37
      %s39 = sshll.u32 [#allocation4], 4
      %s40 = int_to_ptr.vmem [resolvable:$true] %s39
      %45 = dma.hbm_to_vmem [thread:$0]  %s2, 1664, %s40, [#allocation5], 128, 128, 8
    $region13: #{generator_forward.1} parent=1 // pred_fallthru
      _
    // Predicated region
    $region14: #{generator_forward.1} parent=1 // pred_check
      _
    $region15: #{generator_forward.1} parent=1 // pred_check_branch
      %47 = sbr.rel (0) target = $region17
    $region16: #{generator_forward.1} parent=1 // pred_region
      %s49 = ssub.s32 256, 256
      %50 = vsyncadd [#allocation5], %s49
      %s51 = sshll.u32 [#allocation6], 4
      %s52 = int_to_ptr.vmem [resolvable:$true] %s51
      %57 = dma.hbm_to_vmem [thread:$0]  %s3, 256, %s52, [#allocation5], 128, 128, 8
    $region17: #{generator_forward.1} parent=1 // pred_fallthru
      _
    // Predicated region
    $region18: #{generator_forward.1} parent=1 // pred_check
      _
    $region19: #{generator_forward.1} parent=1 // pred_check_branch
      %59 = sbr.rel (0) target = $region21
    $region20: #{generator_forward.1} parent=1 // pred_region
      %s61 = ssub.s32 32, 32
      %62 = vsyncadd [#allocation8], %s61
      %s64 = sshll.u32 [#allocation7], 4
      %s65 = int_to_ptr.vmem [resolvable:$true] %s64
      %67 = dma.hbm_to_vmem [thread:$0]  %s4, 32, %s65, [#allocation8]
    $region21: #{generator_forward.1} parent=1 // pred_fallthru
      _
    // Predicated region
    $region22: #{generator_forward.1} parent=1 // pred_check
      _
    $region23: #{generator_forward.1} parent=1 // pred_check_branch
      %69 = sbr.rel (0) target = $region25
    $region24: #{generator_forward.1} parent=1 // pred_region
      %s71 = ssub.s32 8192, 8192
      %72 = vsyncadd [#allocation8], %s71
      %s73 = sshll.u32 [#allocation9], 4
      %s74 = int_to_ptr.vmem [resolvable:$true] %s73
      %79 = dma.hbm_to_vmem [thread:$0]  %s5, 8192, %s74, [#allocation8], 256, 256, 16
    $region25: #{generator_forward.1} parent=1 // pred_fallthru
      _
    // Predicated region
    $region26: #{generator_forward.1} parent=1 // pred_check
      _
    $region27: #{generator_forward.1} parent=1 // pred_check_branch
      %81 = sbr.rel (0) target = $region29
    $region28: #{generator_forward.1} parent=1 // pred_region
      %s83 = ssub.s32 64, 64
      %84 = vsyncadd [#allocation11], %s83
      %s86 = sshll.u32 [#allocation10], 4
      %s87 = int_to_ptr.vmem [resolvable:$true] %s86
      %89 = dma.hbm_to_vmem [thread:$0]  %s6, 64, %s87, [#allocation11]
    $region29: #{generator_forward.1} parent=1 // pred_fallthru
      _
    // Predicated region
    $region30: #{generator_forward.1} parent=1 // pred_check
      _
    $region31: #{generator_forward.1} parent=1 // pred_check_branch
      %91 = sbr.rel (0) target = $region33
    $region32: #{generator_forward.1} parent=1 // pred_region
      %s93 = ssub.s32 32768, 32768
      %94 = vsyncadd [#allocation11], %s93
      %s95 = sshll.u32 [#allocation12], 4
      %s96 = int_to_ptr.vmem [resolvable:$true] %s95
      %101 = dma.hbm_to_vmem [thread:$0]  %s7, 32768, %s96, [#allocation11], 512, 512, 32
    $region33: #{generator_forward.1} parent=1 // pred_fallthru
      _
    // Predicated region
    $region34: #{generator_forward.1} parent=1 // pred_check
      _
    $region35: #{generator_forward.1} parent=1 // pred_check_branch
      %103 = sbr.rel (0) target = $region37
    $region36: #{generator_forward.1} parent=1 // pred_region
      %s105 = ssub.s32 128, 128
      %106 = vsyncadd [#allocation14], %s105
      %s108 = sshll.u32 [#allocation13], 4
      %s109 = int_to_ptr.vmem [resolvable:$true] %s108
      %111 = dma.hbm_to_vmem [thread:$0]  %s8, 128, %s109, [#allocation14]
    $region37: #{generator_forward.1} parent=1 // pred_fallthru
      _
    // Predicated region
    $region38: #{generator_forward.1} parent=1 // pred_check
      _
    $region39: #{generator_forward.1} parent=1 // pred_check_branch
      %113 = sbr.rel (0) target = $region41
    $region40: #{generator_forward.1} parent=1 // pred_region
      %s115 = ssub.s32 57344, 57344
      %116 = vsyncadd [#allocation14], %s115
      %s117 = sshll.u32 [#allocation15], 4
      %s118 = int_to_ptr.vmem [resolvable:$true] %s117
      %123 = dma.hbm_to_vmem [thread:$0]  %s9, 57344, %s118, [#allocation14], 448, 448, 28
    $region41: #{generator_forward.1} parent=1 // pred_fallthru
      _
    // Predicated region
    $region42: #{generator_forward.1} parent=1 // pred_check
      _
    $region43: #{generator_forward.1} parent=1 // pred_check_branch
      %125 = sbr.rel (0) target = $region45
    $region44: #{generator_forward.1} parent=1 // pred_region
      %s127 = ssub.s32 112, 112
      %128 = vsyncadd [#allocation17], %s127
      %s130 = sshll.u32 [#allocation16], 4
      %s131 = int_to_ptr.vmem [resolvable:$true] %s130
      %133 = dma.hbm_to_vmem [thread:$0]  %s10, 112, %s131, [#allocation17]
    $region45: #{generator_forward.1} parent=1 // pred_fallthru
      _
    // Predicated region
    $region46: #{generator_forward.1} parent=1 // pred_check
      _
    $region47: #{generator_forward.1} parent=1 // pred_check_branch
      %135 = sbr.rel (0) target = $region49
    $region48: #{generator_forward.1} parent=1 // pred_region
      %136 = dma.done [#allocation3], 128
    $region49: #{generator_forward.1} parent=1 // pred_fallthru
      _
    // Predicated region
    $region50: #{generator_forward.1} parent=1 // pred_check
      _
    $region51: #{generator_forward.1} parent=1 // pred_check_branch
      %138 = sbr.rel (0) target = $region53
    $region52: #{generator_forward.1} parent=1 // pred_region
      %139 = dma.done [#allocation5], 1664
    $region53: #{generator_forward.1} parent=1 // pred_fallthru
      _
    // Predicated region
    $region54: #{generator_forward.1} parent=1 // pred_check
      _
    $region55: #{generator_forward.1} parent=1 // pred_check_branch
      %141 = sbr.rel (0) target = $region57
    $region56: #{generator_forward.1} parent=1 // pred_region
      %142 = dma.done [#allocation5], 256
    $region57: #{generator_forward.1} parent=1 // pred_fallthru
      _
    // Predicated region
    $region58: #{generator_forward.1} parent=1 // pred_check
      _
    $region59: #{generator_forward.1} parent=1 // pred_check_branch
      %144 = sbr.rel (0) target = $region61
    $region60: #{generator_forward.1} parent=1 // pred_region
      %145 = dma.done [#allocation8], 32
    $region61: #{generator_forward.1} parent=1 // pred_fallthru
      _
    // Predicated region
    $region62: #{generator_forward.1} parent=1 // pred_check
      _
    $region63: #{generator_forward.1} parent=1 // pred_check_branch
      %147 = sbr.rel (0) target = $region65
    $region64: #{generator_forward.1} parent=1 // pred_region
      %148 = dma.done [#allocation8], 8192
    $region65: #{generator_forward.1} parent=1 // pred_fallthru
      _
    // Predicated region
    $region66: #{generator_forward.1} parent=1 // pred_check
      _
    $region67: #{generator_forward.1} parent=1 // pred_check_branch
      %150 = sbr.rel (0) target = $region69
    $region68: #{generator_forward.1} parent=1 // pred_region
      %151 = dma.done [#allocation11], 64
    $region69: #{generator_forward.1} parent=1 // pred_fallthru
      _
    // Predicated region
    $region70: #{generator_forward.1} parent=1 // pred_check
      _
    $region71: #{generator_forward.1} parent=1 // pred_check_branch
      %153 = sbr.rel (0) target = $region73
    $region72: #{generator_forward.1} parent=1 // pred_region
      %154 = dma.done [#allocation11], 32768
    $region73: #{generator_forward.1} parent=1 // pred_fallthru
      _
    // Predicated region
    $region74: #{generator_forward.1} parent=1 // pred_check
      _
    $region75: #{generator_forward.1} parent=1 // pred_check_branch
      %156 = sbr.rel (0) target = $region77
    $region76: #{generator_forward.1} parent=1 // pred_region
      %157 = dma.done [#allocation14], 128
    $region77: #{generator_forward.1} parent=1 // pred_fallthru
      _
    // Predicated region
    $region78: #{generator_forward.1} parent=1 // pred_check
      _
    $region79: #{generator_forward.1} parent=1 // pred_check_branch
      %159 = sbr.rel (0) target = $region81
    $region80: #{generator_forward.1} parent=1 // pred_region
      %160 = dma.done [#allocation14], 57344
    $region81: #{generator_forward.1} parent=1 // pred_fallthru
      _
    // Predicated region
    $region82: #{generator_forward.1} parent=1 // pred_check
      _
    $region83: #{generator_forward.1} parent=1 // pred_check_branch
      %162 = sbr.rel (0) target = $region85
    $region84: #{generator_forward.1} parent=1 // pred_region
      %163 = dma.done [#allocation17], 112
    $region85: #{generator_forward.1} parent=1 // pred_fallthru
      _
    %v164 = vld [vmem:[#allocation2] sm:$0xff]
    %v165 = vld [vmem:[%s1] sm:$0xff]
    %v166 = vlaneseq
    %v167 = vand.u32 %v166, 127
    %168 = vset.pattern.permute.xlu0 0
    %169 = vperm.xlu0 %168, %v165
    %v170 = vpop.permute.xlu0 %169
    %vm171 = vcmp.eq.s32.totalorder %v167, %v170
    %v172 = vsel %vm171, 1, 0
    %v173 = vcvt.s32.f32 %v172
    %v174 = vld [vmem:[#allocation4] sm:$0xff]
    %v175 = vld [vmem:[#allocation4 + $0x8] sm:$0xff]
    %v176 = vld [vmem:[#allocation4 + $0x10] sm:$0xff]
    %v177 = vld [vmem:[#allocation4 + $0x18] sm:$0xff]
    %v178 = vld [vmem:[#allocation4 + $0x20] sm:$0xff]
    %v179 = vld [vmem:[#allocation4 + $0x28] sm:$0xff]
    %v180 = vld [vmem:[#allocation4 + $0x30] sm:$0xff]
    %v181 = vld [vmem:[#allocation4 + $0x38] sm:$0xff]
    %v182 = vld [vmem:[#allocation4 + $0x40] sm:$0xff]
    %v183 = vld [vmem:[#allocation4 + $0x48] sm:$0xff]
    %v184 = vld [vmem:[#allocation4 + $0x50] sm:$0xff]
    %v185 = vld [vmem:[#allocation4 + $0x58] sm:$0xff]
    %v186 = vld [vmem:[#allocation4 + $0x60] sm:$0x33]
    %v187 = vunpack.c.l.bf16 %v174
    %v188 = vunpack.c.h.bf16 %v174
    %v189 = vunpack.c.l.bf16 %v175
    %v190 = vunpack.c.h.bf16 %v175
    %v191 = vunpack.c.l.bf16 %v176
    %v192 = vunpack.c.h.bf16 %v176
    %v193 = vunpack.c.l.bf16 %v177
    %v194 = vunpack.c.h.bf16 %v177
    %v195 = vunpack.c.l.bf16 %v178
    %v196 = vunpack.c.h.bf16 %v178
    %v197 = vunpack.c.l.bf16 %v179
    %v198 = vunpack.c.h.bf16 %v179
    %v199 = vunpack.c.l.bf16 %v180
    %v200 = vunpack.c.h.bf16 %v180
    %v201 = vunpack.c.l.bf16 %v181
    %v202 = vunpack.c.h.bf16 %v181
    %v203 = vunpack.c.l.bf16 %v182
    %v204 = vunpack.c.h.bf16 %v182
    %v205 = vunpack.c.l.bf16 %v183
    %v206 = vunpack.c.h.bf16 %v183
    %v207 = vunpack.c.l.bf16 %v184
    %v208 = vunpack.c.h.bf16 %v184
    %v209 = vunpack.c.l.bf16 %v185
    %v210 = vunpack.c.h.bf16 %v185
    %v211 = vunpack.c.l.bf16 %v186
    %v212 = vunpack.c.h.bf16 %v186
    %v213 = vld [vmem:[#allocation6] sm:$0xff]
    %v214 = vld [vmem:[#allocation6 + $0x8] sm:$0xff]
    %v215 = vunpack.c.l.bf16 %v213
    %v216 = vunpack.c.h.bf16 %v213
    %v217 = vunpack.c.l.bf16 %v214
    %v218 = vunpack.c.h.bf16 %v214
    %vm219 = vcmask 130048
    %v221 = vsel %vm219, %v173, 0
    %223 = vmatprep.subr.mxu0 %v216
    %224 = vmatpush1.msra.mxu0 %v215
    %225 = vmatprep.subr.mxu0 %v218
    %226 = vmatpush1.msra.mxu0 %v217
    %227 = vmatprep.subr.mxu0 0.0
    %228 = vmatpush1.msra.mxu0 0.0
    %229 = vmatprep.subr.mxu0 0.0
    %230 = vmatpush1.msra.mxu0 0.0
    %231 = vmatprep.subr.mxu0 0.0
    %232 = vmatpush1.msra.mxu0 0.0
    %233 = vmatprep.subr.mxu0 0.0
    %234 = vmatpush1.msra.mxu0 0.0
    %235 = vmatprep.subr.mxu0 0.0
    %236 = vmatpush1.msra.mxu0 0.0
    %237 = vmatprep.subr.mxu0 0.0
    %238 = vmatpush1.msra.mxu0 0.0
    %239 = vmatprep.subr.mxu0 0.0
    %240 = vmatpush1.msra.mxu0 0.0
    %241 = vmatprep.subr.mxu0 0.0
    %242 = vmatpush1.msra.mxu0 0.0
    %243 = vmatprep.subr.mxu0 0.0
    %244 = vmatpush1.msra.mxu0 0.0
    %245 = vmatprep.subr.mxu0 0.0
    %246 = vmatpush1.msra.mxu0 0.0
    %247 = vmatprep.subr.mxu0 0.0
    %248 = vmatpush1.msra.mxu0 0.0
    %249 = vmatprep.subr.mxu0 0.0
    %250 = vmatpush1.msra.mxu0 0.0
    %251 = vmatprep.subr.mxu0 0.0
    %252 = vmatpush1.msra.mxu0 0.0
    %253 = vmatprep.subr.mxu0 0.0
    %254 = vmatpush1.msra.mxu0 0.0
    %255 = vmatprep.subr.mxu0 0.0
    %256 = vmatpush1.msra.mxu0 0.0
    %257 = vmatprep.subr.mxu0 0.0
    %258 = vmatpush1.msra.mxu0 0.0
    %259 = vmatprep.subr.mxu0 0.0
    %260 = vmatpush1.msra.mxu0 0.0
    %261 = vmatprep.subr.mxu0 0.0
    %262 = vmatpush1.msra.mxu0 0.0
    %263 = vmatprep.subr.mxu0 0.0
    %264 = vmatpush1.msra.mxu0 0.0
    %265 = vmatprep.subr.mxu0 0.0
    %266 = vmatpush1.msra.mxu0 0.0
    %267 = vmatprep.subr.mxu0 0.0
    %268 = vmatpush1.msra.mxu0 0.0
    %269 = vmatprep.subr.mxu0 0.0
    %270 = vmatpush1.msra.mxu0 0.0
    %271 = vmatprep.subr.mxu0 0.0
    %272 = vmatpush1.msra.mxu0 0.0
    %273 = vmatprep.subr.mxu0 0.0
    %274 = vmatpush1.msra.mxu0 0.0
    %275 = vmatprep.subr.mxu0 0.0
    %276 = vmatpush1.msra.mxu0 0.0
    %277 = vmatprep.subr.mxu0 0.0
    %278 = vmatpush1.msra.mxu0 0.0
    %279 = vmatprep.subr.mxu0 0.0
    %280 = vmatpush1.msra.mxu0 0.0
    %281 = vmatprep.subr.mxu0 0.0
    %282 = vmatpush1.msra.mxu0 0.0
    %283 = vmatprep.subr.mxu0 0.0
    %284 = vmatpush1.msra.mxu0 0.0
    %285 = vmatprep.subr.mxu0 0.0
    %286 = vmatpush1.msra.mxu0 0.0
    %287 = vmatprep.mubr.f32.mxu0 0.0
    %288 = vmatmul.mubr.f32.gmra.mrb[0].mxu0 %v221
    %v289 = vpop.f32.mrb[0].mxu0
    %v290 = vadd.f32 0.0, %v289
    %v291 = vpop.f32.mrb[0].mxu0
    %v292 = vadd.f32 0.0, %v291
    %293 = vdwg.mxu0
    %vm294 = vcmask 818176
    %v296 = vsel %vm294, %v164, 0
    %vm298 = vcmask 1043456
    %v300 = vsel %vm298, %v211, 0
    %v303 = vsel %vm298, %v212, 0
    %305 = vmatprep.subr.mxu0 %v188
    %306 = vmatpush1.msra.mxu0 %v187
    %307 = vmatprep.subr.mxu0 %v190
    %308 = vmatpush1.msra.mxu0 %v189
    %309 = vmatprep.subr.mxu0 %v192
    %310 = vmatpush1.msra.mxu0 %v191
    %311 = vmatprep.subr.mxu0 %v194
    %312 = vmatpush1.msra.mxu0 %v193
    %313 = vmatprep.subr.mxu0 %v196
    %314 = vmatpush1.msra.mxu0 %v195
    %315 = vmatprep.subr.mxu0 %v198
    %316 = vmatpush1.msra.mxu0 %v197
    %317 = vmatprep.subr.mxu0 %v200
    %318 = vmatpush1.msra.mxu0 %v199
    %319 = vmatprep.subr.mxu0 %v202
    %320 = vmatpush1.msra.mxu0 %v201
    %321 = vmatprep.subr.mxu0 %v204
    %322 = vmatpush1.msra.mxu0 %v203
    %323 = vmatprep.subr.mxu0 %v206
    %324 = vmatpush1.msra.mxu0 %v205
    %325 = vmatprep.subr.mxu0 %v208
    %326 = vmatpush1.msra.mxu0 %v207
    %327 = vmatprep.subr.mxu0 %v210
    %328 = vmatpush1.msra.mxu0 %v209
    %329 = vmatprep.subr.mxu0 %v303
    %330 = vmatpush1.msra.mxu0 %v300
    %331 = vmatprep.subr.mxu0 0.0
    %332 = vmatpush1.msra.mxu0 0.0
    %333 = vmatprep.subr.mxu0 0.0
    %334 = vmatpush1.msra.mxu0 0.0
    %335 = vmatprep.subr.mxu0 0.0
    %336 = vmatpush1.msra.mxu0 0.0
    %337 = vmatprep.subr.mxu0 0.0
    %338 = vmatpush1.msra.mxu0 0.0
    %339 = vmatprep.subr.mxu0 0.0
    %340 = vmatpush1.msra.mxu0 0.0
    %341 = vmatprep.subr.mxu0 0.0
    %342 = vmatpush1.msra.mxu0 0.0
    %343 = vmatprep.subr.mxu0 0.0
    %344 = vmatpush1.msra.mxu0 0.0
    %345 = vmatprep.subr.mxu0 0.0
    %346 = vmatpush1.msra.mxu0 0.0
    %347 = vmatprep.subr.mxu0 0.0
    %348 = vmatpush1.msra.mxu0 0.0
    %349 = vmatprep.subr.mxu0 0.0
    %350 = vmatpush1.msra.mxu0 0.0
    %351 = vmatprep.subr.mxu0 0.0
    %352 = vmatpush1.msra.mxu0 0.0
    %353 = vmatprep.subr.mxu0 0.0
    %354 = vmatpush1.msra.mxu0 0.0
    %355 = vmatprep.subr.mxu0 0.0
    %356 = vmatpush1.msra.mxu0 0.0
    %357 = vmatprep.subr.mxu0 0.0
    %358 = vmatpush1.msra.mxu0 0.0
    %359 = vmatprep.subr.mxu0 0.0
    %360 = vmatpush1.msra.mxu0 0.0
    %361 = vmatprep.subr.mxu0 0.0
    %362 = vmatpush1.msra.mxu0 0.0
    %363 = vmatprep.subr.mxu0 0.0
    %364 = vmatpush1.msra.mxu0 0.0
    %365 = vmatprep.subr.mxu0 0.0
    %366 = vmatpush1.msra.mxu0 0.0
    %367 = vmatprep.subr.mxu0 0.0
    %368 = vmatpush1.msra.mxu0 0.0
    %369 = vmatprep.mubr.f32.mxu0 0.0
    %370 = vmatmul.mubr.f32.gmra.mrb[0].mxu0 %v296
    %v371 = vpop.f32.mrb[0].mxu0
    %v372 = vadd.f32 %v290, %v371
    %v373 = vpop.f32.mrb[0].mxu0
    %v374 = vadd.f32 %v292, %v373
    %375 = vdwg.mxu0
    %v376 = vld [vmem:[#allocation7] sm:$0x3]
    %v378 = vlaneseq
    %v379 = vshrl.u32 %v378, 7
    %v380 = vsub.s32 0, %v379
    %v381 = vrot.slane %v376, %v380
    %v382 = vlaneseq
    %v383 = vshrl.u32 %v382, 7
    %v384 = vsub.s32 1, %v383
    %v385 = vrot.slane %v376, %v384
    %v388 = vadd.f32 %v372, %v381
    %v389 = vadd.f32 %v374, %v385
    %vm390 = vcmp.gt.f32.partialorder %v388, 0.0
    %vm391 = vcmp.gt.f32.partialorder %v389, 0.0
    %v392 = vmul.f32 %v388, 0.2
    %v393 = vmul.f32 %v389, 0.2
    %v394 = vsel %vm390, %v388, %v392
    %v395 = vsel %vm391, %v389, %v393
    %v396 = vld [vmem:[#allocation9] sm:$0xff]
    %v397 = vld [vmem:[#allocation9 + $0x8] sm:$0xff]
    %v398 = vld [vmem:[#allocation9 + $0x10] sm:$0xff]
    %v399 = vld [vmem:[#allocation9 + $0x18] sm:$0xff]
    %v400 = vld [vmem:[#allocation9 + $0x20] sm:$0xff]
    %v401 = vld [vmem:[#allocation9 + $0x28] sm:$0xff]
    %v402 = vld [vmem:[#allocation9 + $0x30] sm:$0xff]
    %v403 = vld [vmem:[#allocation9 + $0x38] sm:$0xff]
    %v404 = vld [vmem:[#allocation9 + $0x40] sm:$0xff]
    %v405 = vld [vmem:[#allocation9 + $0x48] sm:$0xff]
    %v406 = vld [vmem:[#allocation9 + $0x50] sm:$0xff]
    %v407 = vld [vmem:[#allocation9 + $0x58] sm:$0xff]
    %v408 = vld [vmem:[#allocation9 + $0x60] sm:$0xff]
    %v409 = vld [vmem:[#allocation9 + $0x68] sm:$0xff]
    %v410 = vld [vmem:[#allocation9 + $0x70] sm:$0xff]
    %v411 = vld [vmem:[#allocation9 + $0x78] sm:$0xff]
    %v412 = vld [vmem:[#allocation9 + $0x80] sm:$0xff]
    %v413 = vld [vmem:[#allocation9 + $0x88] sm:$0xff]
    %v414 = vld [vmem:[#allocation9 + $0x90] sm:$0xff]
    %v415 = vld [vmem:[#allocation9 + $0x98] sm:$0xff]
    %v416 = vld [vmem:[#allocation9 + $0xa0] sm:$0xff]
    %v417 = vld [vmem:[#allocation9 + $0xa8] sm:$0xff]
    %v418 = vld [vmem:[#allocation9 + $0xb0] sm:$0xff]
    %v419 = vld [vmem:[#allocation9 + $0xb8] sm:$0xff]
    %v420 = vld [vmem:[#allocation9 + $0xc0] sm:$0xff]
    %v421 = vld [vmem:[#allocation9 + $0xc8] sm:$0xff]
    %v422 = vld [vmem:[#allocation9 + $0xd0] sm:$0xff]
    %v423 = vld [vmem:[#allocation9 + $0xd8] sm:$0xff]
    %v424 = vld [vmem:[#allocation9 + $0xe0] sm:$0xff]
    %v425 = vld [vmem:[#allocation9 + $0xe8] sm:$0xff]
    %v426 = vld [vmem:[#allocation9 + $0xf0] sm:$0xff]
    %v427 = vld [vmem:[#allocation9 + $0xf8] sm:$0xff]
    %v428 = vld [vmem:[#allocation9 + $0x100] sm:$0xff]
    %v429 = vld [vmem:[#allocation9 + $0x108] sm:$0xff]
    %v430 = vld [vmem:[#allocation9 + $0x110] sm:$0xff]
    %v431 = vld [vmem:[#allocation9 + $0x118] sm:$0xff]
    %v432 = vld [vmem:[#allocation9 + $0x120] sm:$0xff]
    %v433 = vld [vmem:[#allocation9 + $0x128] sm:$0xff]
    %v434 = vld [vmem:[#allocation9 + $0x130] sm:$0xff]
    %v435 = vld [vmem:[#allocation9 + $0x138] sm:$0xff]
    %v436 = vld [vmem:[#allocation9 + $0x140] sm:$0xff]
    %v437 = vld [vmem:[#allocation9 + $0x148] sm:$0xff]
    %v438 = vld [vmem:[#allocation9 + $0x150] sm:$0xff]
    %v439 = vld [vmem:[#allocation9 + $0x158] sm:$0xff]
    %v440 = vld [vmem:[#allocation9 + $0x160] sm:$0xff]
    %v441 = vld [vmem:[#allocation9 + $0x168] sm:$0xff]
    %v442 = vld [vmem:[#allocation9 + $0x170] sm:$0xff]
    %v443 = vld [vmem:[#allocation9 + $0x178] sm:$0xff]
    %v444 = vld [vmem:[#allocation9 + $0x180] sm:$0xff]
    %v445 = vld [vmem:[#allocation9 + $0x188] sm:$0xff]
    %v446 = vld [vmem:[#allocation9 + $0x190] sm:$0xff]
    %v447 = vld [vmem:[#allocation9 + $0x198] sm:$0xff]
    %v448 = vld [vmem:[#allocation9 + $0x1a0] sm:$0xff]
    %v449 = vld [vmem:[#allocation9 + $0x1a8] sm:$0xff]
    %v450 = vld [vmem:[#allocation9 + $0x1b0] sm:$0xff]
    %v451 = vld [vmem:[#allocation9 + $0x1b8] sm:$0xff]
    %v452 = vld [vmem:[#allocation9 + $0x1c0] sm:$0xff]
    %v453 = vld [vmem:[#allocation9 + $0x1c8] sm:$0xff]
    %v454 = vld [vmem:[#allocation9 + $0x1d0] sm:$0xff]
    %v455 = vld [vmem:[#allocation9 + $0x1d8] sm:$0xff]
    %v456 = vld [vmem:[#allocation9 + $0x1e0] sm:$0xff]
    %v457 = vld [vmem:[#allocation9 + $0x1e8] sm:$0xff]
    %v458 = vld [vmem:[#allocation9 + $0x1f0] sm:$0xff]
    %v459 = vld [vmem:[#allocation9 + $0x1f8] sm:$0xff]
    %v460 = vunpack.c.l.bf16 %v396
    %v461 = vunpack.c.h.bf16 %v396
    %v462 = vunpack.c.l.bf16 %v397
    %v463 = vunpack.c.h.bf16 %v397
    %v464 = vunpack.c.l.bf16 %v398
    %v465 = vunpack.c.h.bf16 %v398
    %v466 = vunpack.c.l.bf16 %v399
    %v467 = vunpack.c.h.bf16 %v399
    %v468 = vunpack.c.l.bf16 %v400
    %v469 = vunpack.c.h.bf16 %v400
    %v470 = vunpack.c.l.bf16 %v401
    %v471 = vunpack.c.h.bf16 %v401
    %v472 = vunpack.c.l.bf16 %v402
    %v473 = vunpack.c.h.bf16 %v402
    %v474 = vunpack.c.l.bf16 %v403
    %v475 = vunpack.c.h.bf16 %v403
    %v476 = vunpack.c.l.bf16 %v404
    %v477 = vunpack.c.h.bf16 %v404
    %v478 = vunpack.c.l.bf16 %v405
    %v479 = vunpack.c.h.bf16 %v405
    %v480 = vunpack.c.l.bf16 %v406
    %v481 = vunpack.c.h.bf16 %v406
    %v482 = vunpack.c.l.bf16 %v407
    %v483 = vunpack.c.h.bf16 %v407
    %v484 = vunpack.c.l.bf16 %v408
    %v485 = vunpack.c.h.bf16 %v408
    %v486 = vunpack.c.l.bf16 %v409
    %v487 = vunpack.c.h.bf16 %v409
    %v488 = vunpack.c.l.bf16 %v410
    %v489 = vunpack.c.h.bf16 %v410
    %v490 = vunpack.c.l.bf16 %v411
    %v491 = vunpack.c.h.bf16 %v411
    %v492 = vunpack.c.l.bf16 %v412
    %v493 = vunpack.c.h.bf16 %v412
    %v494 = vunpack.c.l.bf16 %v413
    %v495 = vunpack.c.h.bf16 %v413
    %v496 = vunpack.c.l.bf16 %v414
    %v497 = vunpack.c.h.bf16 %v414
    %v498 = vunpack.c.l.bf16 %v415
    %v499 = vunpack.c.h.bf16 %v415
    %v500 = vunpack.c.l.bf16 %v416
    %v501 = vunpack.c.h.bf16 %v416
    %v502 = vunpack.c.l.bf16 %v417
    %v503 = vunpack.c.h.bf16 %v417
    %v504 = vunpack.c.l.bf16 %v418
    %v505 = vunpack.c.h.bf16 %v418
    %v506 = vunpack.c.l.bf16 %v419
    %v507 = vunpack.c.h.bf16 %v419
    %v508 = vunpack.c.l.bf16 %v420
    %v509 = vunpack.c.h.bf16 %v420
    %v510 = vunpack.c.l.bf16 %v421
    %v511 = vunpack.c.h.bf16 %v421
    %v512 = vunpack.c.l.bf16 %v422
    %v513 = vunpack.c.h.bf16 %v422
    %v514 = vunpack.c.l.bf16 %v423
    %v515 = vunpack.c.h.bf16 %v423
    %v516 = vunpack.c.l.bf16 %v424
    %v517 = vunpack.c.h.bf16 %v424
    %v518 = vunpack.c.l.bf16 %v425
    %v519 = vunpack.c.h.bf16 %v425
    %v520 = vunpack.c.l.bf16 %v426
    %v521 = vunpack.c.h.bf16 %v426
    %v522 = vunpack.c.l.bf16 %v427
    %v523 = vunpack.c.h.bf16 %v427
    %v524 = vunpack.c.l.bf16 %v428
    %v525 = vunpack.c.h.bf16 %v428
    %v526 = vunpack.c.l.bf16 %v429
    %v527 = vunpack.c.h.bf16 %v429
    %v528 = vunpack.c.l.bf16 %v430
    %v529 = vunpack.c.h.bf16 %v430
    %v530 = vunpack.c.l.bf16 %v431
    %v531 = vunpack.c.h.bf16 %v431
    %v532 = vunpack.c.l.bf16 %v432
    %v533 = vunpack.c.h.bf16 %v432
    %v534 = vunpack.c.l.bf16 %v433
    %v535 = vunpack.c.h.bf16 %v433
    %v536 = vunpack.c.l.bf16 %v434
    %v537 = vunpack.c.h.bf16 %v434
    %v538 = vunpack.c.l.bf16 %v435
    %v539 = vunpack.c.h.bf16 %v435
    %v540 = vunpack.c.l.bf16 %v436
    %v541 = vunpack.c.h.bf16 %v436
    %v542 = vunpack.c.l.bf16 %v437
    %v543 = vunpack.c.h.bf16 %v437
    %v544 = vunpack.c.l.bf16 %v438
    %v545 = vunpack.c.h.bf16 %v438
    %v546 = vunpack.c.l.bf16 %v439
    %v547 = vunpack.c.h.bf16 %v439
    %v548 = vunpack.c.l.bf16 %v440
    %v549 = vunpack.c.h.bf16 %v440
    %v550 = vunpack.c.l.bf16 %v441
    %v551 = vunpack.c.h.bf16 %v441
    %v552 = vunpack.c.l.bf16 %v442
    %v553 = vunpack.c.h.bf16 %v442
    %v554 = vunpack.c.l.bf16 %v443
    %v555 = vunpack.c.h.bf16 %v443
    %v556 = vunpack.c.l.bf16 %v444
    %v557 = vunpack.c.h.bf16 %v444
    %v558 = vunpack.c.l.bf16 %v445
    %v559 = vunpack.c.h.bf16 %v445
    %v560 = vunpack.c.l.bf16 %v446
    %v561 = vunpack.c.h.bf16 %v446
    %v562 = vunpack.c.l.bf16 %v447
    %v563 = vunpack.c.h.bf16 %v447
    %v564 = vunpack.c.l.bf16 %v448
    %v565 = vunpack.c.h.bf16 %v448
    %v566 = vunpack.c.l.bf16 %v449
    %v567 = vunpack.c.h.bf16 %v449
    %v568 = vunpack.c.l.bf16 %v450
    %v569 = vunpack.c.h.bf16 %v450
    %v570 = vunpack.c.l.bf16 %v451
    %v571 = vunpack.c.h.bf16 %v451
    %v572 = vunpack.c.l.bf16 %v452
    %v573 = vunpack.c.h.bf16 %v452
    %v574 = vunpack.c.l.bf16 %v453
    %v575 = vunpack.c.h.bf16 %v453
    %v576 = vunpack.c.l.bf16 %v454
    %v577 = vunpack.c.h.bf16 %v454
    %v578 = vunpack.c.l.bf16 %v455
    %v579 = vunpack.c.h.bf16 %v455
    %v580 = vunpack.c.l.bf16 %v456
    %v581 = vunpack.c.h.bf16 %v456
    %v582 = vunpack.c.l.bf16 %v457
    %v583 = vunpack.c.h.bf16 %v457
    %v584 = vunpack.c.l.bf16 %v458
    %v585 = vunpack.c.h.bf16 %v458
    %v586 = vunpack.c.l.bf16 %v459
    %v587 = vunpack.c.h.bf16 %v459
    %v588 = vld [vmem:[#allocation10] sm:$0xf]
    %v590 = vlaneseq
    %v591 = vshrl.u32 %v590, 7
    %v592 = vsub.s32 0, %v591
    %v593 = vrot.slane %v588, %v592
    %v594 = vlaneseq
    %v595 = vshrl.u32 %v594, 7
    %v596 = vsub.s32 1, %v595
    %v597 = vrot.slane %v588, %v596
    %v598 = vlaneseq
    %v599 = vshrl.u32 %v598, 7
    %v600 = vsub.s32 2, %v599
    %v601 = vrot.slane %v588, %v600
    %v602 = vlaneseq
    %v603 = vshrl.u32 %v602, 7
    %v604 = vsub.s32 3, %v603
    %v605 = vrot.slane %v588, %v604
    %610 = vmatprep.subr.mxu0 %v461
    %611 = vmatpush1.msra.mxu0 %v460
    %612 = vmatprep.subr.mxu0 %v465
    %613 = vmatpush1.msra.mxu0 %v464
    %614 = vmatprep.subr.mxu0 %v469
    %615 = vmatpush1.msra.mxu0 %v468
    %616 = vmatprep.subr.mxu0 %v473
    %617 = vmatpush1.msra.mxu0 %v472
    %618 = vmatprep.subr.mxu0 %v477
    %619 = vmatpush1.msra.mxu0 %v476
    %620 = vmatprep.subr.mxu0 %v481
    %621 = vmatpush1.msra.mxu0 %v480
    %622 = vmatprep.subr.mxu0 %v485
    %623 = vmatpush1.msra.mxu0 %v484
    %624 = vmatprep.subr.mxu0 %v489
    %625 = vmatpush1.msra.mxu0 %v488
    %626 = vmatprep.subr.mxu0 %v493
    %627 = vmatpush1.msra.mxu0 %v492
    %628 = vmatprep.subr.mxu0 %v497
    %629 = vmatpush1.msra.mxu0 %v496
    %630 = vmatprep.subr.mxu0 %v501
    %631 = vmatpush1.msra.mxu0 %v500
    %632 = vmatprep.subr.mxu0 %v505
    %633 = vmatpush1.msra.mxu0 %v504
    %634 = vmatprep.subr.mxu0 %v509
    %635 = vmatpush1.msra.mxu0 %v508
    %636 = vmatprep.subr.mxu0 %v513
    %637 = vmatpush1.msra.mxu0 %v512
    %638 = vmatprep.subr.mxu0 %v517
    %639 = vmatpush1.msra.mxu0 %v516
    %640 = vmatprep.subr.mxu0 %v521
    %641 = vmatpush1.msra.mxu0 %v520
    %642 = vmatprep.subr.mxu0 %v525
    %643 = vmatpush1.msra.mxu0 %v524
    %644 = vmatprep.subr.mxu0 %v529
    %645 = vmatpush1.msra.mxu0 %v528
    %646 = vmatprep.subr.mxu0 %v533
    %647 = vmatpush1.msra.mxu0 %v532
    %648 = vmatprep.subr.mxu0 %v537
    %649 = vmatpush1.msra.mxu0 %v536
    %650 = vmatprep.subr.mxu0 %v541
    %651 = vmatpush1.msra.mxu0 %v540
    %652 = vmatprep.subr.mxu0 %v545
    %653 = vmatpush1.msra.mxu0 %v544
    %654 = vmatprep.subr.mxu0 %v549
    %655 = vmatpush1.msra.mxu0 %v548
    %656 = vmatprep.subr.mxu0 %v553
    %657 = vmatpush1.msra.mxu0 %v552
    %658 = vmatprep.subr.mxu0 %v557
    %659 = vmatpush1.msra.mxu0 %v556
    %660 = vmatprep.subr.mxu0 %v561
    %661 = vmatpush1.msra.mxu0 %v560
    %662 = vmatprep.subr.mxu0 %v565
    %663 = vmatpush1.msra.mxu0 %v564
    %664 = vmatprep.subr.mxu0 %v569
    %665 = vmatpush1.msra.mxu0 %v568
    %666 = vmatprep.subr.mxu0 %v573
    %667 = vmatpush1.msra.mxu0 %v572
    %668 = vmatprep.subr.mxu0 %v577
    %669 = vmatpush1.msra.mxu0 %v576
    %670 = vmatprep.subr.mxu0 %v581
    %671 = vmatpush1.msra.mxu0 %v580
    %672 = vmatprep.subr.mxu0 %v585
    %673 = vmatpush1.msra.mxu0 %v584
    %674 = vmatprep.mubr.f32.mxu0 %v395
    %675 = vmatmul.mubr.f32.gmra.mrb[0].mxu0 %v394
    %v676 = vpop.f32.mrb[0].mxu0
    %v677 = vadd.f32 %v593, %v676
    %v678 = vpop.f32.mrb[0].mxu0
    %v679 = vadd.f32 %v597, %v678
    %680 = vdwg.mxu0
    %681 = vmatprep.subr.mxu0 %v463
    %682 = vmatpush1.msra.mxu0 %v462
    %683 = vmatprep.subr.mxu0 %v467
    %684 = vmatpush1.msra.mxu0 %v466
    %685 = vmatprep.subr.mxu0 %v471
    %686 = vmatpush1.msra.mxu0 %v470
    %687 = vmatprep.subr.mxu0 %v475
    %688 = vmatpush1.msra.mxu0 %v474
    %689 = vmatprep.subr.mxu0 %v479
    %690 = vmatpush1.msra.mxu0 %v478
    %691 = vmatprep.subr.mxu0 %v483
    %692 = vmatpush1.msra.mxu0 %v482
    %693 = vmatprep.subr.mxu0 %v487
    %694 = vmatpush1.msra.mxu0 %v486
    %695 = vmatprep.subr.mxu0 %v491
    %696 = vmatpush1.msra.mxu0 %v490
    %697 = vmatprep.subr.mxu0 %v495
    %698 = vmatpush1.msra.mxu0 %v494
    %699 = vmatprep.subr.mxu0 %v499
    %700 = vmatpush1.msra.mxu0 %v498
    %701 = vmatprep.subr.mxu0 %v503
    %702 = vmatpush1.msra.mxu0 %v502
    %703 = vmatprep.subr.mxu0 %v507
    %704 = vmatpush1.msra.mxu0 %v506
    %705 = vmatprep.subr.mxu0 %v511
    %706 = vmatpush1.msra.mxu0 %v510
    %707 = vmatprep.subr.mxu0 %v515
    %708 = vmatpush1.msra.mxu0 %v514
    %709 = vmatprep.subr.mxu0 %v519
    %710 = vmatpush1.msra.mxu0 %v518
    %711 = vmatprep.subr.mxu0 %v523
    %712 = vmatpush1.msra.mxu0 %v522
    %713 = vmatprep.subr.mxu0 %v527
    %714 = vmatpush1.msra.mxu0 %v526
    %715 = vmatprep.subr.mxu0 %v531
    %716 = vmatpush1.msra.mxu0 %v530
    %717 = vmatprep.subr.mxu0 %v535
    %718 = vmatpush1.msra.mxu0 %v534
    %719 = vmatprep.subr.mxu0 %v539
    %720 = vmatpush1.msra.mxu0 %v538
    %721 = vmatprep.subr.mxu0 %v543
    %722 = vmatpush1.msra.mxu0 %v542
    %723 = vmatprep.subr.mxu0 %v547
    %724 = vmatpush1.msra.mxu0 %v546
    %725 = vmatprep.subr.mxu0 %v551
    %726 = vmatpush1.msra.mxu0 %v550
    %727 = vmatprep.subr.mxu0 %v555
    %728 = vmatpush1.msra.mxu0 %v554
    %729 = vmatprep.subr.mxu0 %v559
    %730 = vmatpush1.msra.mxu0 %v558
    %731 = vmatprep.subr.mxu0 %v563
    %732 = vmatpush1.msra.mxu0 %v562
    %733 = vmatprep.subr.mxu0 %v567
    %734 = vmatpush1.msra.mxu0 %v566
    %735 = vmatprep.subr.mxu0 %v571
    %736 = vmatpush1.msra.mxu0 %v570
    %737 = vmatprep.subr.mxu0 %v575
    %738 = vmatpush1.msra.mxu0 %v574
    %739 = vmatprep.subr.mxu0 %v579
    %740 = vmatpush1.msra.mxu0 %v578
    %741 = vmatprep.subr.mxu0 %v583
    %742 = vmatpush1.msra.mxu0 %v582
    %743 = vmatprep.subr.mxu0 %v587
    %744 = vmatpush1.msra.mxu0 %v586
    %745 = vmatprep.mubr.f32.mxu0 %v395
    %746 = vmatmul.mubr.f32.gmra.mrb[0].mxu0 %v394
    %v747 = vpop.f32.mrb[0].mxu0
    %v748 = vadd.f32 %v601, %v747
    %v749 = vpop.f32.mrb[0].mxu0
    %v750 = vadd.f32 %v605, %v749
    %751 = vdwg.mxu0
    %vm752 = vcmp.gt.f32.partialorder %v677, 0.0
    %vm753 = vcmp.gt.f32.partialorder %v679, 0.0
    %vm754 = vcmp.gt.f32.partialorder %v748, 0.0
    %vm755 = vcmp.gt.f32.partialorder %v750, 0.0
    %v756 = vmul.f32 %v677, 0.2
    %v757 = vmul.f32 %v679, 0.2
    %v758 = vmul.f32 %v748, 0.2
    %v759 = vmul.f32 %v750, 0.2
    %v760 = vsel %vm752, %v677, %v756
    %v761 = vsel %vm753, %v679, %v757
    %v762 = vsel %vm754, %v748, %v758
    %v763 = vsel %vm755, %v750, %v759
    %v764 = vld [vmem:[#allocation12] sm:$0xff]
    %v765 = vld [vmem:[#allocation12 + $0x8] sm:$0xff]
    %v766 = vld [vmem:[#allocation12 + $0x10] sm:$0xff]
    %v767 = vld [vmem:[#allocation12 + $0x18] sm:$0xff]
    %v768 = vld [vmem:[#allocation12 + $0x20] sm:$0xff]
    %v769 = vld [vmem:[#allocation12 + $0x28] sm:$0xff]
    %v770 = vld [vmem:[#allocation12 + $0x30] sm:$0xff]
    %v771 = vld [vmem:[#allocation12 + $0x38] sm:$0xff]
    %v772 = vld [vmem:[#allocation12 + $0x40] sm:$0xff]
    %v773 = vld [vmem:[#allocation12 + $0x48] sm:$0xff]
    %v774 = vld [vmem:[#allocation12 + $0x50] sm:$0xff]
    %v775 = vld [vmem:[#allocation12 + $0x58] sm:$0xff]
    %v776 = vld [vmem:[#allocation12 + $0x60] sm:$0xff]
    %v777 = vld [vmem:[#allocation12 + $0x68] sm:$0xff]
    %v778 = vld [vmem:[#allocation12 + $0x70] sm:$0xff]
    %v779 = vld [vmem:[#allocation12 + $0x78] sm:$0xff]
    %v780 = vld [vmem:[#allocation12 + $0x80] sm:$0xff]
    %v781 = vld [vmem:[#allocation12 + $0x88] sm:$0xff]
    %v782 = vld [vmem:[#allocation12 + $0x90] sm:$0xff]
    %v783 = vld [vmem:[#allocation12 + $0x98] sm:$0xff]
    %v784 = vld [vmem:[#allocation12 + $0xa0] sm:$0xff]
    %v785 = vld [vmem:[#allocation12 + $0xa8] sm:$0xff]
    %v786 = vld [vmem:[#allocation12 + $0xb0] sm:$0xff]
    %v787 = vld [vmem:[#allocation12 + $0xb8] sm:$0xff]
    %v788 = vld [vmem:[#allocation12 + $0xc0] sm:$0xff]
    %v789 = vld [vmem:[#allocation12 + $0xc8] sm:$0xff]
    %v790 = vld [vmem:[#allocation12 + $0xd0] sm:$0xff]
    %v791 = vld [vmem:[#allocation12 + $0xd8] sm:$0xff]
    %v792 = vld [vmem:[#allocation12 + $0xe0] sm:$0xff]
    %v793 = vld [vmem:[#allocation12 + $0xe8] sm:$0xff]
    %v794 = vld [vmem:[#allocation12 + $0xf0] sm:$0xff]
    %v795 = vld [vmem:[#allocation12 + $0xf8] sm:$0xff]
    %v796 = vld [vmem:[#allocation12 + $0x100] sm:$0xff]
    %v797 = vld [vmem:[#allocation12 + $0x108] sm:$0xff]
    %v798 = vld [vmem:[#allocation12 + $0x110] sm:$0xff]
    %v799 = vld [vmem:[#allocation12 + $0x118] sm:$0xff]
    %v800 = vld [vmem:[#allocation12 + $0x120] sm:$0xff]
    %v801 = vld [vmem:[#allocation12 + $0x128] sm:$0xff]
    %v802 = vld [vmem:[#allocation12 + $0x130] sm:$0xff]
    %v803 = vld [vmem:[#allocation12 + $0x138] sm:$0xff]
    %v804 = vld [vmem:[#allocation12 + $0x140] sm:$0xff]
    %v805 = vld [vmem:[#allocation12 + $0x148] sm:$0xff]
    %v806 = vld [vmem:[#allocation12 + $0x150] sm:$0xff]
    %v807 = vld [vmem:[#allocation12 + $0x158] sm:$0xff]
    %v808 = vld [vmem:[#allocation12 + $0x160] sm:$0xff]
    %v809 = vld [vmem:[#allocation12 + $0x168] sm:$0xff]
    %v810 = vld [vmem:[#allocation12 + $0x170] sm:$0xff]
    %v811 = vld [vmem:[#allocation12 + $0x178] sm:$0xff]
    %v812 = vld [vmem:[#allocation12 + $0x180] sm:$0xff]
    %v813 = vld [vmem:[#allocation12 + $0x188] sm:$0xff]
    %v814 = vld [vmem:[#allocation12 + $0x190] sm:$0xff]
    %v815 = vld [vmem:[#allocation12 + $0x198] sm:$0xff]
    %v816 = vld [vmem:[#allocation12 + $0x1a0] sm:$0xff]
    %v817 = vld [vmem:[#allocation12 + $0x1a8] sm:$0xff]
    %v818 = vld [vmem:[#allocation12 + $0x1b0] sm:$0xff]
    %v819 = vld [vmem:[#allocation12 + $0x1b8] sm:$0xff]
    %v820 = vld [vmem:[#allocation12 + $0x1c0] sm:$0xff]
    %v821 = vld [vmem:[#allocation12 + $0x1c8] sm:$0xff]
    %v822 = vld [vmem:[#allocation12 + $0x1d0] sm:$0xff]
    %v823 = vld [vmem:[#allocation12 + $0x1d8] sm:$0xff]
    %v824 = vld [vmem:[#allocation12 + $0x1e0] sm:$0xff]
    %v825 = vld [vmem:[#allocation12 + $0x1e8] sm:$0xff]
    %v826 = vld [vmem:[#allocation12 + $0x1f0] sm:$0xff]
    %v827 = vld [vmem:[#allocation12 + $0x1f8] sm:$0xff]
    %v828 = vld [vmem:[#allocation12 + $0x200] sm:$0xff]
    %v829 = vld [vmem:[#allocation12 + $0x208] sm:$0xff]
    %v830 = vld [vmem:[#allocation12 + $0x210] sm:$0xff]
    %v831 = vld [vmem:[#allocation12 + $0x218] sm:$0xff]
    %v832 = vld [vmem:[#allocation12 + $0x220] sm:$0xff]
    %v833 = vld [vmem:[#allocation12 + $0x228] sm:$0xff]
    %v834 = vld [vmem:[#allocation12 + $0x230] sm:$0xff]
    %v835 = vld [vmem:[#allocation12 + $0x238] sm:$0xff]
    %v836 = vld [vmem:[#allocation12 + $0x240] sm:$0xff]
    %v837 = vld [vmem:[#allocation12 + $0x248] sm:$0xff]
    %v838 = vld [vmem:[#allocation12 + $0x250] sm:$0xff]
    %v839 = vld [vmem:[#allocation12 + $0x258] sm:$0xff]
    %v840 = vld [vmem:[#allocation12 + $0x260] sm:$0xff]
    %v841 = vld [vmem:[#allocation12 + $0x268] sm:$0xff]
    %v842 = vld [vmem:[#allocation12 + $0x270] sm:$0xff]
    %v843 = vld [vmem:[#allocation12 + $0x278] sm:$0xff]
    %v844 = vld [vmem:[#allocation12 + $0x280] sm:$0xff]
    %v845 = vld [vmem:[#allocation12 + $0x288] sm:$0xff]
    %v846 = vld [vmem:[#allocation12 + $0x290] sm:$0xff]
    %v847 = vld [vmem:[#allocation12 + $0x298] sm:$0xff]
    %v848 = vld [vmem:[#allocation12 + $0x2a0] sm:$0xff]
    %v849 = vld [vmem:[#allocation12 + $0x2a8] sm:$0xff]
    %v850 = vld [vmem:[#allocation12 + $0x2b0] sm:$0xff]
    %v851 = vld [vmem:[#allocation12 + $0x2b8] sm:$0xff]
    %v852 = vld [vmem:[#allocation12 + $0x2c0] sm:$0xff]
    %v853 = vld [vmem:[#allocation12 + $0x2c8] sm:$0xff]
    %v854 = vld [vmem:[#allocation12 + $0x2d0] sm:$0xff]
    %v855 = vld [vmem:[#allocation12 + $0x2d8] sm:$0xff]
    %v856 = vld [vmem:[#allocation12 + $0x2e0] sm:$0xff]
    %v857 = vld [vmem:[#allocation12 + $0x2e8] sm:$0xff]
    %v858 = vld [vmem:[#allocation12 + $0x2f0] sm:$0xff]
    %v859 = vld [vmem:[#allocation12 + $0x2f8] sm:$0xff]
    %v860 = vld [vmem:[#allocation12 + $0x300] sm:$0xff]
    %v861 = vld [vmem:[#allocation12 + $0x308] sm:$0xff]
    %v862 = vld [vmem:[#allocation12 + $0x310] sm:$0xff]
    %v863 = vld [vmem:[#allocation12 + $0x318] sm:$0xff]
    %v864 = vld [vmem:[#allocation12 + $0x320] sm:$0xff]
    %v865 = vld [vmem:[#allocation12 + $0x328] sm:$0xff]
    %v866 = vld [vmem:[#allocation12 + $0x330] sm:$0xff]
    %v867 = vld [vmem:[#allocation12 + $0x338] sm:$0xff]
    %v868 = vld [vmem:[#allocation12 + $0x340] sm:$0xff]
    %v869 = vld [vmem:[#allocation12 + $0x348] sm:$0xff]
    %v870 = vld [vmem:[#allocation12 + $0x350] sm:$0xff]
    %v871 = vld [vmem:[#allocation12 + $0x358] sm:$0xff]
    %v872 = vld [vmem:[#allocation12 + $0x360] sm:$0xff]
    %v873 = vld [vmem:[#allocation12 + $0x368] sm:$0xff]
    %v874 = vld [vmem:[#allocation12 + $0x370] sm:$0xff]
    %v875 = vld [vmem:[#allocation12 + $0x378] sm:$0xff]
    %v876 = vld [vmem:[#allocation12 + $0x380] sm:$0xff]
    %v877 = vld [vmem:[#allocation12 + $0x388] sm:$0xff]
    %v878 = vld [vmem:[#allocation12 + $0x390] sm:$0xff]
    %v879 = vld [vmem:[#allocation12 + $0x398] sm:$0xff]
    %v880 = vld [vmem:[#allocation12 + $0x3a0] sm:$0xff]
    %v881 = vld [vmem:[#allocation12 + $0x3a8] sm:$0xff]
    %v882 = vld [vmem:[#allocation12 + $0x3b0] sm:$0xff]
    %v883 = vld [vmem:[#allocation12 + $0x3b8] sm:$0xff]
    %v884 = vld [vmem:[#allocation12 + $0x3c0] sm:$0xff]
    %v885 = vld [vmem:[#allocation12 + $0x3c8] sm:$0xff]
    %v886 = vld [vmem:[#allocation12 + $0x3d0] sm:$0xff]
    %v887 = vld [vmem:[#allocation12 + $0x3d8] sm:$0xff]
    %v888 = vld [vmem:[#allocation12 + $0x3e0] sm:$0xff]
    %v889 = vld [vmem:[#allocation12 + $0x3e8] sm:$0xff]
    %v890 = vld [vmem:[#allocation12 + $0x3f0] sm:$0xff]
    %v891 = vld [vmem:[#allocation12 + $0x3f8] sm:$0xff]
    %v892 = vld [vmem:[#allocation12 + $0x400] sm:$0xff]
    %v893 = vld [vmem:[#allocation12 + $0x408] sm:$0xff]
    %v894 = vld [vmem:[#allocation12 + $0x410] sm:$0xff]
    %v895 = vld [vmem:[#allocation12 + $0x418] sm:$0xff]
    %v896 = vld [vmem:[#allocation12 + $0x420] sm:$0xff]
    %v897 = vld [vmem:[#allocation12 + $0x428] sm:$0xff]
    %v898 = vld [vmem:[#allocation12 + $0x430] sm:$0xff]
    %v899 = vld [vmem:[#allocation12 + $0x438] sm:$0xff]
    %v900 = vld [vmem:[#allocation12 + $0x440] sm:$0xff]
    %v901 = vld [vmem:[#allocation12 + $0x448] sm:$0xff]
    %v902 = vld [vmem:[#allocation12 + $0x450] sm:$0xff]
    %v903 = vld [vmem:[#allocation12 + $0x458] sm:$0xff]
    %v904 = vld [vmem:[#allocation12 + $0x460] sm:$0xff]
    %v905 = vld [vmem:[#allocation12 + $0x468] sm:$0xff]
    %v906 = vld [vmem:[#allocation12 + $0x470] sm:$0xff]
    %v907 = vld [vmem:[#allocation12 + $0x478] sm:$0xff]
    %v908 = vld [vmem:[#allocation12 + $0x480] sm:$0xff]
    %v909 = vld [vmem:[#allocation12 + $0x488] sm:$0xff]
    %v910 = vld [vmem:[#allocation12 + $0x490] sm:$0xff]
    %v911 = vld [vmem:[#allocation12 + $0x498] sm:$0xff]
    %v912 = vld [vmem:[#allocation12 + $0x4a0] sm:$0xff]
    %v913 = vld [vmem:[#allocation12 + $0x4a8] sm:$0xff]
    %v914 = vld [vmem:[#allocation12 + $0x4b0] sm:$0xff]
    %v915 = vld [vmem:[#allocation12 + $0x4b8] sm:$0xff]
    %v916 = vld [vmem:[#allocation12 + $0x4c0] sm:$0xff]
    %v917 = vld [vmem:[#allocation12 + $0x4c8] sm:$0xff]
    %v918 = vld [vmem:[#allocation12 + $0x4d0] sm:$0xff]
    %v919 = vld [vmem:[#allocation12 + $0x4d8] sm:$0xff]
    %v920 = vld [vmem:[#allocation12 + $0x4e0] sm:$0xff]
    %v921 = vld [vmem:[#allocation12 + $0x4e8] sm:$0xff]
    %v922 = vld [vmem:[#allocation12 + $0x4f0] sm:$0xff]
    %v923 = vld [vmem:[#allocation12 + $0x4f8] sm:$0xff]
    %v924 = vld [vmem:[#allocation12 + $0x500] sm:$0xff]
    %v925 = vld [vmem:[#allocation12 + $0x508] sm:$0xff]
    %v926 = vld [vmem:[#allocation12 + $0x510] sm:$0xff]
    %v927 = vld [vmem:[#allocation12 + $0x518] sm:$0xff]
    %v928 = vld [vmem:[#allocation12 + $0x520] sm:$0xff]
    %v929 = vld [vmem:[#allocation12 + $0x528] sm:$0xff]
    %v930 = vld [vmem:[#allocation12 + $0x530] sm:$0xff]
    %v931 = vld [vmem:[#allocation12 + $0x538] sm:$0xff]
    %v932 = vld [vmem:[#allocation12 + $0x540] sm:$0xff]
    %v933 = vld [vmem:[#allocation12 + $0x548] sm:$0xff]
    %v934 = vld [vmem:[#allocation12 + $0x550] sm:$0xff]
    %v935 = vld [vmem:[#allocation12 + $0x558] sm:$0xff]
    %v936 = vld [vmem:[#allocation12 + $0x560] sm:$0xff]
    %v937 = vld [vmem:[#allocation12 + $0x568] sm:$0xff]
    %v938 = vld [vmem:[#allocation12 + $0x570] sm:$0xff]
    %v939 = vld [vmem:[#allocation12 + $0x578] sm:$0xff]
    %v940 = vld [vmem:[#allocation12 + $0x580] sm:$0xff]
    %v941 = vld [vmem:[#allocation12 + $0x588] sm:$0xff]
    %v942 = vld [vmem:[#allocation12 + $0x590] sm:$0xff]
    %v943 = vld [vmem:[#allocation12 + $0x598] sm:$0xff]
    %v944 = vld [vmem:[#allocation12 + $0x5a0] sm:$0xff]
    %v945 = vld [vmem:[#allocation12 + $0x5a8] sm:$0xff]
    %v946 = vld [vmem:[#allocation12 + $0x5b0] sm:$0xff]
    %v947 = vld [vmem:[#allocation12 + $0x5b8] sm:$0xff]
    %v948 = vld [vmem:[#allocation12 + $0x5c0] sm:$0xff]
    %v949 = vld [vmem:[#allocation12 + $0x5c8] sm:$0xff]
    %v950 = vld [vmem:[#allocation12 + $0x5d0] sm:$0xff]
    %v951 = vld [vmem:[#allocation12 + $0x5d8] sm:$0xff]
    %v952 = vld [vmem:[#allocation12 + $0x5e0] sm:$0xff]
    %v953 = vld [vmem:[#allocation12 + $0x5e8] sm:$0xff]
    %v954 = vld [vmem:[#allocation12 + $0x5f0] sm:$0xff]
    %v955 = vld [vmem:[#allocation12 + $0x5f8] sm:$0xff]
    %v956 = vld [vmem:[#allocation12 + $0x600] sm:$0xff]
    %v957 = vld [vmem:[#allocation12 + $0x608] sm:$0xff]
    %v958 = vld [vmem:[#allocation12 + $0x610] sm:$0xff]
    %v959 = vld [vmem:[#allocation12 + $0x618] sm:$0xff]
    %v960 = vld [vmem:[#allocation12 + $0x620] sm:$0xff]
    %v961 = vld [vmem:[#allocation12 + $0x628] sm:$0xff]
    %v962 = vld [vmem:[#allocation12 + $0x630] sm:$0xff]
    %v963 = vld [vmem:[#allocation12 + $0x638] sm:$0xff]
    %v964 = vld [vmem:[#allocation12 + $0x640] sm:$0xff]
    %v965 = vld [vmem:[#allocation12 + $0x648] sm:$0xff]
    %v966 = vld [vmem:[#allocation12 + $0x650] sm:$0xff]
    %v967 = vld [vmem:[#allocation12 + $0x658] sm:$0xff]
    %v968 = vld [vmem:[#allocation12 + $0x660] sm:$0xff]
    %v969 = vld [vmem:[#allocation12 + $0x668] sm:$0xff]
    %v970 = vld [vmem:[#allocation12 + $0x670] sm:$0xff]
    %v971 = vld [vmem:[#allocation12 + $0x678] sm:$0xff]
    %v972 = vld [vmem:[#allocation12 + $0x680] sm:$0xff]
    %v973 = vld [vmem:[#allocation12 + $0x688] sm:$0xff]
    %v974 = vld [vmem:[#allocation12 + $0x690] sm:$0xff]
    %v975 = vld [vmem:[#allocation12 + $0x698] sm:$0xff]
    %v976 = vld [vmem:[#allocation12 + $0x6a0] sm:$0xff]
    %v977 = vld [vmem:[#allocation12 + $0x6a8] sm:$0xff]
    %v978 = vld [vmem:[#allocation12 + $0x6b0] sm:$0xff]
    %v979 = vld [vmem:[#allocation12 + $0x6b8] sm:$0xff]
    %v980 = vld [vmem:[#allocation12 + $0x6c0] sm:$0xff]
    %v981 = vld [vmem:[#allocation12 + $0x6c8] sm:$0xff]
    %v982 = vld [vmem:[#allocation12 + $0x6d0] sm:$0xff]
    %v983 = vld [vmem:[#allocation12 + $0x6d8] sm:$0xff]
    %v984 = vld [vmem:[#allocation12 + $0x6e0] sm:$0xff]
    %v985 = vld [vmem:[#allocation12 + $0x6e8] sm:$0xff]
    %v986 = vld [vmem:[#allocation12 + $0x6f0] sm:$0xff]
    %v987 = vld [vmem:[#allocation12 + $0x6f8] sm:$0xff]
    %v988 = vld [vmem:[#allocation12 + $0x700] sm:$0xff]
    %v989 = vld [vmem:[#allocation12 + $0x708] sm:$0xff]
    %v990 = vld [vmem:[#allocation12 + $0x710] sm:$0xff]
    %v991 = vld [vmem:[#allocation12 + $0x718] sm:$0xff]
    %v992 = vld [vmem:[#allocation12 + $0x720] sm:$0xff]
    %v993 = vld [vmem:[#allocation12 + $0x728] sm:$0xff]
    %v994 = vld [vmem:[#allocation12 + $0x730] sm:$0xff]
    %v995 = vld [vmem:[#allocation12 + $0x738] sm:$0xff]
    %v996 = vld [vmem:[#allocation12 + $0x740] sm:$0xff]
    %v997 = vld [vmem:[#allocation12 + $0x748] sm:$0xff]
    %v998 = vld [vmem:[#allocation12 + $0x750] sm:$0xff]
    %v999 = vld [vmem:[#allocation12 + $0x758] sm:$0xff]
    %v1000 = vld [vmem:[#allocation12 + $0x760] sm:$0xff]
    %v1001 = vld [vmem:[#allocation12 + $0x768] sm:$0xff]
    %v1002 = vld [vmem:[#allocation12 + $0x770] sm:$0xff]
    %v1003 = vld [vmem:[#allocation12 + $0x778] sm:$0xff]
    %v1004 = vld [vmem:[#allocation12 + $0x780] sm:$0xff]
    %v1005 = vld [vmem:[#allocation12 + $0x788] sm:$0xff]
    %v1006 = vld [vmem:[#allocation12 + $0x790] sm:$0xff]
    %v1007 = vld [vmem:[#allocation12 + $0x798] sm:$0xff]
    %v1008 = vld [vmem:[#allocation12 + $0x7a0] sm:$0xff]
    %v1009 = vld [vmem:[#allocation12 + $0x7a8] sm:$0xff]
    %v1010 = vld [vmem:[#allocation12 + $0x7b0] sm:$0xff]
    %v1011 = vld [vmem:[#allocation12 + $0x7b8] sm:$0xff]
    %v1012 = vld [vmem:[#allocation12 + $0x7c0] sm:$0xff]
    %v1013 = vld [vmem:[#allocation12 + $0x7c8] sm:$0xff]
    %v1014 = vld [vmem:[#allocation12 + $0x7d0] sm:$0xff]
    %v1015 = vld [vmem:[#allocation12 + $0x7d8] sm:$0xff]
    %v1016 = vld [vmem:[#allocation12 + $0x7e0] sm:$0xff]
    %v1017 = vld [vmem:[#allocation12 + $0x7e8] sm:$0xff]
    %v1018 = vld [vmem:[#allocation12 + $0x7f0] sm:$0xff]
    %v1019 = vld [vmem:[#allocation12 + $0x7f8] sm:$0xff]
    %v1020 = vunpack.c.l.bf16 %v764
    %v1021 = vunpack.c.h.bf16 %v764
    %v1022 = vunpack.c.l.bf16 %v765
    %v1023 = vunpack.c.h.bf16 %v765
    %v1024 = vunpack.c.l.bf16 %v766
    %v1025 = vunpack.c.h.bf16 %v766
    %v1026 = vunpack.c.l.bf16 %v767
    %v1027 = vunpack.c.h.bf16 %v767
    %v1028 = vunpack.c.l.bf16 %v768
    %v1029 = vunpack.c.h.bf16 %v768
    %v1030 = vunpack.c.l.bf16 %v769
    %v1031 = vunpack.c.h.bf16 %v769
    %v1032 = vunpack.c.l.bf16 %v770
    %v1033 = vunpack.c.h.bf16 %v770
    %v1034 = vunpack.c.l.bf16 %v771
    %v1035 = vunpack.c.h.bf16 %v771
    %v1036 = vunpack.c.l.bf16 %v772
    %v1037 = vunpack.c.h.bf16 %v772
    %v1038 = vunpack.c.l.bf16 %v773
    %v1039 = vunpack.c.h.bf16 %v773
    %v1040 = vunpack.c.l.bf16 %v774
    %v1041 = vunpack.c.h.bf16 %v774
    %v1042 = vunpack.c.l.bf16 %v775
    %v1043 = vunpack.c.h.bf16 %v775
    %v1044 = vunpack.c.l.bf16 %v776
    %v1045 = vunpack.c.h.bf16 %v776
    %v1046 = vunpack.c.l.bf16 %v777
    %v1047 = vunpack.c.h.bf16 %v777
    %v1048 = vunpack.c.l.bf16 %v778
    %v1049 = vunpack.c.h.bf16 %v778
    %v1050 = vunpack.c.l.bf16 %v779
    %v1051 = vunpack.c.h.bf16 %v779
    %v1052 = vunpack.c.l.bf16 %v780
    %v1053 = vunpack.c.h.bf16 %v780
    %v1054 = vunpack.c.l.bf16 %v781
    %v1055 = vunpack.c.h.bf16 %v781
    %v1056 = vunpack.c.l.bf16 %v782
    %v1057 = vunpack.c.h.bf16 %v782
    %v1058 = vunpack.c.l.bf16 %v783
    %v1059 = vunpack.c.h.bf16 %v783
    %v1060 = vunpack.c.l.bf16 %v784
    %v1061 = vunpack.c.h.bf16 %v784
    %v1062 = vunpack.c.l.bf16 %v785
    %v1063 = vunpack.c.h.bf16 %v785
    %v1064 = vunpack.c.l.bf16 %v786
    %v1065 = vunpack.c.h.bf16 %v786
    %v1066 = vunpack.c.l.bf16 %v787
    %v1067 = vunpack.c.h.bf16 %v787
    %v1068 = vunpack.c.l.bf16 %v788
    %v1069 = vunpack.c.h.bf16 %v788
    %v1070 = vunpack.c.l.bf16 %v789
    %v1071 = vunpack.c.h.bf16 %v789
    %v1072 = vunpack.c.l.bf16 %v790
    %v1073 = vunpack.c.h.bf16 %v790
    %v1074 = vunpack.c.l.bf16 %v791
    %v1075 = vunpack.c.h.bf16 %v791
    %v1076 = vunpack.c.l.bf16 %v792
    %v1077 = vunpack.c.h.bf16 %v792
    %v1078 = vunpack.c.l.bf16 %v793
    %v1079 = vunpack.c.h.bf16 %v793
    %v1080 = vunpack.c.l.bf16 %v794
    %v1081 = vunpack.c.h.bf16 %v794
    %v1082 = vunpack.c.l.bf16 %v795
    %v1083 = vunpack.c.h.bf16 %v795
    %v1084 = vunpack.c.l.bf16 %v796
    %v1085 = vunpack.c.h.bf16 %v796
    %v1086 = vunpack.c.l.bf16 %v797
    %v1087 = vunpack.c.h.bf16 %v797
    %v1088 = vunpack.c.l.bf16 %v798
    %v1089 = vunpack.c.h.bf16 %v798
    %v1090 = vunpack.c.l.bf16 %v799
    %v1091 = vunpack.c.h.bf16 %v799
    %v1092 = vunpack.c.l.bf16 %v800
    %v1093 = vunpack.c.h.bf16 %v800
    %v1094 = vunpack.c.l.bf16 %v801
    %v1095 = vunpack.c.h.bf16 %v801
    %v1096 = vunpack.c.l.bf16 %v802
    %v1097 = vunpack.c.h.bf16 %v802
    %v1098 = vunpack.c.l.bf16 %v803
    %v1099 = vunpack.c.h.bf16 %v803
    %v1100 = vunpack.c.l.bf16 %v804
    %v1101 = vunpack.c.h.bf16 %v804
    %v1102 = vunpack.c.l.bf16 %v805
    %v1103 = vunpack.c.h.bf16 %v805
    %v1104 = vunpack.c.l.bf16 %v806
    %v1105 = vunpack.c.h.bf16 %v806
    %v1106 = vunpack.c.l.bf16 %v807
    %v1107 = vunpack.c.h.bf16 %v807
    %v1108 = vunpack.c.l.bf16 %v808
    %v1109 = vunpack.c.h.bf16 %v808
    %v1110 = vunpack.c.l.bf16 %v809
    %v1111 = vunpack.c.h.bf16 %v809
    %v1112 = vunpack.c.l.bf16 %v810
    %v1113 = vunpack.c.h.bf16 %v810
    %v1114 = vunpack.c.l.bf16 %v811
    %v1115 = vunpack.c.h.bf16 %v811
    %v1116 = vunpack.c.l.bf16 %v812
    %v1117 = vunpack.c.h.bf16 %v812
    %v1118 = vunpack.c.l.bf16 %v813
    %v1119 = vunpack.c.h.bf16 %v813
    %v1120 = vunpack.c.l.bf16 %v814
    %v1121 = vunpack.c.h.bf16 %v814
    %v1122 = vunpack.c.l.bf16 %v815
    %v1123 = vunpack.c.h.bf16 %v815
    %v1124 = vunpack.c.l.bf16 %v816
    %v1125 = vunpack.c.h.bf16 %v816
    %v1126 = vunpack.c.l.bf16 %v817
    %v1127 = vunpack.c.h.bf16 %v817
    %v1128 = vunpack.c.l.bf16 %v818
    %v1129 = vunpack.c.h.bf16 %v818
    %v1130 = vunpack.c.l.bf16 %v819
    %v1131 = vunpack.c.h.bf16 %v819
    %v1132 = vunpack.c.l.bf16 %v820
    %v1133 = vunpack.c.h.bf16 %v820
    %v1134 = vunpack.c.l.bf16 %v821
    %v1135 = vunpack.c.h.bf16 %v821
    %v1136 = vunpack.c.l.bf16 %v822
    %v1137 = vunpack.c.h.bf16 %v822
    %v1138 = vunpack.c.l.bf16 %v823
    %v1139 = vunpack.c.h.bf16 %v823
    %v1140 = vunpack.c.l.bf16 %v824
    %v1141 = vunpack.c.h.bf16 %v824
    %v1142 = vunpack.c.l.bf16 %v825
    %v1143 = vunpack.c.h.bf16 %v825
    %v1144 = vunpack.c.l.bf16 %v826
    %v1145 = vunpack.c.h.bf16 %v826
    %v1146 = vunpack.c.l.bf16 %v827
    %v1147 = vunpack.c.h.bf16 %v827
    %v1148 = vunpack.c.l.bf16 %v828
    %v1149 = vunpack.c.h.bf16 %v828
    %v1150 = vunpack.c.l.bf16 %v829
    %v1151 = vunpack.c.h.bf16 %v829
    %v1152 = vunpack.c.l.bf16 %v830
    %v1153 = vunpack.c.h.bf16 %v830
    %v1154 = vunpack.c.l.bf16 %v831
    %v1155 = vunpack.c.h.bf16 %v831
    %v1156 = vunpack.c.l.bf16 %v832
    %v1157 = vunpack.c.h.bf16 %v832
    %v1158 = vunpack.c.l.bf16 %v833
    %v1159 = vunpack.c.h.bf16 %v833
    %v1160 = vunpack.c.l.bf16 %v834
    %v1161 = vunpack.c.h.bf16 %v834
    %v1162 = vunpack.c.l.bf16 %v835
    %v1163 = vunpack.c.h.bf16 %v835
    %v1164 = vunpack.c.l.bf16 %v836
    %v1165 = vunpack.c.h.bf16 %v836
    %v1166 = vunpack.c.l.bf16 %v837
    %v1167 = vunpack.c.h.bf16 %v837
    %v1168 = vunpack.c.l.bf16 %v838
    %v1169 = vunpack.c.h.bf16 %v838
    %v1170 = vunpack.c.l.bf16 %v839
    %v1171 = vunpack.c.h.bf16 %v839
    %v1172 = vunpack.c.l.bf16 %v840
    %v1173 = vunpack.c.h.bf16 %v840
    %v1174 = vunpack.c.l.bf16 %v841
    %v1175 = vunpack.c.h.bf16 %v841
    %v1176 = vunpack.c.l.bf16 %v842
    %v1177 = vunpack.c.h.bf16 %v842
    %v1178 = vunpack.c.l.bf16 %v843
    %v1179 = vunpack.c.h.bf16 %v843
    %v1180 = vunpack.c.l.bf16 %v844
    %v1181 = vunpack.c.h.bf16 %v844
    %v1182 = vunpack.c.l.bf16 %v845
    %v1183 = vunpack.c.h.bf16 %v845
    %v1184 = vunpack.c.l.bf16 %v846
    %v1185 = vunpack.c.h.bf16 %v846
    %v1186 = vunpack.c.l.bf16 %v847
    %v1187 = vunpack.c.h.bf16 %v847
    %v1188 = vunpack.c.l.bf16 %v848
    %v1189 = vunpack.c.h.bf16 %v848
    %v1190 = vunpack.c.l.bf16 %v849
    %v1191 = vunpack.c.h.bf16 %v849
    %v1192 = vunpack.c.l.bf16 %v850
    %v1193 = vunpack.c.h.bf16 %v850
    %v1194 = vunpack.c.l.bf16 %v851
    %v1195 = vunpack.c.h.bf16 %v851
    %v1196 = vunpack.c.l.bf16 %v852
    %v1197 = vunpack.c.h.bf16 %v852
    %v1198 = vunpack.c.l.bf16 %v853
    %v1199 = vunpack.c.h.bf16 %v853
    %v1200 = vunpack.c.l.bf16 %v854
    %v1201 = vunpack.c.h.bf16 %v854
    %v1202 = vunpack.c.l.bf16 %v855
    %v1203 = vunpack.c.h.bf16 %v855
    %v1204 = vunpack.c.l.bf16 %v856
    %v1205 = vunpack.c.h.bf16 %v856
    %v1206 = vunpack.c.l.bf16 %v857
    %v1207 = vunpack.c.h.bf16 %v857
    %v1208 = vunpack.c.l.bf16 %v858
    %v1209 = vunpack.c.h.bf16 %v858
    %v1210 = vunpack.c.l.bf16 %v859
    %v1211 = vunpack.c.h.bf16 %v859
    %v1212 = vunpack.c.l.bf16 %v860
    %v1213 = vunpack.c.h.bf16 %v860
    %v1214 = vunpack.c.l.bf16 %v861
    %v1215 = vunpack.c.h.bf16 %v861
    %v1216 = vunpack.c.l.bf16 %v862
    %v1217 = vunpack.c.h.bf16 %v862
    %v1218 = vunpack.c.l.bf16 %v863
    %v1219 = vunpack.c.h.bf16 %v863
    %v1220 = vunpack.c.l.bf16 %v864
    %v1221 = vunpack.c.h.bf16 %v864
    %v1222 = vunpack.c.l.bf16 %v865
    %v1223 = vunpack.c.h.bf16 %v865
    %v1224 = vunpack.c.l.bf16 %v866
    %v1225 = vunpack.c.h.bf16 %v866
    %v1226 = vunpack.c.l.bf16 %v867
    %v1227 = vunpack.c.h.bf16 %v867
    %v1228 = vunpack.c.l.bf16 %v868
    %v1229 = vunpack.c.h.bf16 %v868
    %v1230 = vunpack.c.l.bf16 %v869
    %v1231 = vunpack.c.h.bf16 %v869
    %v1232 = vunpack.c.l.bf16 %v870
    %v1233 = vunpack.c.h.bf16 %v870
    %v1234 = vunpack.c.l.bf16 %v871
    %v1235 = vunpack.c.h.bf16 %v871
    %v1236 = vunpack.c.l.bf16 %v872
    %v1237 = vunpack.c.h.bf16 %v872
    %v1238 = vunpack.c.l.bf16 %v873
    %v1239 = vunpack.c.h.bf16 %v873
    %v1240 = vunpack.c.l.bf16 %v874
    %v1241 = vunpack.c.h.bf16 %v874
    %v1242 = vunpack.c.l.bf16 %v875
    %v1243 = vunpack.c.h.bf16 %v875
    %v1244 = vunpack.c.l.bf16 %v876
    %v1245 = vunpack.c.h.bf16 %v876
    %v1246 = vunpack.c.l.bf16 %v877
    %v1247 = vunpack.c.h.bf16 %v877
    %v1248 = vunpack.c.l.bf16 %v878
    %v1249 = vunpack.c.h.bf16 %v878
    %v1250 = vunpack.c.l.bf16 %v879
    %v1251 = vunpack.c.h.bf16 %v879
    %v1252 = vunpack.c.l.bf16 %v880
    %v1253 = vunpack.c.h.bf16 %v880
    %v1254 = vunpack.c.l.bf16 %v881
    %v1255 = vunpack.c.h.bf16 %v881
    %v1256 = vunpack.c.l.bf16 %v882
    %v1257 = vunpack.c.h.bf16 %v882
    %v1258 = vunpack.c.l.bf16 %v883
    %v1259 = vunpack.c.h.bf16 %v883
    %v1260 = vunpack.c.l.bf16 %v884
    %v1261 = vunpack.c.h.bf16 %v884
    %v1262 = vunpack.c.l.bf16 %v885
    %v1263 = vunpack.c.h.bf16 %v885
    %v1264 = vunpack.c.l.bf16 %v886
    %v1265 = vunpack.c.h.bf16 %v886
    %v1266 = vunpack.c.l.bf16 %v887
    %v1267 = vunpack.c.h.bf16 %v887
    %v1268 = vunpack.c.l.bf16 %v888
    %v1269 = vunpack.c.h.bf16 %v888
    %v1270 = vunpack.c.l.bf16 %v889
    %v1271 = vunpack.c.h.bf16 %v889
    %v1272 = vunpack.c.l.bf16 %v890
    %v1273 = vunpack.c.h.bf16 %v890
    %v1274 = vunpack.c.l.bf16 %v891
    %v1275 = vunpack.c.h.bf16 %v891
    %v1276 = vunpack.c.l.bf16 %v892
    %v1277 = vunpack.c.h.bf16 %v892
    %v1278 = vunpack.c.l.bf16 %v893
    %v1279 = vunpack.c.h.bf16 %v893
    %v1280 = vunpack.c.l.bf16 %v894
    %v1281 = vunpack.c.h.bf16 %v894
    %v1282 = vunpack.c.l.bf16 %v895
    %v1283 = vunpack.c.h.bf16 %v895
    %v1284 = vunpack.c.l.bf16 %v896
    %v1285 = vunpack.c.h.bf16 %v896
    %v1286 = vunpack.c.l.bf16 %v897
    %v1287 = vunpack.c.h.bf16 %v897
    %v1288 = vunpack.c.l.bf16 %v898
    %v1289 = vunpack.c.h.bf16 %v898
    %v1290 = vunpack.c.l.bf16 %v899
    %v1291 = vunpack.c.h.bf16 %v899
    %v1292 = vunpack.c.l.bf16 %v900
    %v1293 = vunpack.c.h.bf16 %v900
    %v1294 = vunpack.c.l.bf16 %v901
    %v1295 = vunpack.c.h.bf16 %v901
    %v1296 = vunpack.c.l.bf16 %v902
    %v1297 = vunpack.c.h.bf16 %v902
    %v1298 = vunpack.c.l.bf16 %v903
    %v1299 = vunpack.c.h.bf16 %v903
    %v1300 = vunpack.c.l.bf16 %v904
    %v1301 = vunpack.c.h.bf16 %v904
    %v1302 = vunpack.c.l.bf16 %v905
    %v1303 = vunpack.c.h.bf16 %v905
    %v1304 = vunpack.c.l.bf16 %v906
    %v1305 = vunpack.c.h.bf16 %v906
    %v1306 = vunpack.c.l.bf16 %v907
    %v1307 = vunpack.c.h.bf16 %v907
    %v1308 = vunpack.c.l.bf16 %v908
    %v1309 = vunpack.c.h.bf16 %v908
    %v1310 = vunpack.c.l.bf16 %v909
    %v1311 = vunpack.c.h.bf16 %v909
    %v1312 = vunpack.c.l.bf16 %v910
    %v1313 = vunpack.c.h.bf16 %v910
    %v1314 = vunpack.c.l.bf16 %v911
    %v1315 = vunpack.c.h.bf16 %v911
    %v1316 = vunpack.c.l.bf16 %v912
    %v1317 = vunpack.c.h.bf16 %v912
    %v1318 = vunpack.c.l.bf16 %v913
    %v1319 = vunpack.c.h.bf16 %v913
    %v1320 = vunpack.c.l.bf16 %v914
    %v1321 = vunpack.c.h.bf16 %v914
    %v1322 = vunpack.c.l.bf16 %v915
    %v1323 = vunpack.c.h.bf16 %v915
    %v1324 = vunpack.c.l.bf16 %v916
    %v1325 = vunpack.c.h.bf16 %v916
    %v1326 = vunpack.c.l.bf16 %v917
    %v1327 = vunpack.c.h.bf16 %v917
    %v1328 = vunpack.c.l.bf16 %v918
    %v1329 = vunpack.c.h.bf16 %v918
    %v1330 = vunpack.c.l.bf16 %v919
    %v1331 = vunpack.c.h.bf16 %v919
    %v1332 = vunpack.c.l.bf16 %v920
    %v1333 = vunpack.c.h.bf16 %v920
    %v1334 = vunpack.c.l.bf16 %v921
    %v1335 = vunpack.c.h.bf16 %v921
    %v1336 = vunpack.c.l.bf16 %v922
    %v1337 = vunpack.c.h.bf16 %v922
    %v1338 = vunpack.c.l.bf16 %v923
    %v1339 = vunpack.c.h.bf16 %v923
    %v1340 = vunpack.c.l.bf16 %v924
    %v1341 = vunpack.c.h.bf16 %v924
    %v1342 = vunpack.c.l.bf16 %v925
    %v1343 = vunpack.c.h.bf16 %v925
    %v1344 = vunpack.c.l.bf16 %v926
    %v1345 = vunpack.c.h.bf16 %v926
    %v1346 = vunpack.c.l.bf16 %v927
    %v1347 = vunpack.c.h.bf16 %v927
    %v1348 = vunpack.c.l.bf16 %v928
    %v1349 = vunpack.c.h.bf16 %v928
    %v1350 = vunpack.c.l.bf16 %v929
    %v1351 = vunpack.c.h.bf16 %v929
    %v1352 = vunpack.c.l.bf16 %v930
    %v1353 = vunpack.c.h.bf16 %v930
    %v1354 = vunpack.c.l.bf16 %v931
    %v1355 = vunpack.c.h.bf16 %v931
    %v1356 = vunpack.c.l.bf16 %v932
    %v1357 = vunpack.c.h.bf16 %v932
    %v1358 = vunpack.c.l.bf16 %v933
    %v1359 = vunpack.c.h.bf16 %v933
    %v1360 = vunpack.c.l.bf16 %v934
    %v1361 = vunpack.c.h.bf16 %v934
    %v1362 = vunpack.c.l.bf16 %v935
    %v1363 = vunpack.c.h.bf16 %v935
    %v1364 = vunpack.c.l.bf16 %v936
    %v1365 = vunpack.c.h.bf16 %v936
    %v1366 = vunpack.c.l.bf16 %v937
    %v1367 = vunpack.c.h.bf16 %v937
    %v1368 = vunpack.c.l.bf16 %v938
    %v1369 = vunpack.c.h.bf16 %v938
    %v1370 = vunpack.c.l.bf16 %v939
    %v1371 = vunpack.c.h.bf16 %v939
    %v1372 = vunpack.c.l.bf16 %v940
    %v1373 = vunpack.c.h.bf16 %v940
    %v1374 = vunpack.c.l.bf16 %v941
    %v1375 = vunpack.c.h.bf16 %v941
    %v1376 = vunpack.c.l.bf16 %v942
    %v1377 = vunpack.c.h.bf16 %v942
    %v1378 = vunpack.c.l.bf16 %v943
    %v1379 = vunpack.c.h.bf16 %v943
    %v1380 = vunpack.c.l.bf16 %v944
    %v1381 = vunpack.c.h.bf16 %v944
    %v1382 = vunpack.c.l.bf16 %v945
    %v1383 = vunpack.c.h.bf16 %v945
    %v1384 = vunpack.c.l.bf16 %v946
    %v1385 = vunpack.c.h.bf16 %v946
    %v1386 = vunpack.c.l.bf16 %v947
    %v1387 = vunpack.c.h.bf16 %v947
    %v1388 = vunpack.c.l.bf16 %v948
    %v1389 = vunpack.c.h.bf16 %v948
    %v1390 = vunpack.c.l.bf16 %v949
    %v1391 = vunpack.c.h.bf16 %v949
    %v1392 = vunpack.c.l.bf16 %v950
    %v1393 = vunpack.c.h.bf16 %v950
    %v1394 = vunpack.c.l.bf16 %v951
    %v1395 = vunpack.c.h.bf16 %v951
    %v1396 = vunpack.c.l.bf16 %v952
    %v1397 = vunpack.c.h.bf16 %v952
    %v1398 = vunpack.c.l.bf16 %v953
    %v1399 = vunpack.c.h.bf16 %v953
    %v1400 = vunpack.c.l.bf16 %v954
    %v1401 = vunpack.c.h.bf16 %v954
    %v1402 = vunpack.c.l.bf16 %v955
    %v1403 = vunpack.c.h.bf16 %v955
    %v1404 = vunpack.c.l.bf16 %v956
    %v1405 = vunpack.c.h.bf16 %v956
    %v1406 = vunpack.c.l.bf16 %v957
    %v1407 = vunpack.c.h.bf16 %v957
    %v1408 = vunpack.c.l.bf16 %v958
    %v1409 = vunpack.c.h.bf16 %v958
    %v1410 = vunpack.c.l.bf16 %v959
    %v1411 = vunpack.c.h.bf16 %v959
    %v1412 = vunpack.c.l.bf16 %v960
    %v1413 = vunpack.c.h.bf16 %v960
    %v1414 = vunpack.c.l.bf16 %v961
    %v1415 = vunpack.c.h.bf16 %v961
    %v1416 = vunpack.c.l.bf16 %v962
    %v1417 = vunpack.c.h.bf16 %v962
    %v1418 = vunpack.c.l.bf16 %v963
    %v1419 = vunpack.c.h.bf16 %v963
    %v1420 = vunpack.c.l.bf16 %v964
    %v1421 = vunpack.c.h.bf16 %v964
    %v1422 = vunpack.c.l.bf16 %v965
    %v1423 = vunpack.c.h.bf16 %v965
    %v1424 = vunpack.c.l.bf16 %v966
    %v1425 = vunpack.c.h.bf16 %v966
    %v1426 = vunpack.c.l.bf16 %v967
    %v1427 = vunpack.c.h.bf16 %v967
    %v1428 = vunpack.c.l.bf16 %v968
    %v1429 = vunpack.c.h.bf16 %v968
    %v1430 = vunpack.c.l.bf16 %v969
    %v1431 = vunpack.c.h.bf16 %v969
    %v1432 = vunpack.c.l.bf16 %v970
    %v1433 = vunpack.c.h.bf16 %v970
    %v1434 = vunpack.c.l.bf16 %v971
    %v1435 = vunpack.c.h.bf16 %v971
    %v1436 = vunpack.c.l.bf16 %v972
    %v1437 = vunpack.c.h.bf16 %v972
    %v1438 = vunpack.c.l.bf16 %v973
    %v1439 = vunpack.c.h.bf16 %v973
    %v1440 = vunpack.c.l.bf16 %v974
    %v1441 = vunpack.c.h.bf16 %v974
    %v1442 = vunpack.c.l.bf16 %v975
    %v1443 = vunpack.c.h.bf16 %v975
    %v1444 = vunpack.c.l.bf16 %v976
    %v1445 = vunpack.c.h.bf16 %v976
    %v1446 = vunpack.c.l.bf16 %v977
    %v1447 = vunpack.c.h.bf16 %v977
    %v1448 = vunpack.c.l.bf16 %v978
    %v1449 = vunpack.c.h.bf16 %v978
    %v1450 = vunpack.c.l.bf16 %v979
    %v1451 = vunpack.c.h.bf16 %v979
    %v1452 = vunpack.c.l.bf16 %v980
    %v1453 = vunpack.c.h.bf16 %v980
    %v1454 = vunpack.c.l.bf16 %v981
    %v1455 = vunpack.c.h.bf16 %v981
    %v1456 = vunpack.c.l.bf16 %v982
    %v1457 = vunpack.c.h.bf16 %v982
    %v1458 = vunpack.c.l.bf16 %v983
    %v1459 = vunpack.c.h.bf16 %v983
    %v1460 = vunpack.c.l.bf16 %v984
    %v1461 = vunpack.c.h.bf16 %v984
    %v1462 = vunpack.c.l.bf16 %v985
    %v1463 = vunpack.c.h.bf16 %v985
    %v1464 = vunpack.c.l.bf16 %v986
    %v1465 = vunpack.c.h.bf16 %v986
    %v1466 = vunpack.c.l.bf16 %v987
    %v1467 = vunpack.c.h.bf16 %v987
    %v1468 = vunpack.c.l.bf16 %v988
    %v1469 = vunpack.c.h.bf16 %v988
    %v1470 = vunpack.c.l.bf16 %v989
    %v1471 = vunpack.c.h.bf16 %v989
    %v1472 = vunpack.c.l.bf16 %v990
    %v1473 = vunpack.c.h.bf16 %v990
    %v1474 = vunpack.c.l.bf16 %v991
    %v1475 = vunpack.c.h.bf16 %v991
    %v1476 = vunpack.c.l.bf16 %v992
    %v1477 = vunpack.c.h.bf16 %v992
    %v1478 = vunpack.c.l.bf16 %v993
    %v1479 = vunpack.c.h.bf16 %v993
    %v1480 = vunpack.c.l.bf16 %v994
    %v1481 = vunpack.c.h.bf16 %v994
    %v1482 = vunpack.c.l.bf16 %v995
    %v1483 = vunpack.c.h.bf16 %v995
    %v1484 = vunpack.c.l.bf16 %v996
    %v1485 = vunpack.c.h.bf16 %v996
    %v1486 = vunpack.c.l.bf16 %v997
    %v1487 = vunpack.c.h.bf16 %v997
    %v1488 = vunpack.c.l.bf16 %v998
    %v1489 = vunpack.c.h.bf16 %v998
    %v1490 = vunpack.c.l.bf16 %v999
    %v1491 = vunpack.c.h.bf16 %v999
    %v1492 = vunpack.c.l.bf16 %v1000
    %v1493 = vunpack.c.h.bf16 %v1000
    %v1494 = vunpack.c.l.bf16 %v1001
    %v1495 = vunpack.c.h.bf16 %v1001
    %v1496 = vunpack.c.l.bf16 %v1002
    %v1497 = vunpack.c.h.bf16 %v1002
    %v1498 = vunpack.c.l.bf16 %v1003
    %v1499 = vunpack.c.h.bf16 %v1003
    %v1500 = vunpack.c.l.bf16 %v1004
    %v1501 = vunpack.c.h.bf16 %v1004
    %v1502 = vunpack.c.l.bf16 %v1005
    %v1503 = vunpack.c.h.bf16 %v1005
    %v1504 = vunpack.c.l.bf16 %v1006
    %v1505 = vunpack.c.h.bf16 %v1006
    %v1506 = vunpack.c.l.bf16 %v1007
    %v1507 = vunpack.c.h.bf16 %v1007
    %v1508 = vunpack.c.l.bf16 %v1008
    %v1509 = vunpack.c.h.bf16 %v1008
    %v1510 = vunpack.c.l.bf16 %v1009
    %v1511 = vunpack.c.h.bf16 %v1009
    %v1512 = vunpack.c.l.bf16 %v1010
    %v1513 = vunpack.c.h.bf16 %v1010
    %v1514 = vunpack.c.l.bf16 %v1011
    %v1515 = vunpack.c.h.bf16 %v1011
    %v1516 = vunpack.c.l.bf16 %v1012
    %v1517 = vunpack.c.h.bf16 %v1012
    %v1518 = vunpack.c.l.bf16 %v1013
    %v1519 = vunpack.c.h.bf16 %v1013
    %v1520 = vunpack.c.l.bf16 %v1014
    %v1521 = vunpack.c.h.bf16 %v1014
    %v1522 = vunpack.c.l.bf16 %v1015
    %v1523 = vunpack.c.h.bf16 %v1015
    %v1524 = vunpack.c.l.bf16 %v1016
    %v1525 = vunpack.c.h.bf16 %v1016
    %v1526 = vunpack.c.l.bf16 %v1017
    %v1527 = vunpack.c.h.bf16 %v1017
    %v1528 = vunpack.c.l.bf16 %v1018
    %v1529 = vunpack.c.h.bf16 %v1018
    %v1530 = vunpack.c.l.bf16 %v1019
    %v1531 = vunpack.c.h.bf16 %v1019
    %v1532 = vld [vmem:[#allocation13] sm:$0xff]
    %v1534 = vlaneseq
    %v1535 = vshrl.u32 %v1534, 7
    %v1536 = vsub.s32 0, %v1535
    %v1537 = vrot.slane %v1532, %v1536
    %v1538 = vlaneseq
    %v1539 = vshrl.u32 %v1538, 7
    %v1540 = vsub.s32 1, %v1539
    %v1541 = vrot.slane %v1532, %v1540
    %v1542 = vlaneseq
    %v1543 = vshrl.u32 %v1542, 7
    %v1544 = vsub.s32 2, %v1543
    %v1545 = vrot.slane %v1532, %v1544
    %v1546 = vlaneseq
    %v1547 = vshrl.u32 %v1546, 7
    %v1548 = vsub.s32 3, %v1547
    %v1549 = vrot.slane %v1532, %v1548
    %v1550 = vlaneseq
    %v1551 = vshrl.u32 %v1550, 7
    %v1552 = vsub.s32 4, %v1551
    %v1553 = vrot.slane %v1532, %v1552
    %v1554 = vlaneseq
    %v1555 = vshrl.u32 %v1554, 7
    %v1556 = vsub.s32 5, %v1555
    %v1557 = vrot.slane %v1532, %v1556
    %v1558 = vlaneseq
    %v1559 = vshrl.u32 %v1558, 7
    %v1560 = vsub.s32 6, %v1559
    %v1561 = vrot.slane %v1532, %v1560
    %v1562 = vlaneseq
    %v1563 = vshrl.u32 %v1562, 7
    %v1564 = vsub.s32 7, %v1563
    %v1565 = vrot.slane %v1532, %v1564
    %1574 = vmatprep.subr.mxu0 %v1021
    %1575 = vmatpush1.msra.mxu0 %v1020
    %1576 = vmatprep.subr.mxu0 %v1029
    %1577 = vmatpush1.msra.mxu0 %v1028
    %1578 = vmatprep.subr.mxu0 %v1037
    %1579 = vmatpush1.msra.mxu0 %v1036
    %1580 = vmatprep.subr.mxu0 %v1045
    %1581 = vmatpush1.msra.mxu0 %v1044
    %1582 = vmatprep.subr.mxu0 %v1053
    %1583 = vmatpush1.msra.mxu0 %v1052
    %1584 = vmatprep.subr.mxu0 %v1061
    %1585 = vmatpush1.msra.mxu0 %v1060
    %1586 = vmatprep.subr.mxu0 %v1069
    %1587 = vmatpush1.msra.mxu0 %v1068
    %1588 = vmatprep.subr.mxu0 %v1077
    %1589 = vmatpush1.msra.mxu0 %v1076
    %1590 = vmatprep.subr.mxu0 %v1085
    %1591 = vmatpush1.msra.mxu0 %v1084
    %1592 = vmatprep.subr.mxu0 %v1093
    %1593 = vmatpush1.msra.mxu0 %v1092
    %1594 = vmatprep.subr.mxu0 %v1101
    %1595 = vmatpush1.msra.mxu0 %v1100
    %1596 = vmatprep.subr.mxu0 %v1109
    %1597 = vmatpush1.msra.mxu0 %v1108
    %1598 = vmatprep.subr.mxu0 %v1117
    %1599 = vmatpush1.msra.mxu0 %v1116
    %1600 = vmatprep.subr.mxu0 %v1125
    %1601 = vmatpush1.msra.mxu0 %v1124
    %1602 = vmatprep.subr.mxu0 %v1133
    %1603 = vmatpush1.msra.mxu0 %v1132
    %1604 = vmatprep.subr.mxu0 %v1141
    %1605 = vmatpush1.msra.mxu0 %v1140
    %1606 = vmatprep.subr.mxu0 %v1149
    %1607 = vmatpush1.msra.mxu0 %v1148
    %1608 = vmatprep.subr.mxu0 %v1157
    %1609 = vmatpush1.msra.mxu0 %v1156
    %1610 = vmatprep.subr.mxu0 %v1165
    %1611 = vmatpush1.msra.mxu0 %v1164
    %1612 = vmatprep.subr.mxu0 %v1173
    %1613 = vmatpush1.msra.mxu0 %v1172
    %1614 = vmatprep.subr.mxu0 %v1181
    %1615 = vmatpush1.msra.mxu0 %v1180
    %1616 = vmatprep.subr.mxu0 %v1189
    %1617 = vmatpush1.msra.mxu0 %v1188
    %1618 = vmatprep.subr.mxu0 %v1197
    %1619 = vmatpush1.msra.mxu0 %v1196
    %1620 = vmatprep.subr.mxu0 %v1205
    %1621 = vmatpush1.msra.mxu0 %v1204
    %1622 = vmatprep.subr.mxu0 %v1213
    %1623 = vmatpush1.msra.mxu0 %v1212
    %1624 = vmatprep.subr.mxu0 %v1221
    %1625 = vmatpush1.msra.mxu0 %v1220
    %1626 = vmatprep.subr.mxu0 %v1229
    %1627 = vmatpush1.msra.mxu0 %v1228
    %1628 = vmatprep.subr.mxu0 %v1237
    %1629 = vmatpush1.msra.mxu0 %v1236
    %1630 = vmatprep.subr.mxu0 %v1245
    %1631 = vmatpush1.msra.mxu0 %v1244
    %1632 = vmatprep.subr.mxu0 %v1253
    %1633 = vmatpush1.msra.mxu0 %v1252
    %1634 = vmatprep.subr.mxu0 %v1261
    %1635 = vmatpush1.msra.mxu0 %v1260
    %1636 = vmatprep.subr.mxu0 %v1269
    %1637 = vmatpush1.msra.mxu0 %v1268
    %1638 = vmatprep.mubr.f32.mxu0 %v761
    %1639 = vmatmul.mubr.f32.gmra.mrb[0].mxu0 %v760
    %v1640 = vpop.f32.mrb[0].mxu0
    %v1641 = vadd.f32 %v1537, %v1640
    %v1642 = vpop.f32.mrb[0].mxu0
    %v1643 = vadd.f32 %v1541, %v1642
    %1644 = vdwg.mxu0
    %1645 = vmatprep.subr.mxu0 %v1277
    %1646 = vmatpush1.msra.mxu0 %v1276
    %1647 = vmatprep.subr.mxu0 %v1285
    %1648 = vmatpush1.msra.mxu0 %v1284
    %1649 = vmatprep.subr.mxu0 %v1293
    %1650 = vmatpush1.msra.mxu0 %v1292
    %1651 = vmatprep.subr.mxu0 %v1301
    %1652 = vmatpush1.msra.mxu0 %v1300
    %1653 = vmatprep.subr.mxu0 %v1309
    %1654 = vmatpush1.msra.mxu0 %v1308
    %1655 = vmatprep.subr.mxu0 %v1317
    %1656 = vmatpush1.msra.mxu0 %v1316
    %1657 = vmatprep.subr.mxu0 %v1325
    %1658 = vmatpush1.msra.mxu0 %v1324
    %1659 = vmatprep.subr.mxu0 %v1333
    %1660 = vmatpush1.msra.mxu0 %v1332
    %1661 = vmatprep.subr.mxu0 %v1341
    %1662 = vmatpush1.msra.mxu0 %v1340
    %1663 = vmatprep.subr.mxu0 %v1349
    %1664 = vmatpush1.msra.mxu0 %v1348
    %1665 = vmatprep.subr.mxu0 %v1357
    %1666 = vmatpush1.msra.mxu0 %v1356
    %1667 = vmatprep.subr.mxu0 %v1365
    %1668 = vmatpush1.msra.mxu0 %v1364
    %1669 = vmatprep.subr.mxu0 %v1373
    %1670 = vmatpush1.msra.mxu0 %v1372
    %1671 = vmatprep.subr.mxu0 %v1381
    %1672 = vmatpush1.msra.mxu0 %v1380
    %1673 = vmatprep.subr.mxu0 %v1389
    %1674 = vmatpush1.msra.mxu0 %v1388
    %1675 = vmatprep.subr.mxu0 %v1397
    %1676 = vmatpush1.msra.mxu0 %v1396
    %1677 = vmatprep.subr.mxu0 %v1405
    %1678 = vmatpush1.msra.mxu0 %v1404
    %1679 = vmatprep.subr.mxu0 %v1413
    %1680 = vmatpush1.msra.mxu0 %v1412
    %1681 = vmatprep.subr.mxu0 %v1421
    %1682 = vmatpush1.msra.mxu0 %v1420
    %1683 = vmatprep.subr.mxu0 %v1429
    %1684 = vmatpush1.msra.mxu0 %v1428
    %1685 = vmatprep.subr.mxu0 %v1437
    %1686 = vmatpush1.msra.mxu0 %v1436
    %1687 = vmatprep.subr.mxu0 %v1445
    %1688 = vmatpush1.msra.mxu0 %v1444
    %1689 = vmatprep.subr.mxu0 %v1453
    %1690 = vmatpush1.msra.mxu0 %v1452
    %1691 = vmatprep.subr.mxu0 %v1461
    %1692 = vmatpush1.msra.mxu0 %v1460
    %1693 = vmatprep.subr.mxu0 %v1469
    %1694 = vmatpush1.msra.mxu0 %v1468
    %1695 = vmatprep.subr.mxu0 %v1477
    %1696 = vmatpush1.msra.mxu0 %v1476
    %1697 = vmatprep.subr.mxu0 %v1485
    %1698 = vmatpush1.msra.mxu0 %v1484
    %1699 = vmatprep.subr.mxu0 %v1493
    %1700 = vmatpush1.msra.mxu0 %v1492
    %1701 = vmatprep.subr.mxu0 %v1501
    %1702 = vmatpush1.msra.mxu0 %v1500
    %1703 = vmatprep.subr.mxu0 %v1509
    %1704 = vmatpush1.msra.mxu0 %v1508
    %1705 = vmatprep.subr.mxu0 %v1517
    %1706 = vmatpush1.msra.mxu0 %v1516
    %1707 = vmatprep.subr.mxu0 %v1525
    %1708 = vmatpush1.msra.mxu0 %v1524
    %1709 = vmatprep.mubr.f32.mxu0 %v763
    %1710 = vmatmul.mubr.f32.gmra.mrb[0].mxu0 %v762
    %v1711 = vpop.f32.mrb[0].mxu0
    %v1712 = vadd.f32 %v1641, %v1711
    %v1713 = vpop.f32.mrb[0].mxu0
    %v1714 = vadd.f32 %v1643, %v1713
    %1715 = vdwg.mxu0
    %1716 = vmatprep.subr.mxu0 %v1023
    %1717 = vmatpush1.msra.mxu0 %v1022
    %1718 = vmatprep.subr.mxu0 %v1031
    %1719 = vmatpush1.msra.mxu0 %v1030
    %1720 = vmatprep.subr.mxu0 %v1039
    %1721 = vmatpush1.msra.mxu0 %v1038
    %1722 = vmatprep.subr.mxu0 %v1047
    %1723 = vmatpush1.msra.mxu0 %v1046
    %1724 = vmatprep.subr.mxu0 %v1055
    %1725 = vmatpush1.msra.mxu0 %v1054
    %1726 = vmatprep.subr.mxu0 %v1063
    %1727 = vmatpush1.msra.mxu0 %v1062
    %1728 = vmatprep.subr.mxu0 %v1071
    %1729 = vmatpush1.msra.mxu0 %v1070
    %1730 = vmatprep.subr.mxu0 %v1079
    %1731 = vmatpush1.msra.mxu0 %v1078
    %1732 = vmatprep.subr.mxu0 %v1087
    %1733 = vmatpush1.msra.mxu0 %v1086
    %1734 = vmatprep.subr.mxu0 %v1095
    %1735 = vmatpush1.msra.mxu0 %v1094
    %1736 = vmatprep.subr.mxu0 %v1103
    %1737 = vmatpush1.msra.mxu0 %v1102
    %1738 = vmatprep.subr.mxu0 %v1111
    %1739 = vmatpush1.msra.mxu0 %v1110
    %1740 = vmatprep.subr.mxu0 %v1119
    %1741 = vmatpush1.msra.mxu0 %v1118
    %1742 = vmatprep.subr.mxu0 %v1127
    %1743 = vmatpush1.msra.mxu0 %v1126
    %1744 = vmatprep.subr.mxu0 %v1135
    %1745 = vmatpush1.msra.mxu0 %v1134
    %1746 = vmatprep.subr.mxu0 %v1143
    %1747 = vmatpush1.msra.mxu0 %v1142
    %1748 = vmatprep.subr.mxu0 %v1151
    %1749 = vmatpush1.msra.mxu0 %v1150
    %1750 = vmatprep.subr.mxu0 %v1159
    %1751 = vmatpush1.msra.mxu0 %v1158
    %1752 = vmatprep.subr.mxu0 %v1167
    %1753 = vmatpush1.msra.mxu0 %v1166
    %1754 = vmatprep.subr.mxu0 %v1175
    %1755 = vmatpush1.msra.mxu0 %v1174
    %1756 = vmatprep.subr.mxu0 %v1183
    %1757 = vmatpush1.msra.mxu0 %v1182
    %1758 = vmatprep.subr.mxu0 %v1191
    %1759 = vmatpush1.msra.mxu0 %v1190
    %1760 = vmatprep.subr.mxu0 %v1199
    %1761 = vmatpush1.msra.mxu0 %v1198
    %1762 = vmatprep.subr.mxu0 %v1207
    %1763 = vmatpush1.msra.mxu0 %v1206
    %1764 = vmatprep.subr.mxu0 %v1215
    %1765 = vmatpush1.msra.mxu0 %v1214
    %1766 = vmatprep.subr.mxu0 %v1223
    %1767 = vmatpush1.msra.mxu0 %v1222
    %1768 = vmatprep.subr.mxu0 %v1231
    %1769 = vmatpush1.msra.mxu0 %v1230
    %1770 = vmatprep.subr.mxu0 %v1239
    %1771 = vmatpush1.msra.mxu0 %v1238
    %1772 = vmatprep.subr.mxu0 %v1247
    %1773 = vmatpush1.msra.mxu0 %v1246
    %1774 = vmatprep.subr.mxu0 %v1255
    %1775 = vmatpush1.msra.mxu0 %v1254
    %1776 = vmatprep.subr.mxu0 %v1263
    %1777 = vmatpush1.msra.mxu0 %v1262
    %1778 = vmatprep.subr.mxu0 %v1271
    %1779 = vmatpush1.msra.mxu0 %v1270
    %1780 = vmatprep.mubr.f32.mxu0 %v761
    %1781 = vmatmul.mubr.f32.gmra.mrb[0].mxu0 %v760
    %v1782 = vpop.f32.mrb[0].mxu0
    %v1783 = vadd.f32 %v1545, %v1782
    %v1784 = vpop.f32.mrb[0].mxu0
    %v1785 = vadd.f32 %v1549, %v1784
    %1786 = vdwg.mxu0
    %1787 = vmatprep.subr.mxu0 %v1279
    %1788 = vmatpush1.msra.mxu0 %v1278
    %1789 = vmatprep.subr.mxu0 %v1287
    %1790 = vmatpush1.msra.mxu0 %v1286
    %1791 = vmatprep.subr.mxu0 %v1295
    %1792 = vmatpush1.msra.mxu0 %v1294
    %1793 = vmatprep.subr.mxu0 %v1303
    %1794 = vmatpush1.msra.mxu0 %v1302
    %1795 = vmatprep.subr.mxu0 %v1311
    %1796 = vmatpush1.msra.mxu0 %v1310
    %1797 = vmatprep.subr.mxu0 %v1319
    %1798 = vmatpush1.msra.mxu0 %v1318
    %1799 = vmatprep.subr.mxu0 %v1327
    %1800 = vmatpush1.msra.mxu0 %v1326
    %1801 = vmatprep.subr.mxu0 %v1335
    %1802 = vmatpush1.msra.mxu0 %v1334
    %1803 = vmatprep.subr.mxu0 %v1343
    %1804 = vmatpush1.msra.mxu0 %v1342
    %1805 = vmatprep.subr.mxu0 %v1351
    %1806 = vmatpush1.msra.mxu0 %v1350
    %1807 = vmatprep.subr.mxu0 %v1359
    %1808 = vmatpush1.msra.mxu0 %v1358
    %1809 = vmatprep.subr.mxu0 %v1367
    %1810 = vmatpush1.msra.mxu0 %v1366
    %1811 = vmatprep.subr.mxu0 %v1375
    %1812 = vmatpush1.msra.mxu0 %v1374
    %1813 = vmatprep.subr.mxu0 %v1383
    %1814 = vmatpush1.msra.mxu0 %v1382
    %1815 = vmatprep.subr.mxu0 %v1391
    %1816 = vmatpush1.msra.mxu0 %v1390
    %1817 = vmatprep.subr.mxu0 %v1399
    %1818 = vmatpush1.msra.mxu0 %v1398
    %1819 = vmatprep.subr.mxu0 %v1407
    %1820 = vmatpush1.msra.mxu0 %v1406
    %1821 = vmatprep.subr.mxu0 %v1415
    %1822 = vmatpush1.msra.mxu0 %v1414
    %1823 = vmatprep.subr.mxu0 %v1423
    %1824 = vmatpush1.msra.mxu0 %v1422
    %1825 = vmatprep.subr.mxu0 %v1431
    %1826 = vmatpush1.msra.mxu0 %v1430
    %1827 = vmatprep.subr.mxu0 %v1439
    %1828 = vmatpush1.msra.mxu0 %v1438
    %1829 = vmatprep.subr.mxu0 %v1447
    %1830 = vmatpush1.msra.mxu0 %v1446
    %1831 = vmatprep.subr.mxu0 %v1455
    %1832 = vmatpush1.msra.mxu0 %v1454
    %1833 = vmatprep.subr.mxu0 %v1463
    %1834 = vmatpush1.msra.mxu0 %v1462
    %1835 = vmatprep.subr.mxu0 %v1471
    %1836 = vmatpush1.msra.mxu0 %v1470
    %1837 = vmatprep.subr.mxu0 %v1479
    %1838 = vmatpush1.msra.mxu0 %v1478
    %1839 = vmatprep.subr.mxu0 %v1487
    %1840 = vmatpush1.msra.mxu0 %v1486
    %1841 = vmatprep.subr.mxu0 %v1495
    %1842 = vmatpush1.msra.mxu0 %v1494
    %1843 = vmatprep.subr.mxu0 %v1503
    %1844 = vmatpush1.msra.mxu0 %v1502
    %1845 = vmatprep.subr.mxu0 %v1511
    %1846 = vmatpush1.msra.mxu0 %v1510
    %1847 = vmatprep.subr.mxu0 %v1519
    %1848 = vmatpush1.msra.mxu0 %v1518
    %1849 = vmatprep.subr.mxu0 %v1527
    %1850 = vmatpush1.msra.mxu0 %v1526
    %1851 = vmatprep.mubr.f32.mxu0 %v763
    %1852 = vmatmul.mubr.f32.gmra.mrb[0].mxu0 %v762
    %v1853 = vpop.f32.mrb[0].mxu0
    %v1854 = vadd.f32 %v1783, %v1853
    %v1855 = vpop.f32.mrb[0].mxu0
    %v1856 = vadd.f32 %v1785, %v1855
    %1857 = vdwg.mxu0
    %1858 = vmatprep.subr.mxu0 %v1025
    %1859 = vmatpush1.msra.mxu0 %v1024
    %1860 = vmatprep.subr.mxu0 %v1033
    %1861 = vmatpush1.msra.mxu0 %v1032
    %1862 = vmatprep.subr.mxu0 %v1041
    %1863 = vmatpush1.msra.mxu0 %v1040
    %1864 = vmatprep.subr.mxu0 %v1049
    %1865 = vmatpush1.msra.mxu0 %v1048
    %1866 = vmatprep.subr.mxu0 %v1057
    %1867 = vmatpush1.msra.mxu0 %v1056
    %1868 = vmatprep.subr.mxu0 %v1065
    %1869 = vmatpush1.msra.mxu0 %v1064
    %1870 = vmatprep.subr.mxu0 %v1073
    %1871 = vmatpush1.msra.mxu0 %v1072
    %1872 = vmatprep.subr.mxu0 %v1081
    %1873 = vmatpush1.msra.mxu0 %v1080
    %1874 = vmatprep.subr.mxu0 %v1089
    %1875 = vmatpush1.msra.mxu0 %v1088
    %1876 = vmatprep.subr.mxu0 %v1097
    %1877 = vmatpush1.msra.mxu0 %v1096
    %1878 = vmatprep.subr.mxu0 %v1105
    %1879 = vmatpush1.msra.mxu0 %v1104
    %1880 = vmatprep.subr.mxu0 %v1113
    %1881 = vmatpush1.msra.mxu0 %v1112
    %1882 = vmatprep.subr.mxu0 %v1121
    %1883 = vmatpush1.msra.mxu0 %v1120
    %1884 = vmatprep.subr.mxu0 %v1129
    %1885 = vmatpush1.msra.mxu0 %v1128
    %1886 = vmatprep.subr.mxu0 %v1137
    %1887 = vmatpush1.msra.mxu0 %v1136
    %1888 = vmatprep.subr.mxu0 %v1145
    %1889 = vmatpush1.msra.mxu0 %v1144
    %1890 = vmatprep.subr.mxu0 %v1153
    %1891 = vmatpush1.msra.mxu0 %v1152
    %1892 = vmatprep.subr.mxu0 %v1161
    %1893 = vmatpush1.msra.mxu0 %v1160
    %1894 = vmatprep.subr.mxu0 %v1169
    %1895 = vmatpush1.msra.mxu0 %v1168
    %1896 = vmatprep.subr.mxu0 %v1177
    %1897 = vmatpush1.msra.mxu0 %v1176
    %1898 = vmatprep.subr.mxu0 %v1185
    %1899 = vmatpush1.msra.mxu0 %v1184
    %1900 = vmatprep.subr.mxu0 %v1193
    %1901 = vmatpush1.msra.mxu0 %v1192
    %1902 = vmatprep.subr.mxu0 %v1201
    %1903 = vmatpush1.msra.mxu0 %v1200
    %1904 = vmatprep.subr.mxu0 %v1209
    %1905 = vmatpush1.msra.mxu0 %v1208
    %1906 = vmatprep.subr.mxu0 %v1217
    %1907 = vmatpush1.msra.mxu0 %v1216
    %1908 = vmatprep.subr.mxu0 %v1225
    %1909 = vmatpush1.msra.mxu0 %v1224
    %1910 = vmatprep.subr.mxu0 %v1233
    %1911 = vmatpush1.msra.mxu0 %v1232
    %1912 = vmatprep.subr.mxu0 %v1241
    %1913 = vmatpush1.msra.mxu0 %v1240
    %1914 = vmatprep.subr.mxu0 %v1249
    %1915 = vmatpush1.msra.mxu0 %v1248
    %1916 = vmatprep.subr.mxu0 %v1257
    %1917 = vmatpush1.msra.mxu0 %v1256
    %1918 = vmatprep.subr.mxu0 %v1265
    %1919 = vmatpush1.msra.mxu0 %v1264
    %1920 = vmatprep.subr.mxu0 %v1273
    %1921 = vmatpush1.msra.mxu0 %v1272
    %1922 = vmatprep.mubr.f32.mxu0 %v761
    %1923 = vmatmul.mubr.f32.gmra.mrb[0].mxu0 %v760
    %v1924 = vpop.f32.mrb[0].mxu0
    %v1925 = vadd.f32 %v1553, %v1924
    %v1926 = vpop.f32.mrb[0].mxu0
    %v1927 = vadd.f32 %v1557, %v1926
    %1928 = vdwg.mxu0
    %1929 = vmatprep.subr.mxu0 %v1281
    %1930 = vmatpush1.msra.mxu0 %v1280
    %1931 = vmatprep.subr.mxu0 %v1289
    %1932 = vmatpush1.msra.mxu0 %v1288
    %1933 = vmatprep.subr.mxu0 %v1297
    %1934 = vmatpush1.msra.mxu0 %v1296
    %1935 = vmatprep.subr.mxu0 %v1305
    %1936 = vmatpush1.msra.mxu0 %v1304
    %1937 = vmatprep.subr.mxu0 %v1313
    %1938 = vmatpush1.msra.mxu0 %v1312
    %1939 = vmatprep.subr.mxu0 %v1321
    %1940 = vmatpush1.msra.mxu0 %v1320
    %1941 = vmatprep.subr.mxu0 %v1329
    %1942 = vmatpush1.msra.mxu0 %v1328
    %1943 = vmatprep.subr.mxu0 %v1337
    %1944 = vmatpush1.msra.mxu0 %v1336
    %1945 = vmatprep.subr.mxu0 %v1345
    %1946 = vmatpush1.msra.mxu0 %v1344
    %1947 = vmatprep.subr.mxu0 %v1353
    %1948 = vmatpush1.msra.mxu0 %v1352
    %1949 = vmatprep.subr.mxu0 %v1361
    %1950 = vmatpush1.msra.mxu0 %v1360
    %1951 = vmatprep.subr.mxu0 %v1369
    %1952 = vmatpush1.msra.mxu0 %v1368
    %1953 = vmatprep.subr.mxu0 %v1377
    %1954 = vmatpush1.msra.mxu0 %v1376
    %1955 = vmatprep.subr.mxu0 %v1385
    %1956 = vmatpush1.msra.mxu0 %v1384
    %1957 = vmatprep.subr.mxu0 %v1393
    %1958 = vmatpush1.msra.mxu0 %v1392
    %1959 = vmatprep.subr.mxu0 %v1401
    %1960 = vmatpush1.msra.mxu0 %v1400
    %1961 = vmatprep.subr.mxu0 %v1409
    %1962 = vmatpush1.msra.mxu0 %v1408
    %1963 = vmatprep.subr.mxu0 %v1417
    %1964 = vmatpush1.msra.mxu0 %v1416
    %1965 = vmatprep.subr.mxu0 %v1425
    %1966 = vmatpush1.msra.mxu0 %v1424
    %1967 = vmatprep.subr.mxu0 %v1433
    %1968 = vmatpush1.msra.mxu0 %v1432
    %1969 = vmatprep.subr.mxu0 %v1441
    %1970 = vmatpush1.msra.mxu0 %v1440
    %1971 = vmatprep.subr.mxu0 %v1449
    %1972 = vmatpush1.msra.mxu0 %v1448
    %1973 = vmatprep.subr.mxu0 %v1457
    %1974 = vmatpush1.msra.mxu0 %v1456
    %1975 = vmatprep.subr.mxu0 %v1465
    %1976 = vmatpush1.msra.mxu0 %v1464
    %1977 = vmatprep.subr.mxu0 %v1473
    %1978 = vmatpush1.msra.mxu0 %v1472
    %1979 = vmatprep.subr.mxu0 %v1481
    %1980 = vmatpush1.msra.mxu0 %v1480
    %1981 = vmatprep.subr.mxu0 %v1489
    %1982 = vmatpush1.msra.mxu0 %v1488
    %1983 = vmatprep.subr.mxu0 %v1497
    %1984 = vmatpush1.msra.mxu0 %v1496
    %1985 = vmatprep.subr.mxu0 %v1505
    %1986 = vmatpush1.msra.mxu0 %v1504
    %1987 = vmatprep.subr.mxu0 %v1513
    %1988 = vmatpush1.msra.mxu0 %v1512
    %1989 = vmatprep.subr.mxu0 %v1521
    %1990 = vmatpush1.msra.mxu0 %v1520
    %1991 = vmatprep.subr.mxu0 %v1529
    %1992 = vmatpush1.msra.mxu0 %v1528
    %1993 = vmatprep.mubr.f32.mxu0 %v763
    %1994 = vmatmul.mubr.f32.gmra.mrb[0].mxu0 %v762
    %v1995 = vpop.f32.mrb[0].mxu0
    %v1996 = vadd.f32 %v1925, %v1995
    %v1997 = vpop.f32.mrb[0].mxu0
    %v1998 = vadd.f32 %v1927, %v1997
    %1999 = vdwg.mxu0
    %2000 = vmatprep.subr.mxu0 %v1027
    %2001 = vmatpush1.msra.mxu0 %v1026
    %2002 = vmatprep.subr.mxu0 %v1035
    %2003 = vmatpush1.msra.mxu0 %v1034
    %2004 = vmatprep.subr.mxu0 %v1043
    %2005 = vmatpush1.msra.mxu0 %v1042
    %2006 = vmatprep.subr.mxu0 %v1051
    %2007 = vmatpush1.msra.mxu0 %v1050
    %2008 = vmatprep.subr.mxu0 %v1059
    %2009 = vmatpush1.msra.mxu0 %v1058
    %2010 = vmatprep.subr.mxu0 %v1067
    %2011 = vmatpush1.msra.mxu0 %v1066
    %2012 = vmatprep.subr.mxu0 %v1075
    %2013 = vmatpush1.msra.mxu0 %v1074
    %2014 = vmatprep.subr.mxu0 %v1083
    %2015 = vmatpush1.msra.mxu0 %v1082
    %2016 = vmatprep.subr.mxu0 %v1091
    %2017 = vmatpush1.msra.mxu0 %v1090
    %2018 = vmatprep.subr.mxu0 %v1099
    %2019 = vmatpush1.msra.mxu0 %v1098
    %2020 = vmatprep.subr.mxu0 %v1107
    %2021 = vmatpush1.msra.mxu0 %v1106
    %2022 = vmatprep.subr.mxu0 %v1115
    %2023 = vmatpush1.msra.mxu0 %v1114
    %2024 = vmatprep.subr.mxu0 %v1123
    %2025 = vmatpush1.msra.mxu0 %v1122
    %2026 = vmatprep.subr.mxu0 %v1131
    %2027 = vmatpush1.msra.mxu0 %v1130
    %2028 = vmatprep.subr.mxu0 %v1139
    %2029 = vmatpush1.msra.mxu0 %v1138
    %2030 = vmatprep.subr.mxu0 %v1147
    %2031 = vmatpush1.msra.mxu0 %v1146
    %2032 = vmatprep.subr.mxu0 %v1155
    %2033 = vmatpush1.msra.mxu0 %v1154
    %2034 = vmatprep.subr.mxu0 %v1163
    %2035 = vmatpush1.msra.mxu0 %v1162
    %2036 = vmatprep.subr.mxu0 %v1171
    %2037 = vmatpush1.msra.mxu0 %v1170
    %2038 = vmatprep.subr.mxu0 %v1179
    %2039 = vmatpush1.msra.mxu0 %v1178
    %2040 = vmatprep.subr.mxu0 %v1187
    %2041 = vmatpush1.msra.mxu0 %v1186
    %2042 = vmatprep.subr.mxu0 %v1195
    %2043 = vmatpush1.msra.mxu0 %v1194
    %2044 = vmatprep.subr.mxu0 %v1203
    %2045 = vmatpush1.msra.mxu0 %v1202
    %2046 = vmatprep.subr.mxu0 %v1211
    %2047 = vmatpush1.msra.mxu0 %v1210
    %2048 = vmatprep.subr.mxu0 %v1219
    %2049 = vmatpush1.msra.mxu0 %v1218
    %2050 = vmatprep.subr.mxu0 %v1227
    %2051 = vmatpush1.msra.mxu0 %v1226
    %2052 = vmatprep.subr.mxu0 %v1235
    %2053 = vmatpush1.msra.mxu0 %v1234
    %2054 = vmatprep.subr.mxu0 %v1243
    %2055 = vmatpush1.msra.mxu0 %v1242
    %2056 = vmatprep.subr.mxu0 %v1251
    %2057 = vmatpush1.msra.mxu0 %v1250
    %2058 = vmatprep.subr.mxu0 %v1259
    %2059 = vmatpush1.msra.mxu0 %v1258
    %2060 = vmatprep.subr.mxu0 %v1267
    %2061 = vmatpush1.msra.mxu0 %v1266
    %2062 = vmatprep.subr.mxu0 %v1275
    %2063 = vmatpush1.msra.mxu0 %v1274
    %2064 = vmatprep.mubr.f32.mxu0 %v761
    %2065 = vmatmul.mubr.f32.gmra.mrb[0].mxu0 %v760
    %v2066 = vpop.f32.mrb[0].mxu0
    %v2067 = vadd.f32 %v1561, %v2066
    %v2068 = vpop.f32.mrb[0].mxu0
    %v2069 = vadd.f32 %v1565, %v2068
    %2070 = vdwg.mxu0
    %2071 = vmatprep.subr.mxu0 %v1283
    %2072 = vmatpush1.msra.mxu0 %v1282
    %2073 = vmatprep.subr.mxu0 %v1291
    %2074 = vmatpush1.msra.mxu0 %v1290
    %2075 = vmatprep.subr.mxu0 %v1299
    %2076 = vmatpush1.msra.mxu0 %v1298
    %2077 = vmatprep.subr.mxu0 %v1307
    %2078 = vmatpush1.msra.mxu0 %v1306
    %2079 = vmatprep.subr.mxu0 %v1315
    %2080 = vmatpush1.msra.mxu0 %v1314
    %2081 = vmatprep.subr.mxu0 %v1323
    %2082 = vmatpush1.msra.mxu0 %v1322
    %2083 = vmatprep.subr.mxu0 %v1331
    %2084 = vmatpush1.msra.mxu0 %v1330
    %2085 = vmatprep.subr.mxu0 %v1339
    %2086 = vmatpush1.msra.mxu0 %v1338
    %2087 = vmatprep.subr.mxu0 %v1347
    %2088 = vmatpush1.msra.mxu0 %v1346
    %2089 = vmatprep.subr.mxu0 %v1355
    %2090 = vmatpush1.msra.mxu0 %v1354
    %2091 = vmatprep.subr.mxu0 %v1363
    %2092 = vmatpush1.msra.mxu0 %v1362
    %2093 = vmatprep.subr.mxu0 %v1371
    %2094 = vmatpush1.msra.mxu0 %v1370
    %2095 = vmatprep.subr.mxu0 %v1379
    %2096 = vmatpush1.msra.mxu0 %v1378
    %2097 = vmatprep.subr.mxu0 %v1387
    %2098 = vmatpush1.msra.mxu0 %v1386
    %2099 = vmatprep.subr.mxu0 %v1395
    %2100 = vmatpush1.msra.mxu0 %v1394
    %2101 = vmatprep.subr.mxu0 %v1403
    %2102 = vmatpush1.msra.mxu0 %v1402
    %2103 = vmatprep.subr.mxu0 %v1411
    %2104 = vmatpush1.msra.mxu0 %v1410
    %2105 = vmatprep.subr.mxu0 %v1419
    %2106 = vmatpush1.msra.mxu0 %v1418
    %2107 = vmatprep.subr.mxu0 %v1427
    %2108 = vmatpush1.msra.mxu0 %v1426
    %2109 = vmatprep.subr.mxu0 %v1435
    %2110 = vmatpush1.msra.mxu0 %v1434
    %2111 = vmatprep.subr.mxu0 %v1443
    %2112 = vmatpush1.msra.mxu0 %v1442
    %2113 = vmatprep.subr.mxu0 %v1451
    %2114 = vmatpush1.msra.mxu0 %v1450
    %2115 = vmatprep.subr.mxu0 %v1459
    %2116 = vmatpush1.msra.mxu0 %v1458
    %2117 = vmatprep.subr.mxu0 %v1467
    %2118 = vmatpush1.msra.mxu0 %v1466
    %2119 = vmatprep.subr.mxu0 %v1475
    %2120 = vmatpush1.msra.mxu0 %v1474
    %2121 = vmatprep.subr.mxu0 %v1483
    %2122 = vmatpush1.msra.mxu0 %v1482
    %2123 = vmatprep.subr.mxu0 %v1491
    %2124 = vmatpush1.msra.mxu0 %v1490
    %2125 = vmatprep.subr.mxu0 %v1499
    %2126 = vmatpush1.msra.mxu0 %v1498
    %2127 = vmatprep.subr.mxu0 %v1507
    %2128 = vmatpush1.msra.mxu0 %v1506
    %2129 = vmatprep.subr.mxu0 %v1515
    %2130 = vmatpush1.msra.mxu0 %v1514
    %2131 = vmatprep.subr.mxu0 %v1523
    %2132 = vmatpush1.msra.mxu0 %v1522
    %2133 = vmatprep.subr.mxu0 %v1531
    %2134 = vmatpush1.msra.mxu0 %v1530
    %2135 = vmatprep.mubr.f32.mxu0 %v763
    %2136 = vmatmul.mubr.f32.gmra.mrb[0].mxu0 %v762
    %v2137 = vpop.f32.mrb[0].mxu0
    %v2138 = vadd.f32 %v2067, %v2137
    %v2139 = vpop.f32.mrb[0].mxu0
    %v2140 = vadd.f32 %v2069, %v2139
    %2141 = vdwg.mxu0
    %vm2142 = vcmp.gt.f32.partialorder %v1712, 0.0
    %vm2143 = vcmp.gt.f32.partialorder %v1714, 0.0
    %vm2144 = vcmp.gt.f32.partialorder %v1854, 0.0
    %vm2145 = vcmp.gt.f32.partialorder %v1856, 0.0
    %vm2146 = vcmp.gt.f32.partialorder %v1996, 0.0
    %vm2147 = vcmp.gt.f32.partialorder %v1998, 0.0
    %vm2148 = vcmp.gt.f32.partialorder %v2138, 0.0
    %vm2149 = vcmp.gt.f32.partialorder %v2140, 0.0
    %v2150 = vmul.f32 %v1712, 0.2
    %v2151 = vmul.f32 %v1714, 0.2
    %v2152 = vmul.f32 %v1854, 0.2
    %v2153 = vmul.f32 %v1856, 0.2
    %v2154 = vmul.f32 %v1996, 0.2
    %v2155 = vmul.f32 %v1998, 0.2
    %v2156 = vmul.f32 %v2138, 0.2
    %v2157 = vmul.f32 %v2140, 0.2
    %v2158 = vsel %vm2142, %v1712, %v2150
    %v2159 = vsel %vm2143, %v1714, %v2151
    %v2160 = vsel %vm2144, %v1854, %v2152
    %v2161 = vsel %vm2145, %v1856, %v2153
    %v2162 = vsel %vm2146, %v1996, %v2154
    %v2163 = vsel %vm2147, %v1998, %v2155
    %v2164 = vsel %vm2148, %v2138, %v2156
    %v2165 = vsel %vm2149, %v2140, %v2157
    %v2166 = vld [vmem:[#allocation15] sm:$0xff]
    %v2167 = vld [vmem:[#allocation15 + $0x8] sm:$0xff]
    %v2168 = vld [vmem:[#allocation15 + $0x10] sm:$0xff]
    %v2169 = vld [vmem:[#allocation15 + $0x18] sm:$0xf]
    %v2170 = vld [vmem:[#allocation15 + $0x1c] sm:$0xff]
    %v2171 = vld [vmem:[#allocation15 + $0x24] sm:$0xff]
    %v2172 = vld [vmem:[#allocation15 + $0x2c] sm:$0xff]
    %v2173 = vld [vmem:[#allocation15 + $0x34] sm:$0xf]
    %v2174 = vld [vmem:[#allocation15 + $0x38] sm:$0xff]
    %v2175 = vld [vmem:[#allocation15 + $0x40] sm:$0xff]
    %v2176 = vld [vmem:[#allocation15 + $0x48] sm:$0xff]
    %v2177 = vld [vmem:[#allocation15 + $0x50] sm:$0xf]
    %v2178 = vld [vmem:[#allocation15 + $0x54] sm:$0xff]
    %v2179 = vld [vmem:[#allocation15 + $0x5c] sm:$0xff]
    %v2180 = vld [vmem:[#allocation15 + $0x64] sm:$0xff]
    %v2181 = vld [vmem:[#allocation15 + $0x6c] sm:$0xf]
    %v2182 = vld [vmem:[#allocation15 + $0x70] sm:$0xff]
    %v2183 = vld [vmem:[#allocation15 + $0x78] sm:$0xff]
    %v2184 = vld [vmem:[#allocation15 + $0x80] sm:$0xff]
    %v2185 = vld [vmem:[#allocation15 + $0x88] sm:$0xf]
    %v2186 = vld [vmem:[#allocation15 + $0x8c] sm:$0xff]
    %v2187 = vld [vmem:[#allocation15 + $0x94] sm:$0xff]
    %v2188 = vld [vmem:[#allocation15 + $0x9c] sm:$0xff]
    %v2189 = vld [vmem:[#allocation15 + $0xa4] sm:$0xf]
    %v2190 = vld [vmem:[#allocation15 + $0xa8] sm:$0xff]
    %v2191 = vld [vmem:[#allocation15 + $0xb0] sm:$0xff]
    %v2192 = vld [vmem:[#allocation15 + $0xb8] sm:$0xff]
    %v2193 = vld [vmem:[#allocation15 + $0xc0] sm:$0xf]
    %v2194 = vld [vmem:[#allocation15 + $0xc4] sm:$0xff]
    %v2195 = vld [vmem:[#allocation15 + $0xcc] sm:$0xff]
    %v2196 = vld [vmem:[#allocation15 + $0xd4] sm:$0xff]
    %v2197 = vld [vmem:[#allocation15 + $0xdc] sm:$0xf]
    %v2198 = vld [vmem:[#allocation15 + $0xe0] sm:$0xff]
    %v2199 = vld [vmem:[#allocation15 + $0xe8] sm:$0xff]
    %v2200 = vld [vmem:[#allocation15 + $0xf0] sm:$0xff]
    %v2201 = vld [vmem:[#allocation15 + $0xf8] sm:$0xf]
    %v2202 = vld [vmem:[#allocation15 + $0xfc] sm:$0xff]
    %v2203 = vld [vmem:[#allocation15 + $0x104] sm:$0xff]
    %v2204 = vld [vmem:[#allocation15 + $0x10c] sm:$0xff]
    %v2205 = vld [vmem:[#allocation15 + $0x114] sm:$0xf]
    %v2206 = vld [vmem:[#allocation15 + $0x118] sm:$0xff]
    %v2207 = vld [vmem:[#allocation15 + $0x120] sm:$0xff]
    %v2208 = vld [vmem:[#allocation15 + $0x128] sm:$0xff]
    %v2209 = vld [vmem:[#allocation15 + $0x130] sm:$0xf]
    %v2210 = vld [vmem:[#allocation15 + $0x134] sm:$0xff]
    %v2211 = vld [vmem:[#allocation15 + $0x13c] sm:$0xff]
    %v2212 = vld [vmem:[#allocation15 + $0x144] sm:$0xff]
    %v2213 = vld [vmem:[#allocation15 + $0x14c] sm:$0xf]
    %v2214 = vld [vmem:[#allocation15 + $0x150] sm:$0xff]
    %v2215 = vld [vmem:[#allocation15 + $0x158] sm:$0xff]
    %v2216 = vld [vmem:[#allocation15 + $0x160] sm:$0xff]
    %v2217 = vld [vmem:[#allocation15 + $0x168] sm:$0xf]
    %v2218 = vld [vmem:[#allocation15 + $0x16c] sm:$0xff]
    %v2219 = vld [vmem:[#allocation15 + $0x174] sm:$0xff]
    %v2220 = vld [vmem:[#allocation15 + $0x17c] sm:$0xff]
    %v2221 = vld [vmem:[#allocation15 + $0x184] sm:$0xf]
    %v2222 = vld [vmem:[#allocation15 + $0x188] sm:$0xff]
    %v2223 = vld [vmem:[#allocation15 + $0x190] sm:$0xff]
    %v2224 = vld [vmem:[#allocation15 + $0x198] sm:$0xff]
    %v2225 = vld [vmem:[#allocation15 + $0x1a0] sm:$0xf]
    %v2226 = vld [vmem:[#allocation15 + $0x1a4] sm:$0xff]
    %v2227 = vld [vmem:[#allocation15 + $0x1ac] sm:$0xff]
    %v2228 = vld [vmem:[#allocation15 + $0x1b4] sm:$0xff]
    %v2229 = vld [vmem:[#allocation15 + $0x1bc] sm:$0xf]
    %v2230 = vld [vmem:[#allocation15 + $0x1c0] sm:$0xff]
    %v2231 = vld [vmem:[#allocation15 + $0x1c8] sm:$0xff]
    %v2232 = vld [vmem:[#allocation15 + $0x1d0] sm:$0xff]
    %v2233 = vld [vmem:[#allocation15 + $0x1d8] sm:$0xf]
    %v2234 = vld [vmem:[#allocation15 + $0x1dc] sm:$0xff]
    %v2235 = vld [vmem:[#allocation15 + $0x1e4] sm:$0xff]
    %v2236 = vld [vmem:[#allocation15 + $0x1ec] sm:$0xff]
    %v2237 = vld [vmem:[#allocation15 + $0x1f4] sm:$0xf]
    %v2238 = vld [vmem:[#allocation15 + $0x1f8] sm:$0xff]
    %v2239 = vld [vmem:[#allocation15 + $0x200] sm:$0xff]
    %v2240 = vld [vmem:[#allocation15 + $0x208] sm:$0xff]
    %v2241 = vld [vmem:[#allocation15 + $0x210] sm:$0xf]
    %v2242 = vld [vmem:[#allocation15 + $0x214] sm:$0xff]
    %v2243 = vld [vmem:[#allocation15 + $0x21c] sm:$0xff]
    %v2244 = vld [vmem:[#allocation15 + $0x224] sm:$0xff]
    %v2245 = vld [vmem:[#allocation15 + $0x22c] sm:$0xf]
    %v2246 = vld [vmem:[#allocation15 + $0x230] sm:$0xff]
    %v2247 = vld [vmem:[#allocation15 + $0x238] sm:$0xff]
    %v2248 = vld [vmem:[#allocation15 + $0x240] sm:$0xff]
    %v2249 = vld [vmem:[#allocation15 + $0x248] sm:$0xf]
    %v2250 = vld [vmem:[#allocation15 + $0x24c] sm:$0xff]
    %v2251 = vld [vmem:[#allocation15 + $0x254] sm:$0xff]
    %v2252 = vld [vmem:[#allocation15 + $0x25c] sm:$0xff]
    %v2253 = vld [vmem:[#allocation15 + $0x264] sm:$0xf]
    %v2254 = vld [vmem:[#allocation15 + $0x268] sm:$0xff]
    %v2255 = vld [vmem:[#allocation15 + $0x270] sm:$0xff]
    %v2256 = vld [vmem:[#allocation15 + $0x278] sm:$0xff]
    %v2257 = vld [vmem:[#allocation15 + $0x280] sm:$0xf]
    %v2258 = vld [vmem:[#allocation15 + $0x284] sm:$0xff]
    %v2259 = vld [vmem:[#allocation15 + $0x28c] sm:$0xff]
    %v2260 = vld [vmem:[#allocation15 + $0x294] sm:$0xff]
    %v2261 = vld [vmem:[#allocation15 + $0x29c] sm:$0xf]
    %v2262 = vld [vmem:[#allocation15 + $0x2a0] sm:$0xff]
    %v2263 = vld [vmem:[#allocation15 + $0x2a8] sm:$0xff]
    %v2264 = vld [vmem:[#allocation15 + $0x2b0] sm:$0xff]
    %v2265 = vld [vmem:[#allocation15 + $0x2b8] sm:$0xf]
    %v2266 = vld [vmem:[#allocation15 + $0x2bc] sm:$0xff]
    %v2267 = vld [vmem:[#allocation15 + $0x2c4] sm:$0xff]
    %v2268 = vld [vmem:[#allocation15 + $0x2cc] sm:$0xff]
    %v2269 = vld [vmem:[#allocation15 + $0x2d4] sm:$0xf]
    %v2270 = vld [vmem:[#allocation15 + $0x2d8] sm:$0xff]
    %v2271 = vld [vmem:[#allocation15 + $0x2e0] sm:$0xff]
    %v2272 = vld [vmem:[#allocation15 + $0x2e8] sm:$0xff]
    %v2273 = vld [vmem:[#allocation15 + $0x2f0] sm:$0xf]
    %v2274 = vld [vmem:[#allocation15 + $0x2f4] sm:$0xff]
    %v2275 = vld [vmem:[#allocation15 + $0x2fc] sm:$0xff]
    %v2276 = vld [vmem:[#allocation15 + $0x304] sm:$0xff]
    %v2277 = vld [vmem:[#allocation15 + $0x30c] sm:$0xf]
    %v2278 = vld [vmem:[#allocation15 + $0x310] sm:$0xff]
    %v2279 = vld [vmem:[#allocation15 + $0x318] sm:$0xff]
    %v2280 = vld [vmem:[#allocation15 + $0x320] sm:$0xff]
    %v2281 = vld [vmem:[#allocation15 + $0x328] sm:$0xf]
    %v2282 = vld [vmem:[#allocation15 + $0x32c] sm:$0xff]
    %v2283 = vld [vmem:[#allocation15 + $0x334] sm:$0xff]
    %v2284 = vld [vmem:[#allocation15 + $0x33c] sm:$0xff]
    %v2285 = vld [vmem:[#allocation15 + $0x344] sm:$0xf]
    %v2286 = vld [vmem:[#allocation15 + $0x348] sm:$0xff]
    %v2287 = vld [vmem:[#allocation15 + $0x350] sm:$0xff]
    %v2288 = vld [vmem:[#allocation15 + $0x358] sm:$0xff]
    %v2289 = vld [vmem:[#allocation15 + $0x360] sm:$0xf]
    %v2290 = vld [vmem:[#allocation15 + $0x364] sm:$0xff]
    %v2291 = vld [vmem:[#allocation15 + $0x36c] sm:$0xff]
    %v2292 = vld [vmem:[#allocation15 + $0x374] sm:$0xff]
    %v2293 = vld [vmem:[#allocation15 + $0x37c] sm:$0xf]
    %v2294 = vld [vmem:[#allocation15 + $0x380] sm:$0xff]
    %v2295 = vld [vmem:[#allocation15 + $0x388] sm:$0xff]
    %v2296 = vld [vmem:[#allocation15 + $0x390] sm:$0xff]
    %v2297 = vld [vmem:[#allocation15 + $0x398] sm:$0xf]
    %v2298 = vld [vmem:[#allocation15 + $0x39c] sm:$0xff]
    %v2299 = vld [vmem:[#allocation15 + $0x3a4] sm:$0xff]
    %v2300 = vld [vmem:[#allocation15 + $0x3ac] sm:$0xff]
    %v2301 = vld [vmem:[#allocation15 + $0x3b4] sm:$0xf]
    %v2302 = vld [vmem:[#allocation15 + $0x3b8] sm:$0xff]
    %v2303 = vld [vmem:[#allocation15 + $0x3c0] sm:$0xff]
    %v2304 = vld [vmem:[#allocation15 + $0x3c8] sm:$0xff]
    %v2305 = vld [vmem:[#allocation15 + $0x3d0] sm:$0xf]
    %v2306 = vld [vmem:[#allocation15 + $0x3d4] sm:$0xff]
    %v2307 = vld [vmem:[#allocation15 + $0x3dc] sm:$0xff]
    %v2308 = vld [vmem:[#allocation15 + $0x3e4] sm:$0xff]
    %v2309 = vld [vmem:[#allocation15 + $0x3ec] sm:$0xf]
    %v2310 = vld [vmem:[#allocation15 + $0x3f0] sm:$0xff]
    %v2311 = vld [vmem:[#allocation15 + $0x3f8] sm:$0xff]
    %v2312 = vld [vmem:[#allocation15 + $0x400] sm:$0xff]
    %v2313 = vld [vmem:[#allocation15 + $0x408] sm:$0xf]
    %v2314 = vld [vmem:[#allocation15 + $0x40c] sm:$0xff]
    %v2315 = vld [vmem:[#allocation15 + $0x414] sm:$0xff]
    %v2316 = vld [vmem:[#allocation15 + $0x41c] sm:$0xff]
    %v2317 = vld [vmem:[#allocation15 + $0x424] sm:$0xf]
    %v2318 = vld [vmem:[#allocation15 + $0x428] sm:$0xff]
    %v2319 = vld [vmem:[#allocation15 + $0x430] sm:$0xff]
    %v2320 = vld [vmem:[#allocation15 + $0x438] sm:$0xff]
    %v2321 = vld [vmem:[#allocation15 + $0x440] sm:$0xf]
    %v2322 = vld [vmem:[#allocation15 + $0x444] sm:$0xff]
    %v2323 = vld [vmem:[#allocation15 + $0x44c] sm:$0xff]
    %v2324 = vld [vmem:[#allocation15 + $0x454] sm:$0xff]
    %v2325 = vld [vmem:[#allocation15 + $0x45c] sm:$0xf]
    %v2326 = vld [vmem:[#allocation15 + $0x460] sm:$0xff]
    %v2327 = vld [vmem:[#allocation15 + $0x468] sm:$0xff]
    %v2328 = vld [vmem:[#allocation15 + $0x470] sm:$0xff]
    %v2329 = vld [vmem:[#allocation15 + $0x478] sm:$0xf]
    %v2330 = vld [vmem:[#allocation15 + $0x47c] sm:$0xff]
    %v2331 = vld [vmem:[#allocation15 + $0x484] sm:$0xff]
    %v2332 = vld [vmem:[#allocation15 + $0x48c] sm:$0xff]
    %v2333 = vld [vmem:[#allocation15 + $0x494] sm:$0xf]
    %v2334 = vld [vmem:[#allocation15 + $0x498] sm:$0xff]
    %v2335 = vld [vmem:[#allocation15 + $0x4a0] sm:$0xff]
    %v2336 = vld [vmem:[#allocation15 + $0x4a8] sm:$0xff]
    %v2337 = vld [vmem:[#allocation15 + $0x4b0] sm:$0xf]
    %v2338 = vld [vmem:[#allocation15 + $0x4b4] sm:$0xff]
    %v2339 = vld [vmem:[#allocation15 + $0x4bc] sm:$0xff]
    %v2340 = vld [vmem:[#allocation15 + $0x4c4] sm:$0xff]
    %v2341 = vld [vmem:[#allocation15 + $0x4cc] sm:$0xf]
    %v2342 = vld [vmem:[#allocation15 + $0x4d0] sm:$0xff]
    %v2343 = vld [vmem:[#allocation15 + $0x4d8] sm:$0xff]
    %v2344 = vld [vmem:[#allocation15 + $0x4e0] sm:$0xff]
    %v2345 = vld [vmem:[#allocation15 + $0x4e8] sm:$0xf]
    %v2346 = vld [vmem:[#allocation15 + $0x4ec] sm:$0xff]
    %v2347 = vld [vmem:[#allocation15 + $0x4f4] sm:$0xff]
    %v2348 = vld [vmem:[#allocation15 + $0x4fc] sm:$0xff]
    %v2349 = vld [vmem:[#allocation15 + $0x504] sm:$0xf]
    %v2350 = vld [vmem:[#allocation15 + $0x508] sm:$0xff]
    %v2351 = vld [vmem:[#allocation15 + $0x510] sm:$0xff]
    %v2352 = vld [vmem:[#allocation15 + $0x518] sm:$0xff]
    %v2353 = vld [vmem:[#allocation15 + $0x520] sm:$0xf]
    %v2354 = vld [vmem:[#allocation15 + $0x524] sm:$0xff]
    %v2355 = vld [vmem:[#allocation15 + $0x52c] sm:$0xff]
    %v2356 = vld [vmem:[#allocation15 + $0x534] sm:$0xff]
    %v2357 = vld [vmem:[#allocation15 + $0x53c] sm:$0xf]
    %v2358 = vld [vmem:[#allocation15 + $0x540] sm:$0xff]
    %v2359 = vld [vmem:[#allocation15 + $0x548] sm:$0xff]
    %v2360 = vld [vmem:[#allocation15 + $0x550] sm:$0xff]
    %v2361 = vld [vmem:[#allocation15 + $0x558] sm:$0xf]
    %v2362 = vld [vmem:[#allocation15 + $0x55c] sm:$0xff]
    %v2363 = vld [vmem:[#allocation15 + $0x564] sm:$0xff]
    %v2364 = vld [vmem:[#allocation15 + $0x56c] sm:$0xff]
    %v2365 = vld [vmem:[#allocation15 + $0x574] sm:$0xf]
    %v2366 = vld [vmem:[#allocation15 + $0x578] sm:$0xff]
    %v2367 = vld [vmem:[#allocation15 + $0x580] sm:$0xff]
    %v2368 = vld [vmem:[#allocation15 + $0x588] sm:$0xff]
    %v2369 = vld [vmem:[#allocation15 + $0x590] sm:$0xf]
    %v2370 = vld [vmem:[#allocation15 + $0x594] sm:$0xff]
    %v2371 = vld [vmem:[#allocation15 + $0x59c] sm:$0xff]
    %v2372 = vld [vmem:[#allocation15 + $0x5a4] sm:$0xff]
    %v2373 = vld [vmem:[#allocation15 + $0x5ac] sm:$0xf]
    %v2374 = vld [vmem:[#allocation15 + $0x5b0] sm:$0xff]
    %v2375 = vld [vmem:[#allocation15 + $0x5b8] sm:$0xff]
    %v2376 = vld [vmem:[#allocation15 + $0x5c0] sm:$0xff]
    %v2377 = vld [vmem:[#allocation15 + $0x5c8] sm:$0xf]
    %v2378 = vld [vmem:[#allocation15 + $0x5cc] sm:$0xff]
    %v2379 = vld [vmem:[#allocation15 + $0x5d4] sm:$0xff]
    %v2380 = vld [vmem:[#allocation15 + $0x5dc] sm:$0xff]
    %v2381 = vld [vmem:[#allocation15 + $0x5e4] sm:$0xf]
    %v2382 = vld [vmem:[#allocation15 + $0x5e8] sm:$0xff]
    %v2383 = vld [vmem:[#allocation15 + $0x5f0] sm:$0xff]
    %v2384 = vld [vmem:[#allocation15 + $0x5f8] sm:$0xff]
    %v2385 = vld [vmem:[#allocation15 + $0x600] sm:$0xf]
    %v2386 = vld [vmem:[#allocation15 + $0x604] sm:$0xff]
    %v2387 = vld [vmem:[#allocation15 + $0x60c] sm:$0xff]
    %v2388 = vld [vmem:[#allocation15 + $0x614] sm:$0xff]
    %v2389 = vld [vmem:[#allocation15 + $0x61c] sm:$0xf]
    %v2390 = vld [vmem:[#allocation15 + $0x620] sm:$0xff]
    %v2391 = vld [vmem:[#allocation15 + $0x628] sm:$0xff]
    %v2392 = vld [vmem:[#allocation15 + $0x630] sm:$0xff]
    %v2393 = vld [vmem:[#allocation15 + $0x638] sm:$0xf]
    %v2394 = vld [vmem:[#allocation15 + $0x63c] sm:$0xff]
    %v2395 = vld [vmem:[#allocation15 + $0x644] sm:$0xff]
    %v2396 = vld [vmem:[#allocation15 + $0x64c] sm:$0xff]
    %v2397 = vld [vmem:[#allocation15 + $0x654] sm:$0xf]
    %v2398 = vld [vmem:[#allocation15 + $0x658] sm:$0xff]
    %v2399 = vld [vmem:[#allocation15 + $0x660] sm:$0xff]
    %v2400 = vld [vmem:[#allocation15 + $0x668] sm:$0xff]
    %v2401 = vld [vmem:[#allocation15 + $0x670] sm:$0xf]
    %v2402 = vld [vmem:[#allocation15 + $0x674] sm:$0xff]
    %v2403 = vld [vmem:[#allocation15 + $0x67c] sm:$0xff]
    %v2404 = vld [vmem:[#allocation15 + $0x684] sm:$0xff]
    %v2405 = vld [vmem:[#allocation15 + $0x68c] sm:$0xf]
    %v2406 = vld [vmem:[#allocation15 + $0x690] sm:$0xff]
    %v2407 = vld [vmem:[#allocation15 + $0x698] sm:$0xff]
    %v2408 = vld [vmem:[#allocation15 + $0x6a0] sm:$0xff]
    %v2409 = vld [vmem:[#allocation15 + $0x6a8] sm:$0xf]
    %v2410 = vld [vmem:[#allocation15 + $0x6ac] sm:$0xff]
    %v2411 = vld [vmem:[#allocation15 + $0x6b4] sm:$0xff]
    %v2412 = vld [vmem:[#allocation15 + $0x6bc] sm:$0xff]
    %v2413 = vld [vmem:[#allocation15 + $0x6c4] sm:$0xf]
    %v2414 = vld [vmem:[#allocation15 + $0x6c8] sm:$0xff]
    %v2415 = vld [vmem:[#allocation15 + $0x6d0] sm:$0xff]
    %v2416 = vld [vmem:[#allocation15 + $0x6d8] sm:$0xff]
    %v2417 = vld [vmem:[#allocation15 + $0x6e0] sm:$0xf]
    %v2418 = vld [vmem:[#allocation15 + $0x6e4] sm:$0xff]
    %v2419 = vld [vmem:[#allocation15 + $0x6ec] sm:$0xff]
    %v2420 = vld [vmem:[#allocation15 + $0x6f4] sm:$0xff]
    %v2421 = vld [vmem:[#allocation15 + $0x6fc] sm:$0xf]
    %v2422 = vld [vmem:[#allocation15 + $0x700] sm:$0xff]
    %v2423 = vld [vmem:[#allocation15 + $0x708] sm:$0xff]
    %v2424 = vld [vmem:[#allocation15 + $0x710] sm:$0xff]
    %v2425 = vld [vmem:[#allocation15 + $0x718] sm:$0xf]
    %v2426 = vld [vmem:[#allocation15 + $0x71c] sm:$0xff]
    %v2427 = vld [vmem:[#allocation15 + $0x724] sm:$0xff]
    %v2428 = vld [vmem:[#allocation15 + $0x72c] sm:$0xff]
    %v2429 = vld [vmem:[#allocation15 + $0x734] sm:$0xf]
    %v2430 = vld [vmem:[#allocation15 + $0x738] sm:$0xff]
    %v2431 = vld [vmem:[#allocation15 + $0x740] sm:$0xff]
    %v2432 = vld [vmem:[#allocation15 + $0x748] sm:$0xff]
    %v2433 = vld [vmem:[#allocation15 + $0x750] sm:$0xf]
    %v2434 = vld [vmem:[#allocation15 + $0x754] sm:$0xff]
    %v2435 = vld [vmem:[#allocation15 + $0x75c] sm:$0xff]
    %v2436 = vld [vmem:[#allocation15 + $0x764] sm:$0xff]
    %v2437 = vld [vmem:[#allocation15 + $0x76c] sm:$0xf]
    %v2438 = vld [vmem:[#allocation15 + $0x770] sm:$0xff]
    %v2439 = vld [vmem:[#allocation15 + $0x778] sm:$0xff]
    %v2440 = vld [vmem:[#allocation15 + $0x780] sm:$0xff]
    %v2441 = vld [vmem:[#allocation15 + $0x788] sm:$0xf]
    %v2442 = vld [vmem:[#allocation15 + $0x78c] sm:$0xff]
    %v2443 = vld [vmem:[#allocation15 + $0x794] sm:$0xff]
    %v2444 = vld [vmem:[#allocation15 + $0x79c] sm:$0xff]
    %v2445 = vld [vmem:[#allocation15 + $0x7a4] sm:$0xf]
    %v2446 = vld [vmem:[#allocation15 + $0x7a8] sm:$0xff]
    %v2447 = vld [vmem:[#allocation15 + $0x7b0] sm:$0xff]
    %v2448 = vld [vmem:[#allocation15 + $0x7b8] sm:$0xff]
    %v2449 = vld [vmem:[#allocation15 + $0x7c0] sm:$0xf]
    %v2450 = vld [vmem:[#allocation15 + $0x7c4] sm:$0xff]
    %v2451 = vld [vmem:[#allocation15 + $0x7cc] sm:$0xff]
    %v2452 = vld [vmem:[#allocation15 + $0x7d4] sm:$0xff]
    %v2453 = vld [vmem:[#allocation15 + $0x7dc] sm:$0xf]
    %v2454 = vld [vmem:[#allocation15 + $0x7e0] sm:$0xff]
    %v2455 = vld [vmem:[#allocation15 + $0x7e8] sm:$0xff]
    %v2456 = vld [vmem:[#allocation15 + $0x7f0] sm:$0xff]
    %v2457 = vld [vmem:[#allocation15 + $0x7f8] sm:$0xf]
    %v2458 = vld [vmem:[#allocation15 + $0x7fc] sm:$0xff]
    %v2459 = vld [vmem:[#allocation15 + $0x804] sm:$0xff]
    %v2460 = vld [vmem:[#allocation15 + $0x80c] sm:$0xff]
    %v2461 = vld [vmem:[#allocation15 + $0x814] sm:$0xf]
    %v2462 = vld [vmem:[#allocation15 + $0x818] sm:$0xff]
    %v2463 = vld [vmem:[#allocation15 + $0x820] sm:$0xff]
    %v2464 = vld [vmem:[#allocation15 + $0x828] sm:$0xff]
    %v2465 = vld [vmem:[#allocation15 + $0x830] sm:$0xf]
    %v2466 = vld [vmem:[#allocation15 + $0x834] sm:$0xff]
    %v2467 = vld [vmem:[#allocation15 + $0x83c] sm:$0xff]
    %v2468 = vld [vmem:[#allocation15 + $0x844] sm:$0xff]
    %v2469 = vld [vmem:[#allocation15 + $0x84c] sm:$0xf]
    %v2470 = vld [vmem:[#allocation15 + $0x850] sm:$0xff]
    %v2471 = vld [vmem:[#allocation15 + $0x858] sm:$0xff]
    %v2472 = vld [vmem:[#allocation15 + $0x860] sm:$0xff]
    %v2473 = vld [vmem:[#allocation15 + $0x868] sm:$0xf]
    %v2474 = vld [vmem:[#allocation15 + $0x86c] sm:$0xff]
    %v2475 = vld [vmem:[#allocation15 + $0x874] sm:$0xff]
    %v2476 = vld [vmem:[#allocation15 + $0x87c] sm:$0xff]
    %v2477 = vld [vmem:[#allocation15 + $0x884] sm:$0xf]
    %v2478 = vld [vmem:[#allocation15 + $0x888] sm:$0xff]
    %v2479 = vld [vmem:[#allocation15 + $0x890] sm:$0xff]
    %v2480 = vld [vmem:[#allocation15 + $0x898] sm:$0xff]
    %v2481 = vld [vmem:[#allocation15 + $0x8a0] sm:$0xf]
    %v2482 = vld [vmem:[#allocation15 + $0x8a4] sm:$0xff]
    %v2483 = vld [vmem:[#allocation15 + $0x8ac] sm:$0xff]
    %v2484 = vld [vmem:[#allocation15 + $0x8b4] sm:$0xff]
    %v2485 = vld [vmem:[#allocation15 + $0x8bc] sm:$0xf]
    %v2486 = vld [vmem:[#allocation15 + $0x8c0] sm:$0xff]
    %v2487 = vld [vmem:[#allocation15 + $0x8c8] sm:$0xff]
    %v2488 = vld [vmem:[#allocation15 + $0x8d0] sm:$0xff]
    %v2489 = vld [vmem:[#allocation15 + $0x8d8] sm:$0xf]
    %v2490 = vld [vmem:[#allocation15 + $0x8dc] sm:$0xff]
    %v2491 = vld [vmem:[#allocation15 + $0x8e4] sm:$0xff]
    %v2492 = vld [vmem:[#allocation15 + $0x8ec] sm:$0xff]
    %v2493 = vld [vmem:[#allocation15 + $0x8f4] sm:$0xf]
    %v2494 = vld [vmem:[#allocation15 + $0x8f8] sm:$0xff]
    %v2495 = vld [vmem:[#allocation15 + $0x900] sm:$0xff]
    %v2496 = vld [vmem:[#allocation15 + $0x908] sm:$0xff]
    %v2497 = vld [vmem:[#allocation15 + $0x910] sm:$0xf]
    %v2498 = vld [vmem:[#allocation15 + $0x914] sm:$0xff]
    %v2499 = vld [vmem:[#allocation15 + $0x91c] sm:$0xff]
    %v2500 = vld [vmem:[#allocation15 + $0x924] sm:$0xff]
    %v2501 = vld [vmem:[#allocation15 + $0x92c] sm:$0xf]
    %v2502 = vld [vmem:[#allocation15 + $0x930] sm:$0xff]
    %v2503 = vld [vmem:[#allocation15 + $0x938] sm:$0xff]
    %v2504 = vld [vmem:[#allocation15 + $0x940] sm:$0xff]
    %v2505 = vld [vmem:[#allocation15 + $0x948] sm:$0xf]
    %v2506 = vld [vmem:[#allocation15 + $0x94c] sm:$0xff]
    %v2507 = vld [vmem:[#allocation15 + $0x954] sm:$0xff]
    %v2508 = vld [vmem:[#allocation15 + $0x95c] sm:$0xff]
    %v2509 = vld [vmem:[#allocation15 + $0x964] sm:$0xf]
    %v2510 = vld [vmem:[#allocation15 + $0x968] sm:$0xff]
    %v2511 = vld [vmem:[#allocation15 + $0x970] sm:$0xff]
    %v2512 = vld [vmem:[#allocation15 + $0x978] sm:$0xff]
    %v2513 = vld [vmem:[#allocation15 + $0x980] sm:$0xf]
    %v2514 = vld [vmem:[#allocation15 + $0x984] sm:$0xff]
    %v2515 = vld [vmem:[#allocation15 + $0x98c] sm:$0xff]
    %v2516 = vld [vmem:[#allocation15 + $0x994] sm:$0xff]
    %v2517 = vld [vmem:[#allocation15 + $0x99c] sm:$0xf]
    %v2518 = vld [vmem:[#allocation15 + $0x9a0] sm:$0xff]
    %v2519 = vld [vmem:[#allocation15 + $0x9a8] sm:$0xff]
    %v2520 = vld [vmem:[#allocation15 + $0x9b0] sm:$0xff]
    %v2521 = vld [vmem:[#allocation15 + $0x9b8] sm:$0xf]
    %v2522 = vld [vmem:[#allocation15 + $0x9bc] sm:$0xff]
    %v2523 = vld [vmem:[#allocation15 + $0x9c4] sm:$0xff]
    %v2524 = vld [vmem:[#allocation15 + $0x9cc] sm:$0xff]
    %v2525 = vld [vmem:[#allocation15 + $0x9d4] sm:$0xf]
    %v2526 = vld [vmem:[#allocation15 + $0x9d8] sm:$0xff]
    %v2527 = vld [vmem:[#allocation15 + $0x9e0] sm:$0xff]
    %v2528 = vld [vmem:[#allocation15 + $0x9e8] sm:$0xff]
    %v2529 = vld [vmem:[#allocation15 + $0x9f0] sm:$0xf]
    %v2530 = vld [vmem:[#allocation15 + $0x9f4] sm:$0xff]
    %v2531 = vld [vmem:[#allocation15 + $0x9fc] sm:$0xff]
    %v2532 = vld [vmem:[#allocation15 + $0xa04] sm:$0xff]
    %v2533 = vld [vmem:[#allocation15 + $0xa0c] sm:$0xf]
    %v2534 = vld [vmem:[#allocation15 + $0xa10] sm:$0xff]
    %v2535 = vld [vmem:[#allocation15 + $0xa18] sm:$0xff]
    %v2536 = vld [vmem:[#allocation15 + $0xa20] sm:$0xff]
    %v2537 = vld [vmem:[#allocation15 + $0xa28] sm:$0xf]
    %v2538 = vld [vmem:[#allocation15 + $0xa2c] sm:$0xff]
    %v2539 = vld [vmem:[#allocation15 + $0xa34] sm:$0xff]
    %v2540 = vld [vmem:[#allocation15 + $0xa3c] sm:$0xff]
    %v2541 = vld [vmem:[#allocation15 + $0xa44] sm:$0xf]
    %v2542 = vld [vmem:[#allocation15 + $0xa48] sm:$0xff]
    %v2543 = vld [vmem:[#allocation15 + $0xa50] sm:$0xff]
    %v2544 = vld [vmem:[#allocation15 + $0xa58] sm:$0xff]
    %v2545 = vld [vmem:[#allocation15 + $0xa60] sm:$0xf]
    %v2546 = vld [vmem:[#allocation15 + $0xa64] sm:$0xff]
    %v2547 = vld [vmem:[#allocation15 + $0xa6c] sm:$0xff]
    %v2548 = vld [vmem:[#allocation15 + $0xa74] sm:$0xff]
    %v2549 = vld [vmem:[#allocation15 + $0xa7c] sm:$0xf]
    %v2550 = vld [vmem:[#allocation15 + $0xa80] sm:$0xff]
    %v2551 = vld [vmem:[#allocation15 + $0xa88] sm:$0xff]
    %v2552 = vld [vmem:[#allocation15 + $0xa90] sm:$0xff]
    %v2553 = vld [vmem:[#allocation15 + $0xa98] sm:$0xf]
    %v2554 = vld [vmem:[#allocation15 + $0xa9c] sm:$0xff]
    %v2555 = vld [vmem:[#allocation15 + $0xaa4] sm:$0xff]
    %v2556 = vld [vmem:[#allocation15 + $0xaac] sm:$0xff]
    %v2557 = vld [vmem:[#allocation15 + $0xab4] sm:$0xf]
    %v2558 = vld [vmem:[#allocation15 + $0xab8] sm:$0xff]
    %v2559 = vld [vmem:[#allocation15 + $0xac0] sm:$0xff]
    %v2560 = vld [vmem:[#allocation15 + $0xac8] sm:$0xff]
    %v2561 = vld [vmem:[#allocation15 + $0xad0] sm:$0xf]
    %v2562 = vld [vmem:[#allocation15 + $0xad4] sm:$0xff]
    %v2563 = vld [vmem:[#allocation15 + $0xadc] sm:$0xff]
    %v2564 = vld [vmem:[#allocation15 + $0xae4] sm:$0xff]
    %v2565 = vld [vmem:[#allocation15 + $0xaec] sm:$0xf]
    %v2566 = vld [vmem:[#allocation15 + $0xaf0] sm:$0xff]
    %v2567 = vld [vmem:[#allocation15 + $0xaf8] sm:$0xff]
    %v2568 = vld [vmem:[#allocation15 + $0xb00] sm:$0xff]
    %v2569 = vld [vmem:[#allocation15 + $0xb08] sm:$0xf]
    %v2570 = vld [vmem:[#allocation15 + $0xb0c] sm:$0xff]
    %v2571 = vld [vmem:[#allocation15 + $0xb14] sm:$0xff]
    %v2572 = vld [vmem:[#allocation15 + $0xb1c] sm:$0xff]
    %v2573 = vld [vmem:[#allocation15 + $0xb24] sm:$0xf]
    %v2574 = vld [vmem:[#allocation15 + $0xb28] sm:$0xff]
    %v2575 = vld [vmem:[#allocation15 + $0xb30] sm:$0xff]
    %v2576 = vld [vmem:[#allocation15 + $0xb38] sm:$0xff]
    %v2577 = vld [vmem:[#allocation15 + $0xb40] sm:$0xf]
    %v2578 = vld [vmem:[#allocation15 + $0xb44] sm:$0xff]
    %v2579 = vld [vmem:[#allocation15 + $0xb4c] sm:$0xff]
    %v2580 = vld [vmem:[#allocation15 + $0xb54] sm:$0xff]
    %v2581 = vld [vmem:[#allocation15 + $0xb5c] sm:$0xf]
    %v2582 = vld [vmem:[#allocation15 + $0xb60] sm:$0xff]
    %v2583 = vld [vmem:[#allocation15 + $0xb68] sm:$0xff]
    %v2584 = vld [vmem:[#allocation15 + $0xb70] sm:$0xff]
    %v2585 = vld [vmem:[#allocation15 + $0xb78] sm:$0xf]
    %v2586 = vld [vmem:[#allocation15 + $0xb7c] sm:$0xff]
    %v2587 = vld [vmem:[#allocation15 + $0xb84] sm:$0xff]
    %v2588 = vld [vmem:[#allocation15 + $0xb8c] sm:$0xff]
    %v2589 = vld [vmem:[#allocation15 + $0xb94] sm:$0xf]
    %v2590 = vld [vmem:[#allocation15 + $0xb98] sm:$0xff]
    %v2591 = vld [vmem:[#allocation15 + $0xba0] sm:$0xff]
    %v2592 = vld [vmem:[#allocation15 + $0xba8] sm:$0xff]
    %v2593 = vld [vmem:[#allocation15 + $0xbb0] sm:$0xf]
    %v2594 = vld [vmem:[#allocation15 + $0xbb4] sm:$0xff]
    %v2595 = vld [vmem:[#allocation15 + $0xbbc] sm:$0xff]
    %v2596 = vld [vmem:[#allocation15 + $0xbc4] sm:$0xff]
    %v2597 = vld [vmem:[#allocation15 + $0xbcc] sm:$0xf]
    %v2598 = vld [vmem:[#allocation15 + $0xbd0] sm:$0xff]
    %v2599 = vld [vmem:[#allocation15 + $0xbd8] sm:$0xff]
    %v2600 = vld [vmem:[#allocation15 + $0xbe0] sm:$0xff]
    %v2601 = vld [vmem:[#allocation15 + $0xbe8] sm:$0xf]
    %v2602 = vld [vmem:[#allocation15 + $0xbec] sm:$0xff]
    %v2603 = vld [vmem:[#allocation15 + $0xbf4] sm:$0xff]
    %v2604 = vld [vmem:[#allocation15 + $0xbfc] sm:$0xff]
    %v2605 = vld [vmem:[#allocation15 + $0xc04] sm:$0xf]
    %v2606 = vld [vmem:[#allocation15 + $0xc08] sm:$0xff]
    %v2607 = vld [vmem:[#allocation15 + $0xc10] sm:$0xff]
    %v2608 = vld [vmem:[#allocation15 + $0xc18] sm:$0xff]
    %v2609 = vld [vmem:[#allocation15 + $0xc20] sm:$0xf]
    %v2610 = vld [vmem:[#allocation15 + $0xc24] sm:$0xff]
    %v2611 = vld [vmem:[#allocation15 + $0xc2c] sm:$0xff]
    %v2612 = vld [vmem:[#allocation15 + $0xc34] sm:$0xff]
    %v2613 = vld [vmem:[#allocation15 + $0xc3c] sm:$0xf]
    %v2614 = vld [vmem:[#allocation15 + $0xc40] sm:$0xff]
    %v2615 = vld [vmem:[#allocation15 + $0xc48] sm:$0xff]
    %v2616 = vld [vmem:[#allocation15 + $0xc50] sm:$0xff]
    %v2617 = vld [vmem:[#allocation15 + $0xc58] sm:$0xf]
    %v2618 = vld [vmem:[#allocation15 + $0xc5c] sm:$0xff]
    %v2619 = vld [vmem:[#allocation15 + $0xc64] sm:$0xff]
    %v2620 = vld [vmem:[#allocation15 + $0xc6c] sm:$0xff]
    %v2621 = vld [vmem:[#allocation15 + $0xc74] sm:$0xf]
    %v2622 = vld [vmem:[#allocation15 + $0xc78] sm:$0xff]
    %v2623 = vld [vmem:[#allocation15 + $0xc80] sm:$0xff]
    %v2624 = vld [vmem:[#allocation15 + $0xc88] sm:$0xff]
    %v2625 = vld [vmem:[#allocation15 + $0xc90] sm:$0xf]
    %v2626 = vld [vmem:[#allocation15 + $0xc94] sm:$0xff]
    %v2627 = vld [vmem:[#allocation15 + $0xc9c] sm:$0xff]
    %v2628 = vld [vmem:[#allocation15 + $0xca4] sm:$0xff]
    %v2629 = vld [vmem:[#allocation15 + $0xcac] sm:$0xf]
    %v2630 = vld [vmem:[#allocation15 + $0xcb0] sm:$0xff]
    %v2631 = vld [vmem:[#allocation15 + $0xcb8] sm:$0xff]
    %v2632 = vld [vmem:[#allocation15 + $0xcc0] sm:$0xff]
    %v2633 = vld [vmem:[#allocation15 + $0xcc8] sm:$0xf]
    %v2634 = vld [vmem:[#allocation15 + $0xccc] sm:$0xff]
    %v2635 = vld [vmem:[#allocation15 + $0xcd4] sm:$0xff]
    %v2636 = vld [vmem:[#allocation15 + $0xcdc] sm:$0xff]
    %v2637 = vld [vmem:[#allocation15 + $0xce4] sm:$0xf]
    %v2638 = vld [vmem:[#allocation15 + $0xce8] sm:$0xff]
    %v2639 = vld [vmem:[#allocation15 + $0xcf0] sm:$0xff]
    %v2640 = vld [vmem:[#allocation15 + $0xcf8] sm:$0xff]
    %v2641 = vld [vmem:[#allocation15 + $0xd00] sm:$0xf]
    %v2642 = vld [vmem:[#allocation15 + $0xd04] sm:$0xff]
    %v2643 = vld [vmem:[#allocation15 + $0xd0c] sm:$0xff]
    %v2644 = vld [vmem:[#allocation15 + $0xd14] sm:$0xff]
    %v2645 = vld [vmem:[#allocation15 + $0xd1c] sm:$0xf]
    %v2646 = vld [vmem:[#allocation15 + $0xd20] sm:$0xff]
    %v2647 = vld [vmem:[#allocation15 + $0xd28] sm:$0xff]
    %v2648 = vld [vmem:[#allocation15 + $0xd30] sm:$0xff]
    %v2649 = vld [vmem:[#allocation15 + $0xd38] sm:$0xf]
    %v2650 = vld [vmem:[#allocation15 + $0xd3c] sm:$0xff]
    %v2651 = vld [vmem:[#allocation15 + $0xd44] sm:$0xff]
    %v2652 = vld [vmem:[#allocation15 + $0xd4c] sm:$0xff]
    %v2653 = vld [vmem:[#allocation15 + $0xd54] sm:$0xf]
    %v2654 = vld [vmem:[#allocation15 + $0xd58] sm:$0xff]
    %v2655 = vld [vmem:[#allocation15 + $0xd60] sm:$0xff]
    %v2656 = vld [vmem:[#allocation15 + $0xd68] sm:$0xff]
    %v2657 = vld [vmem:[#allocation15 + $0xd70] sm:$0xf]
    %v2658 = vld [vmem:[#allocation15 + $0xd74] sm:$0xff]
    %v2659 = vld [vmem:[#allocation15 + $0xd7c] sm:$0xff]
    %v2660 = vld [vmem:[#allocation15 + $0xd84] sm:$0xff]
    %v2661 = vld [vmem:[#allocation15 + $0xd8c] sm:$0xf]
    %v2662 = vld [vmem:[#allocation15 + $0xd90] sm:$0xff]
    %v2663 = vld [vmem:[#allocation15 + $0xd98] sm:$0xff]
    %v2664 = vld [vmem:[#allocation15 + $0xda0] sm:$0xff]
    %v2665 = vld [vmem:[#allocation15 + $0xda8] sm:$0xf]
    %v2666 = vld [vmem:[#allocation15 + $0xdac] sm:$0xff]
    %v2667 = vld [vmem:[#allocation15 + $0xdb4] sm:$0xff]
    %v2668 = vld [vmem:[#allocation15 + $0xdbc] sm:$0xff]
    %v2669 = vld [vmem:[#allocation15 + $0xdc4] sm:$0xf]
    %v2670 = vld [vmem:[#allocation15 + $0xdc8] sm:$0xff]
    %v2671 = vld [vmem:[#allocation15 + $0xdd0] sm:$0xff]
    %v2672 = vld [vmem:[#allocation15 + $0xdd8] sm:$0xff]
    %v2673 = vld [vmem:[#allocation15 + $0xde0] sm:$0xf]
    %v2674 = vld [vmem:[#allocation15 + $0xde4] sm:$0xff]
    %v2675 = vld [vmem:[#allocation15 + $0xdec] sm:$0xff]
    %v2676 = vld [vmem:[#allocation15 + $0xdf4] sm:$0xff]
    %v2677 = vld [vmem:[#allocation15 + $0xdfc] sm:$0xf]
    %v2678 = vunpack.c.l.bf16 %v2166
    %v2679 = vunpack.c.h.bf16 %v2166
    %v2680 = vunpack.c.l.bf16 %v2167
    %v2681 = vunpack.c.h.bf16 %v2167
    %v2682 = vunpack.c.l.bf16 %v2168
    %v2683 = vunpack.c.h.bf16 %v2168
    %v2684 = vunpack.c.l.bf16 %v2169
    %v2685 = vunpack.c.l.bf16 %v2170
    %v2686 = vunpack.c.h.bf16 %v2170
    %v2687 = vunpack.c.l.bf16 %v2171
    %v2688 = vunpack.c.h.bf16 %v2171
    %v2689 = vunpack.c.l.bf16 %v2172
    %v2690 = vunpack.c.h.bf16 %v2172
    %v2691 = vunpack.c.l.bf16 %v2173
    %v2692 = vunpack.c.l.bf16 %v2174
    %v2693 = vunpack.c.h.bf16 %v2174
    %v2694 = vunpack.c.l.bf16 %v2175
    %v2695 = vunpack.c.h.bf16 %v2175
    %v2696 = vunpack.c.l.bf16 %v2176
    %v2697 = vunpack.c.h.bf16 %v2176
    %v2698 = vunpack.c.l.bf16 %v2177
    %v2699 = vunpack.c.l.bf16 %v2178
    %v2700 = vunpack.c.h.bf16 %v2178
    %v2701 = vunpack.c.l.bf16 %v2179
    %v2702 = vunpack.c.h.bf16 %v2179
    %v2703 = vunpack.c.l.bf16 %v2180
    %v2704 = vunpack.c.h.bf16 %v2180
    %v2705 = vunpack.c.l.bf16 %v2181
    %v2706 = vunpack.c.l.bf16 %v2182
    %v2707 = vunpack.c.h.bf16 %v2182
    %v2708 = vunpack.c.l.bf16 %v2183
    %v2709 = vunpack.c.h.bf16 %v2183
    %v2710 = vunpack.c.l.bf16 %v2184
    %v2711 = vunpack.c.h.bf16 %v2184
    %v2712 = vunpack.c.l.bf16 %v2185
    %v2713 = vunpack.c.l.bf16 %v2186
    %v2714 = vunpack.c.h.bf16 %v2186
    %v2715 = vunpack.c.l.bf16 %v2187
    %v2716 = vunpack.c.h.bf16 %v2187
    %v2717 = vunpack.c.l.bf16 %v2188
    %v2718 = vunpack.c.h.bf16 %v2188
    %v2719 = vunpack.c.l.bf16 %v2189
    %v2720 = vunpack.c.l.bf16 %v2190
    %v2721 = vunpack.c.h.bf16 %v2190
    %v2722 = vunpack.c.l.bf16 %v2191
    %v2723 = vunpack.c.h.bf16 %v2191
    %v2724 = vunpack.c.l.bf16 %v2192
    %v2725 = vunpack.c.h.bf16 %v2192
    %v2726 = vunpack.c.l.bf16 %v2193
    %v2727 = vunpack.c.l.bf16 %v2194
    %v2728 = vunpack.c.h.bf16 %v2194
    %v2729 = vunpack.c.l.bf16 %v2195
    %v2730 = vunpack.c.h.bf16 %v2195
    %v2731 = vunpack.c.l.bf16 %v2196
    %v2732 = vunpack.c.h.bf16 %v2196
    %v2733 = vunpack.c.l.bf16 %v2197
    %v2734 = vunpack.c.l.bf16 %v2198
    %v2735 = vunpack.c.h.bf16 %v2198
    %v2736 = vunpack.c.l.bf16 %v2199
    %v2737 = vunpack.c.h.bf16 %v2199
    %v2738 = vunpack.c.l.bf16 %v2200
    %v2739 = vunpack.c.h.bf16 %v2200
    %v2740 = vunpack.c.l.bf16 %v2201
    %v2741 = vunpack.c.l.bf16 %v2202
    %v2742 = vunpack.c.h.bf16 %v2202
    %v2743 = vunpack.c.l.bf16 %v2203
    %v2744 = vunpack.c.h.bf16 %v2203
    %v2745 = vunpack.c.l.bf16 %v2204
    %v2746 = vunpack.c.h.bf16 %v2204
    %v2747 = vunpack.c.l.bf16 %v2205
    %v2748 = vunpack.c.l.bf16 %v2206
    %v2749 = vunpack.c.h.bf16 %v2206
    %v2750 = vunpack.c.l.bf16 %v2207
    %v2751 = vunpack.c.h.bf16 %v2207
    %v2752 = vunpack.c.l.bf16 %v2208
    %v2753 = vunpack.c.h.bf16 %v2208
    %v2754 = vunpack.c.l.bf16 %v2209
    %v2755 = vunpack.c.l.bf16 %v2210
    %v2756 = vunpack.c.h.bf16 %v2210
    %v2757 = vunpack.c.l.bf16 %v2211
    %v2758 = vunpack.c.h.bf16 %v2211
    %v2759 = vunpack.c.l.bf16 %v2212
    %v2760 = vunpack.c.h.bf16 %v2212
    %v2761 = vunpack.c.l.bf16 %v2213
    %v2762 = vunpack.c.l.bf16 %v2214
    %v2763 = vunpack.c.h.bf16 %v2214
    %v2764 = vunpack.c.l.bf16 %v2215
    %v2765 = vunpack.c.h.bf16 %v2215
    %v2766 = vunpack.c.l.bf16 %v2216
    %v2767 = vunpack.c.h.bf16 %v2216
    %v2768 = vunpack.c.l.bf16 %v2217
    %v2769 = vunpack.c.l.bf16 %v2218
    %v2770 = vunpack.c.h.bf16 %v2218
    %v2771 = vunpack.c.l.bf16 %v2219
    %v2772 = vunpack.c.h.bf16 %v2219
    %v2773 = vunpack.c.l.bf16 %v2220
    %v2774 = vunpack.c.h.bf16 %v2220
    %v2775 = vunpack.c.l.bf16 %v2221
    %v2776 = vunpack.c.l.bf16 %v2222
    %v2777 = vunpack.c.h.bf16 %v2222
    %v2778 = vunpack.c.l.bf16 %v2223
    %v2779 = vunpack.c.h.bf16 %v2223
    %v2780 = vunpack.c.l.bf16 %v2224
    %v2781 = vunpack.c.h.bf16 %v2224
    %v2782 = vunpack.c.l.bf16 %v2225
    %v2783 = vunpack.c.l.bf16 %v2226
    %v2784 = vunpack.c.h.bf16 %v2226
    %v2785 = vunpack.c.l.bf16 %v2227
    %v2786 = vunpack.c.h.bf16 %v2227
    %v2787 = vunpack.c.l.bf16 %v2228
    %v2788 = vunpack.c.h.bf16 %v2228
    %v2789 = vunpack.c.l.bf16 %v2229
    %v2790 = vunpack.c.l.bf16 %v2230
    %v2791 = vunpack.c.h.bf16 %v2230
    %v2792 = vunpack.c.l.bf16 %v2231
    %v2793 = vunpack.c.h.bf16 %v2231
    %v2794 = vunpack.c.l.bf16 %v2232
    %v2795 = vunpack.c.h.bf16 %v2232
    %v2796 = vunpack.c.l.bf16 %v2233
    %v2797 = vunpack.c.l.bf16 %v2234
    %v2798 = vunpack.c.h.bf16 %v2234
    %v2799 = vunpack.c.l.bf16 %v2235
    %v2800 = vunpack.c.h.bf16 %v2235
    %v2801 = vunpack.c.l.bf16 %v2236
    %v2802 = vunpack.c.h.bf16 %v2236
    %v2803 = vunpack.c.l.bf16 %v2237
    %v2804 = vunpack.c.l.bf16 %v2238
    %v2805 = vunpack.c.h.bf16 %v2238
    %v2806 = vunpack.c.l.bf16 %v2239
    %v2807 = vunpack.c.h.bf16 %v2239
    %v2808 = vunpack.c.l.bf16 %v2240
    %v2809 = vunpack.c.h.bf16 %v2240
    %v2810 = vunpack.c.l.bf16 %v2241
    %v2811 = vunpack.c.l.bf16 %v2242
    %v2812 = vunpack.c.h.bf16 %v2242
    %v2813 = vunpack.c.l.bf16 %v2243
    %v2814 = vunpack.c.h.bf16 %v2243
    %v2815 = vunpack.c.l.bf16 %v2244
    %v2816 = vunpack.c.h.bf16 %v2244
    %v2817 = vunpack.c.l.bf16 %v2245
    %v2818 = vunpack.c.l.bf16 %v2246
    %v2819 = vunpack.c.h.bf16 %v2246
    %v2820 = vunpack.c.l.bf16 %v2247
    %v2821 = vunpack.c.h.bf16 %v2247
    %v2822 = vunpack.c.l.bf16 %v2248
    %v2823 = vunpack.c.h.bf16 %v2248
    %v2824 = vunpack.c.l.bf16 %v2249
    %v2825 = vunpack.c.l.bf16 %v2250
    %v2826 = vunpack.c.h.bf16 %v2250
    %v2827 = vunpack.c.l.bf16 %v2251
    %v2828 = vunpack.c.h.bf16 %v2251
    %v2829 = vunpack.c.l.bf16 %v2252
    %v2830 = vunpack.c.h.bf16 %v2252
    %v2831 = vunpack.c.l.bf16 %v2253
    %v2832 = vunpack.c.l.bf16 %v2254
    %v2833 = vunpack.c.h.bf16 %v2254
    %v2834 = vunpack.c.l.bf16 %v2255
    %v2835 = vunpack.c.h.bf16 %v2255
    %v2836 = vunpack.c.l.bf16 %v2256
    %v2837 = vunpack.c.h.bf16 %v2256
    %v2838 = vunpack.c.l.bf16 %v2257
    %v2839 = vunpack.c.l.bf16 %v2258
    %v2840 = vunpack.c.h.bf16 %v2258
    %v2841 = vunpack.c.l.bf16 %v2259
    %v2842 = vunpack.c.h.bf16 %v2259
    %v2843 = vunpack.c.l.bf16 %v2260
    %v2844 = vunpack.c.h.bf16 %v2260
    %v2845 = vunpack.c.l.bf16 %v2261
    %v2846 = vunpack.c.l.bf16 %v2262
    %v2847 = vunpack.c.h.bf16 %v2262
    %v2848 = vunpack.c.l.bf16 %v2263
    %v2849 = vunpack.c.h.bf16 %v2263
    %v2850 = vunpack.c.l.bf16 %v2264
    %v2851 = vunpack.c.h.bf16 %v2264
    %v2852 = vunpack.c.l.bf16 %v2265
    %v2853 = vunpack.c.l.bf16 %v2266
    %v2854 = vunpack.c.h.bf16 %v2266
    %v2855 = vunpack.c.l.bf16 %v2267
    %v2856 = vunpack.c.h.bf16 %v2267
    %v2857 = vunpack.c.l.bf16 %v2268
    %v2858 = vunpack.c.h.bf16 %v2268
    %v2859 = vunpack.c.l.bf16 %v2269
    %v2860 = vunpack.c.l.bf16 %v2270
    %v2861 = vunpack.c.h.bf16 %v2270
    %v2862 = vunpack.c.l.bf16 %v2271
    %v2863 = vunpack.c.h.bf16 %v2271
    %v2864 = vunpack.c.l.bf16 %v2272
    %v2865 = vunpack.c.h.bf16 %v2272
    %v2866 = vunpack.c.l.bf16 %v2273
    %v2867 = vunpack.c.l.bf16 %v2274
    %v2868 = vunpack.c.h.bf16 %v2274
    %v2869 = vunpack.c.l.bf16 %v2275
    %v2870 = vunpack.c.h.bf16 %v2275
    %v2871 = vunpack.c.l.bf16 %v2276
    %v2872 = vunpack.c.h.bf16 %v2276
    %v2873 = vunpack.c.l.bf16 %v2277
    %v2874 = vunpack.c.l.bf16 %v2278
    %v2875 = vunpack.c.h.bf16 %v2278
    %v2876 = vunpack.c.l.bf16 %v2279
    %v2877 = vunpack.c.h.bf16 %v2279
    %v2878 = vunpack.c.l.bf16 %v2280
    %v2879 = vunpack.c.h.bf16 %v2280
    %v2880 = vunpack.c.l.bf16 %v2281
    %v2881 = vunpack.c.l.bf16 %v2282
    %v2882 = vunpack.c.h.bf16 %v2282
    %v2883 = vunpack.c.l.bf16 %v2283
    %v2884 = vunpack.c.h.bf16 %v2283
    %v2885 = vunpack.c.l.bf16 %v2284
    %v2886 = vunpack.c.h.bf16 %v2284
    %v2887 = vunpack.c.l.bf16 %v2285
    %v2888 = vunpack.c.l.bf16 %v2286
    %v2889 = vunpack.c.h.bf16 %v2286
    %v2890 = vunpack.c.l.bf16 %v2287
    %v2891 = vunpack.c.h.bf16 %v2287
    %v2892 = vunpack.c.l.bf16 %v2288
    %v2893 = vunpack.c.h.bf16 %v2288
    %v2894 = vunpack.c.l.bf16 %v2289
    %v2895 = vunpack.c.l.bf16 %v2290
    %v2896 = vunpack.c.h.bf16 %v2290
    %v2897 = vunpack.c.l.bf16 %v2291
    %v2898 = vunpack.c.h.bf16 %v2291
    %v2899 = vunpack.c.l.bf16 %v2292
    %v2900 = vunpack.c.h.bf16 %v2292
    %v2901 = vunpack.c.l.bf16 %v2293
    %v2902 = vunpack.c.l.bf16 %v2294
    %v2903 = vunpack.c.h.bf16 %v2294
    %v2904 = vunpack.c.l.bf16 %v2295
    %v2905 = vunpack.c.h.bf16 %v2295
    %v2906 = vunpack.c.l.bf16 %v2296
    %v2907 = vunpack.c.h.bf16 %v2296
    %v2908 = vunpack.c.l.bf16 %v2297
    %v2909 = vunpack.c.l.bf16 %v2298
    %v2910 = vunpack.c.h.bf16 %v2298
    %v2911 = vunpack.c.l.bf16 %v2299
    %v2912 = vunpack.c.h.bf16 %v2299
    %v2913 = vunpack.c.l.bf16 %v2300
    %v2914 = vunpack.c.h.bf16 %v2300
    %v2915 = vunpack.c.l.bf16 %v2301
    %v2916 = vunpack.c.l.bf16 %v2302
    %v2917 = vunpack.c.h.bf16 %v2302
    %v2918 = vunpack.c.l.bf16 %v2303
    %v2919 = vunpack.c.h.bf16 %v2303
    %v2920 = vunpack.c.l.bf16 %v2304
    %v2921 = vunpack.c.h.bf16 %v2304
    %v2922 = vunpack.c.l.bf16 %v2305
    %v2923 = vunpack.c.l.bf16 %v2306
    %v2924 = vunpack.c.h.bf16 %v2306
    %v2925 = vunpack.c.l.bf16 %v2307
    %v2926 = vunpack.c.h.bf16 %v2307
    %v2927 = vunpack.c.l.bf16 %v2308
    %v2928 = vunpack.c.h.bf16 %v2308
    %v2929 = vunpack.c.l.bf16 %v2309
    %v2930 = vunpack.c.l.bf16 %v2310
    %v2931 = vunpack.c.h.bf16 %v2310
    %v2932 = vunpack.c.l.bf16 %v2311
    %v2933 = vunpack.c.h.bf16 %v2311
    %v2934 = vunpack.c.l.bf16 %v2312
    %v2935 = vunpack.c.h.bf16 %v2312
    %v2936 = vunpack.c.l.bf16 %v2313
    %v2937 = vunpack.c.l.bf16 %v2314
    %v2938 = vunpack.c.h.bf16 %v2314
    %v2939 = vunpack.c.l.bf16 %v2315
    %v2940 = vunpack.c.h.bf16 %v2315
    %v2941 = vunpack.c.l.bf16 %v2316
    %v2942 = vunpack.c.h.bf16 %v2316
    %v2943 = vunpack.c.l.bf16 %v2317
    %v2944 = vunpack.c.l.bf16 %v2318
    %v2945 = vunpack.c.h.bf16 %v2318
    %v2946 = vunpack.c.l.bf16 %v2319
    %v2947 = vunpack.c.h.bf16 %v2319
    %v2948 = vunpack.c.l.bf16 %v2320
    %v2949 = vunpack.c.h.bf16 %v2320
    %v2950 = vunpack.c.l.bf16 %v2321
    %v2951 = vunpack.c.l.bf16 %v2322
    %v2952 = vunpack.c.h.bf16 %v2322
    %v2953 = vunpack.c.l.bf16 %v2323
    %v2954 = vunpack.c.h.bf16 %v2323
    %v2955 = vunpack.c.l.bf16 %v2324
    %v2956 = vunpack.c.h.bf16 %v2324
    %v2957 = vunpack.c.l.bf16 %v2325
    %v2958 = vunpack.c.l.bf16 %v2326
    %v2959 = vunpack.c.h.bf16 %v2326
    %v2960 = vunpack.c.l.bf16 %v2327
    %v2961 = vunpack.c.h.bf16 %v2327
    %v2962 = vunpack.c.l.bf16 %v2328
    %v2963 = vunpack.c.h.bf16 %v2328
    %v2964 = vunpack.c.l.bf16 %v2329
    %v2965 = vunpack.c.l.bf16 %v2330
    %v2966 = vunpack.c.h.bf16 %v2330
    %v2967 = vunpack.c.l.bf16 %v2331
    %v2968 = vunpack.c.h.bf16 %v2331
    %v2969 = vunpack.c.l.bf16 %v2332
    %v2970 = vunpack.c.h.bf16 %v2332
    %v2971 = vunpack.c.l.bf16 %v2333
    %v2972 = vunpack.c.l.bf16 %v2334
    %v2973 = vunpack.c.h.bf16 %v2334
    %v2974 = vunpack.c.l.bf16 %v2335
    %v2975 = vunpack.c.h.bf16 %v2335
    %v2976 = vunpack.c.l.bf16 %v2336
    %v2977 = vunpack.c.h.bf16 %v2336
    %v2978 = vunpack.c.l.bf16 %v2337
    %v2979 = vunpack.c.l.bf16 %v2338
    %v2980 = vunpack.c.h.bf16 %v2338
    %v2981 = vunpack.c.l.bf16 %v2339
    %v2982 = vunpack.c.h.bf16 %v2339
    %v2983 = vunpack.c.l.bf16 %v2340
    %v2984 = vunpack.c.h.bf16 %v2340
    %v2985 = vunpack.c.l.bf16 %v2341
    %v2986 = vunpack.c.l.bf16 %v2342
    %v2987 = vunpack.c.h.bf16 %v2342
    %v2988 = vunpack.c.l.bf16 %v2343
    %v2989 = vunpack.c.h.bf16 %v2343
    %v2990 = vunpack.c.l.bf16 %v2344
    %v2991 = vunpack.c.h.bf16 %v2344
    %v2992 = vunpack.c.l.bf16 %v2345
    %v2993 = vunpack.c.l.bf16 %v2346
    %v2994 = vunpack.c.h.bf16 %v2346
    %v2995 = vunpack.c.l.bf16 %v2347
    %v2996 = vunpack.c.h.bf16 %v2347
    %v2997 = vunpack.c.l.bf16 %v2348
    %v2998 = vunpack.c.h.bf16 %v2348
    %v2999 = vunpack.c.l.bf16 %v2349
    %v3000 = vunpack.c.l.bf16 %v2350
    %v3001 = vunpack.c.h.bf16 %v2350
    %v3002 = vunpack.c.l.bf16 %v2351
    %v3003 = vunpack.c.h.bf16 %v2351
    %v3004 = vunpack.c.l.bf16 %v2352
    %v3005 = vunpack.c.h.bf16 %v2352
    %v3006 = vunpack.c.l.bf16 %v2353
    %v3007 = vunpack.c.l.bf16 %v2354
    %v3008 = vunpack.c.h.bf16 %v2354
    %v3009 = vunpack.c.l.bf16 %v2355
    %v3010 = vunpack.c.h.bf16 %v2355
    %v3011 = vunpack.c.l.bf16 %v2356
    %v3012 = vunpack.c.h.bf16 %v2356
    %v3013 = vunpack.c.l.bf16 %v2357
    %v3014 = vunpack.c.l.bf16 %v2358
    %v3015 = vunpack.c.h.bf16 %v2358
    %v3016 = vunpack.c.l.bf16 %v2359
    %v3017 = vunpack.c.h.bf16 %v2359
    %v3018 = vunpack.c.l.bf16 %v2360
    %v3019 = vunpack.c.h.bf16 %v2360
    %v3020 = vunpack.c.l.bf16 %v2361
    %v3021 = vunpack.c.l.bf16 %v2362
    %v3022 = vunpack.c.h.bf16 %v2362
    %v3023 = vunpack.c.l.bf16 %v2363
    %v3024 = vunpack.c.h.bf16 %v2363
    %v3025 = vunpack.c.l.bf16 %v2364
    %v3026 = vunpack.c.h.bf16 %v2364
    %v3027 = vunpack.c.l.bf16 %v2365
    %v3028 = vunpack.c.l.bf16 %v2366
    %v3029 = vunpack.c.h.bf16 %v2366
    %v3030 = vunpack.c.l.bf16 %v2367
    %v3031 = vunpack.c.h.bf16 %v2367
    %v3032 = vunpack.c.l.bf16 %v2368
    %v3033 = vunpack.c.h.bf16 %v2368
    %v3034 = vunpack.c.l.bf16 %v2369
    %v3035 = vunpack.c.l.bf16 %v2370
    %v3036 = vunpack.c.h.bf16 %v2370
    %v3037 = vunpack.c.l.bf16 %v2371
    %v3038 = vunpack.c.h.bf16 %v2371
    %v3039 = vunpack.c.l.bf16 %v2372
    %v3040 = vunpack.c.h.bf16 %v2372
    %v3041 = vunpack.c.l.bf16 %v2373
    %v3042 = vunpack.c.l.bf16 %v2374
    %v3043 = vunpack.c.h.bf16 %v2374
    %v3044 = vunpack.c.l.bf16 %v2375
    %v3045 = vunpack.c.h.bf16 %v2375
    %v3046 = vunpack.c.l.bf16 %v2376
    %v3047 = vunpack.c.h.bf16 %v2376
    %v3048 = vunpack.c.l.bf16 %v2377
    %v3049 = vunpack.c.l.bf16 %v2378
    %v3050 = vunpack.c.h.bf16 %v2378
    %v3051 = vunpack.c.l.bf16 %v2379
    %v3052 = vunpack.c.h.bf16 %v2379
    %v3053 = vunpack.c.l.bf16 %v2380
    %v3054 = vunpack.c.h.bf16 %v2380
    %v3055 = vunpack.c.l.bf16 %v2381
    %v3056 = vunpack.c.l.bf16 %v2382
    %v3057 = vunpack.c.h.bf16 %v2382
    %v3058 = vunpack.c.l.bf16 %v2383
    %v3059 = vunpack.c.h.bf16 %v2383
    %v3060 = vunpack.c.l.bf16 %v2384
    %v3061 = vunpack.c.h.bf16 %v2384
    %v3062 = vunpack.c.l.bf16 %v2385
    %v3063 = vunpack.c.l.bf16 %v2386
    %v3064 = vunpack.c.h.bf16 %v2386
    %v3065 = vunpack.c.l.bf16 %v2387
    %v3066 = vunpack.c.h.bf16 %v2387
    %v3067 = vunpack.c.l.bf16 %v2388
    %v3068 = vunpack.c.h.bf16 %v2388
    %v3069 = vunpack.c.l.bf16 %v2389
    %v3070 = vunpack.c.l.bf16 %v2390
    %v3071 = vunpack.c.h.bf16 %v2390
    %v3072 = vunpack.c.l.bf16 %v2391
    %v3073 = vunpack.c.h.bf16 %v2391
    %v3074 = vunpack.c.l.bf16 %v2392
    %v3075 = vunpack.c.h.bf16 %v2392
    %v3076 = vunpack.c.l.bf16 %v2393
    %v3077 = vunpack.c.l.bf16 %v2394
    %v3078 = vunpack.c.h.bf16 %v2394
    %v3079 = vunpack.c.l.bf16 %v2395
    %v3080 = vunpack.c.h.bf16 %v2395
    %v3081 = vunpack.c.l.bf16 %v2396
    %v3082 = vunpack.c.h.bf16 %v2396
    %v3083 = vunpack.c.l.bf16 %v2397
    %v3084 = vunpack.c.l.bf16 %v2398
    %v3085 = vunpack.c.h.bf16 %v2398
    %v3086 = vunpack.c.l.bf16 %v2399
    %v3087 = vunpack.c.h.bf16 %v2399
    %v3088 = vunpack.c.l.bf16 %v2400
    %v3089 = vunpack.c.h.bf16 %v2400
    %v3090 = vunpack.c.l.bf16 %v2401
    %v3091 = vunpack.c.l.bf16 %v2402
    %v3092 = vunpack.c.h.bf16 %v2402
    %v3093 = vunpack.c.l.bf16 %v2403
    %v3094 = vunpack.c.h.bf16 %v2403
    %v3095 = vunpack.c.l.bf16 %v2404
    %v3096 = vunpack.c.h.bf16 %v2404
    %v3097 = vunpack.c.l.bf16 %v2405
    %v3098 = vunpack.c.l.bf16 %v2406
    %v3099 = vunpack.c.h.bf16 %v2406
    %v3100 = vunpack.c.l.bf16 %v2407
    %v3101 = vunpack.c.h.bf16 %v2407
    %v3102 = vunpack.c.l.bf16 %v2408
    %v3103 = vunpack.c.h.bf16 %v2408
    %v3104 = vunpack.c.l.bf16 %v2409
    %v3105 = vunpack.c.l.bf16 %v2410
    %v3106 = vunpack.c.h.bf16 %v2410
    %v3107 = vunpack.c.l.bf16 %v2411
    %v3108 = vunpack.c.h.bf16 %v2411
    %v3109 = vunpack.c.l.bf16 %v2412
    %v3110 = vunpack.c.h.bf16 %v2412
    %v3111 = vunpack.c.l.bf16 %v2413
    %v3112 = vunpack.c.l.bf16 %v2414
    %v3113 = vunpack.c.h.bf16 %v2414
    %v3114 = vunpack.c.l.bf16 %v2415
    %v3115 = vunpack.c.h.bf16 %v2415
    %v3116 = vunpack.c.l.bf16 %v2416
    %v3117 = vunpack.c.h.bf16 %v2416
    %v3118 = vunpack.c.l.bf16 %v2417
    %v3119 = vunpack.c.l.bf16 %v2418
    %v3120 = vunpack.c.h.bf16 %v2418
    %v3121 = vunpack.c.l.bf16 %v2419
    %v3122 = vunpack.c.h.bf16 %v2419
    %v3123 = vunpack.c.l.bf16 %v2420
    %v3124 = vunpack.c.h.bf16 %v2420
    %v3125 = vunpack.c.l.bf16 %v2421
    %v3126 = vunpack.c.l.bf16 %v2422
    %v3127 = vunpack.c.h.bf16 %v2422
    %v3128 = vunpack.c.l.bf16 %v2423
    %v3129 = vunpack.c.h.bf16 %v2423
    %v3130 = vunpack.c.l.bf16 %v2424
    %v3131 = vunpack.c.h.bf16 %v2424
    %v3132 = vunpack.c.l.bf16 %v2425
    %v3133 = vunpack.c.l.bf16 %v2426
    %v3134 = vunpack.c.h.bf16 %v2426
    %v3135 = vunpack.c.l.bf16 %v2427
    %v3136 = vunpack.c.h.bf16 %v2427
    %v3137 = vunpack.c.l.bf16 %v2428
    %v3138 = vunpack.c.h.bf16 %v2428
    %v3139 = vunpack.c.l.bf16 %v2429
    %v3140 = vunpack.c.l.bf16 %v2430
    %v3141 = vunpack.c.h.bf16 %v2430
    %v3142 = vunpack.c.l.bf16 %v2431
    %v3143 = vunpack.c.h.bf16 %v2431
    %v3144 = vunpack.c.l.bf16 %v2432
    %v3145 = vunpack.c.h.bf16 %v2432
    %v3146 = vunpack.c.l.bf16 %v2433
    %v3147 = vunpack.c.l.bf16 %v2434
    %v3148 = vunpack.c.h.bf16 %v2434
    %v3149 = vunpack.c.l.bf16 %v2435
    %v3150 = vunpack.c.h.bf16 %v2435
    %v3151 = vunpack.c.l.bf16 %v2436
    %v3152 = vunpack.c.h.bf16 %v2436
    %v3153 = vunpack.c.l.bf16 %v2437
    %v3154 = vunpack.c.l.bf16 %v2438
    %v3155 = vunpack.c.h.bf16 %v2438
    %v3156 = vunpack.c.l.bf16 %v2439
    %v3157 = vunpack.c.h.bf16 %v2439
    %v3158 = vunpack.c.l.bf16 %v2440
    %v3159 = vunpack.c.h.bf16 %v2440
    %v3160 = vunpack.c.l.bf16 %v2441
    %v3161 = vunpack.c.l.bf16 %v2442
    %v3162 = vunpack.c.h.bf16 %v2442
    %v3163 = vunpack.c.l.bf16 %v2443
    %v3164 = vunpack.c.h.bf16 %v2443
    %v3165 = vunpack.c.l.bf16 %v2444
    %v3166 = vunpack.c.h.bf16 %v2444
    %v3167 = vunpack.c.l.bf16 %v2445
    %v3168 = vunpack.c.l.bf16 %v2446
    %v3169 = vunpack.c.h.bf16 %v2446
    %v3170 = vunpack.c.l.bf16 %v2447
    %v3171 = vunpack.c.h.bf16 %v2447
    %v3172 = vunpack.c.l.bf16 %v2448
    %v3173 = vunpack.c.h.bf16 %v2448
    %v3174 = vunpack.c.l.bf16 %v2449
    %v3175 = vunpack.c.l.bf16 %v2450
    %v3176 = vunpack.c.h.bf16 %v2450
    %v3177 = vunpack.c.l.bf16 %v2451
    %v3178 = vunpack.c.h.bf16 %v2451
    %v3179 = vunpack.c.l.bf16 %v2452
    %v3180 = vunpack.c.h.bf16 %v2452
    %v3181 = vunpack.c.l.bf16 %v2453
    %v3182 = vunpack.c.l.bf16 %v2454
    %v3183 = vunpack.c.h.bf16 %v2454
    %v3184 = vunpack.c.l.bf16 %v2455
    %v3185 = vunpack.c.h.bf16 %v2455
    %v3186 = vunpack.c.l.bf16 %v2456
    %v3187 = vunpack.c.h.bf16 %v2456
    %v3188 = vunpack.c.l.bf16 %v2457
    %v3189 = vunpack.c.l.bf16 %v2458
    %v3190 = vunpack.c.h.bf16 %v2458
    %v3191 = vunpack.c.l.bf16 %v2459
    %v3192 = vunpack.c.h.bf16 %v2459
    %v3193 = vunpack.c.l.bf16 %v2460
    %v3194 = vunpack.c.h.bf16 %v2460
    %v3195 = vunpack.c.l.bf16 %v2461
    %v3196 = vunpack.c.l.bf16 %v2462
    %v3197 = vunpack.c.h.bf16 %v2462
    %v3198 = vunpack.c.l.bf16 %v2463
    %v3199 = vunpack.c.h.bf16 %v2463
    %v3200 = vunpack.c.l.bf16 %v2464
    %v3201 = vunpack.c.h.bf16 %v2464
    %v3202 = vunpack.c.l.bf16 %v2465
    %v3203 = vunpack.c.l.bf16 %v2466
    %v3204 = vunpack.c.h.bf16 %v2466
    %v3205 = vunpack.c.l.bf16 %v2467
    %v3206 = vunpack.c.h.bf16 %v2467
    %v3207 = vunpack.c.l.bf16 %v2468
    %v3208 = vunpack.c.h.bf16 %v2468
    %v3209 = vunpack.c.l.bf16 %v2469
    %v3210 = vunpack.c.l.bf16 %v2470
    %v3211 = vunpack.c.h.bf16 %v2470
    %v3212 = vunpack.c.l.bf16 %v2471
    %v3213 = vunpack.c.h.bf16 %v2471
    %v3214 = vunpack.c.l.bf16 %v2472
    %v3215 = vunpack.c.h.bf16 %v2472
    %v3216 = vunpack.c.l.bf16 %v2473
    %v3217 = vunpack.c.l.bf16 %v2474
    %v3218 = vunpack.c.h.bf16 %v2474
    %v3219 = vunpack.c.l.bf16 %v2475
    %v3220 = vunpack.c.h.bf16 %v2475
    %v3221 = vunpack.c.l.bf16 %v2476
    %v3222 = vunpack.c.h.bf16 %v2476
    %v3223 = vunpack.c.l.bf16 %v2477
    %v3224 = vunpack.c.l.bf16 %v2478
    %v3225 = vunpack.c.h.bf16 %v2478
    %v3226 = vunpack.c.l.bf16 %v2479
    %v3227 = vunpack.c.h.bf16 %v2479
    %v3228 = vunpack.c.l.bf16 %v2480
    %v3229 = vunpack.c.h.bf16 %v2480
    %v3230 = vunpack.c.l.bf16 %v2481
    %v3231 = vunpack.c.l.bf16 %v2482
    %v3232 = vunpack.c.h.bf16 %v2482
    %v3233 = vunpack.c.l.bf16 %v2483
    %v3234 = vunpack.c.h.bf16 %v2483
    %v3235 = vunpack.c.l.bf16 %v2484
    %v3236 = vunpack.c.h.bf16 %v2484
    %v3237 = vunpack.c.l.bf16 %v2485
    %v3238 = vunpack.c.l.bf16 %v2486
    %v3239 = vunpack.c.h.bf16 %v2486
    %v3240 = vunpack.c.l.bf16 %v2487
    %v3241 = vunpack.c.h.bf16 %v2487
    %v3242 = vunpack.c.l.bf16 %v2488
    %v3243 = vunpack.c.h.bf16 %v2488
    %v3244 = vunpack.c.l.bf16 %v2489
    %v3245 = vunpack.c.l.bf16 %v2490
    %v3246 = vunpack.c.h.bf16 %v2490
    %v3247 = vunpack.c.l.bf16 %v2491
    %v3248 = vunpack.c.h.bf16 %v2491
    %v3249 = vunpack.c.l.bf16 %v2492
    %v3250 = vunpack.c.h.bf16 %v2492
    %v3251 = vunpack.c.l.bf16 %v2493
    %v3252 = vunpack.c.l.bf16 %v2494
    %v3253 = vunpack.c.h.bf16 %v2494
    %v3254 = vunpack.c.l.bf16 %v2495
    %v3255 = vunpack.c.h.bf16 %v2495
    %v3256 = vunpack.c.l.bf16 %v2496
    %v3257 = vunpack.c.h.bf16 %v2496
    %v3258 = vunpack.c.l.bf16 %v2497
    %v3259 = vunpack.c.l.bf16 %v2498
    %v3260 = vunpack.c.h.bf16 %v2498
    %v3261 = vunpack.c.l.bf16 %v2499
    %v3262 = vunpack.c.h.bf16 %v2499
    %v3263 = vunpack.c.l.bf16 %v2500
    %v3264 = vunpack.c.h.bf16 %v2500
    %v3265 = vunpack.c.l.bf16 %v2501
    %v3266 = vunpack.c.l.bf16 %v2502
    %v3267 = vunpack.c.h.bf16 %v2502
    %v3268 = vunpack.c.l.bf16 %v2503
    %v3269 = vunpack.c.h.bf16 %v2503
    %v3270 = vunpack.c.l.bf16 %v2504
    %v3271 = vunpack.c.h.bf16 %v2504
    %v3272 = vunpack.c.l.bf16 %v2505
    %v3273 = vunpack.c.l.bf16 %v2506
    %v3274 = vunpack.c.h.bf16 %v2506
    %v3275 = vunpack.c.l.bf16 %v2507
    %v3276 = vunpack.c.h.bf16 %v2507
    %v3277 = vunpack.c.l.bf16 %v2508
    %v3278 = vunpack.c.h.bf16 %v2508
    %v3279 = vunpack.c.l.bf16 %v2509
    %v3280 = vunpack.c.l.bf16 %v2510
    %v3281 = vunpack.c.h.bf16 %v2510
    %v3282 = vunpack.c.l.bf16 %v2511
    %v3283 = vunpack.c.h.bf16 %v2511
    %v3284 = vunpack.c.l.bf16 %v2512
    %v3285 = vunpack.c.h.bf16 %v2512
    %v3286 = vunpack.c.l.bf16 %v2513
    %v3287 = vunpack.c.l.bf16 %v2514
    %v3288 = vunpack.c.h.bf16 %v2514
    %v3289 = vunpack.c.l.bf16 %v2515
    %v3290 = vunpack.c.h.bf16 %v2515
    %v3291 = vunpack.c.l.bf16 %v2516
    %v3292 = vunpack.c.h.bf16 %v2516
    %v3293 = vunpack.c.l.bf16 %v2517
    %v3294 = vunpack.c.l.bf16 %v2518
    %v3295 = vunpack.c.h.bf16 %v2518
    %v3296 = vunpack.c.l.bf16 %v2519
    %v3297 = vunpack.c.h.bf16 %v2519
    %v3298 = vunpack.c.l.bf16 %v2520
    %v3299 = vunpack.c.h.bf16 %v2520
    %v3300 = vunpack.c.l.bf16 %v2521
    %v3301 = vunpack.c.l.bf16 %v2522
    %v3302 = vunpack.c.h.bf16 %v2522
    %v3303 = vunpack.c.l.bf16 %v2523
    %v3304 = vunpack.c.h.bf16 %v2523
    %v3305 = vunpack.c.l.bf16 %v2524
    %v3306 = vunpack.c.h.bf16 %v2524
    %v3307 = vunpack.c.l.bf16 %v2525
    %v3308 = vunpack.c.l.bf16 %v2526
    %v3309 = vunpack.c.h.bf16 %v2526
    %v3310 = vunpack.c.l.bf16 %v2527
    %v3311 = vunpack.c.h.bf16 %v2527
    %v3312 = vunpack.c.l.bf16 %v2528
    %v3313 = vunpack.c.h.bf16 %v2528
    %v3314 = vunpack.c.l.bf16 %v2529
    %v3315 = vunpack.c.l.bf16 %v2530
    %v3316 = vunpack.c.h.bf16 %v2530
    %v3317 = vunpack.c.l.bf16 %v2531
    %v3318 = vunpack.c.h.bf16 %v2531
    %v3319 = vunpack.c.l.bf16 %v2532
    %v3320 = vunpack.c.h.bf16 %v2532
    %v3321 = vunpack.c.l.bf16 %v2533
    %v3322 = vunpack.c.l.bf16 %v2534
    %v3323 = vunpack.c.h.bf16 %v2534
    %v3324 = vunpack.c.l.bf16 %v2535
    %v3325 = vunpack.c.h.bf16 %v2535
    %v3326 = vunpack.c.l.bf16 %v2536
    %v3327 = vunpack.c.h.bf16 %v2536
    %v3328 = vunpack.c.l.bf16 %v2537
    %v3329 = vunpack.c.l.bf16 %v2538
    %v3330 = vunpack.c.h.bf16 %v2538
    %v3331 = vunpack.c.l.bf16 %v2539
    %v3332 = vunpack.c.h.bf16 %v2539
    %v3333 = vunpack.c.l.bf16 %v2540
    %v3334 = vunpack.c.h.bf16 %v2540
    %v3335 = vunpack.c.l.bf16 %v2541
    %v3336 = vunpack.c.l.bf16 %v2542
    %v3337 = vunpack.c.h.bf16 %v2542
    %v3338 = vunpack.c.l.bf16 %v2543
    %v3339 = vunpack.c.h.bf16 %v2543
    %v3340 = vunpack.c.l.bf16 %v2544
    %v3341 = vunpack.c.h.bf16 %v2544
    %v3342 = vunpack.c.l.bf16 %v2545
    %v3343 = vunpack.c.l.bf16 %v2546
    %v3344 = vunpack.c.h.bf16 %v2546
    %v3345 = vunpack.c.l.bf16 %v2547
    %v3346 = vunpack.c.h.bf16 %v2547
    %v3347 = vunpack.c.l.bf16 %v2548
    %v3348 = vunpack.c.h.bf16 %v2548
    %v3349 = vunpack.c.l.bf16 %v2549
    %v3350 = vunpack.c.l.bf16 %v2550
    %v3351 = vunpack.c.h.bf16 %v2550
    %v3352 = vunpack.c.l.bf16 %v2551
    %v3353 = vunpack.c.h.bf16 %v2551
    %v3354 = vunpack.c.l.bf16 %v2552
    %v3355 = vunpack.c.h.bf16 %v2552
    %v3356 = vunpack.c.l.bf16 %v2553
    %v3357 = vunpack.c.l.bf16 %v2554
    %v3358 = vunpack.c.h.bf16 %v2554
    %v3359 = vunpack.c.l.bf16 %v2555
    %v3360 = vunpack.c.h.bf16 %v2555
    %v3361 = vunpack.c.l.bf16 %v2556
    %v3362 = vunpack.c.h.bf16 %v2556
    %v3363 = vunpack.c.l.bf16 %v2557
    %v3364 = vunpack.c.l.bf16 %v2558
    %v3365 = vunpack.c.h.bf16 %v2558
    %v3366 = vunpack.c.l.bf16 %v2559
    %v3367 = vunpack.c.h.bf16 %v2559
    %v3368 = vunpack.c.l.bf16 %v2560
    %v3369 = vunpack.c.h.bf16 %v2560
    %v3370 = vunpack.c.l.bf16 %v2561
    %v3371 = vunpack.c.l.bf16 %v2562
    %v3372 = vunpack.c.h.bf16 %v2562
    %v3373 = vunpack.c.l.bf16 %v2563
    %v3374 = vunpack.c.h.bf16 %v2563
    %v3375 = vunpack.c.l.bf16 %v2564
    %v3376 = vunpack.c.h.bf16 %v2564
    %v3377 = vunpack.c.l.bf16 %v2565
    %v3378 = vunpack.c.l.bf16 %v2566
    %v3379 = vunpack.c.h.bf16 %v2566
    %v3380 = vunpack.c.l.bf16 %v2567
    %v3381 = vunpack.c.h.bf16 %v2567
    %v3382 = vunpack.c.l.bf16 %v2568
    %v3383 = vunpack.c.h.bf16 %v2568
    %v3384 = vunpack.c.l.bf16 %v2569
    %v3385 = vunpack.c.l.bf16 %v2570
    %v3386 = vunpack.c.h.bf16 %v2570
    %v3387 = vunpack.c.l.bf16 %v2571
    %v3388 = vunpack.c.h.bf16 %v2571
    %v3389 = vunpack.c.l.bf16 %v2572
    %v3390 = vunpack.c.h.bf16 %v2572
    %v3391 = vunpack.c.l.bf16 %v2573
    %v3392 = vunpack.c.l.bf16 %v2574
    %v3393 = vunpack.c.h.bf16 %v2574
    %v3394 = vunpack.c.l.bf16 %v2575
    %v3395 = vunpack.c.h.bf16 %v2575
    %v3396 = vunpack.c.l.bf16 %v2576
    %v3397 = vunpack.c.h.bf16 %v2576
    %v3398 = vunpack.c.l.bf16 %v2577
    %v3399 = vunpack.c.l.bf16 %v2578
    %v3400 = vunpack.c.h.bf16 %v2578
    %v3401 = vunpack.c.l.bf16 %v2579
    %v3402 = vunpack.c.h.bf16 %v2579
    %v3403 = vunpack.c.l.bf16 %v2580
    %v3404 = vunpack.c.h.bf16 %v2580
    %v3405 = vunpack.c.l.bf16 %v2581
    %v3406 = vunpack.c.l.bf16 %v2582
    %v3407 = vunpack.c.h.bf16 %v2582
    %v3408 = vunpack.c.l.bf16 %v2583
    %v3409 = vunpack.c.h.bf16 %v2583
    %v3410 = vunpack.c.l.bf16 %v2584
    %v3411 = vunpack.c.h.bf16 %v2584
    %v3412 = vunpack.c.l.bf16 %v2585
    %v3413 = vunpack.c.l.bf16 %v2586
    %v3414 = vunpack.c.h.bf16 %v2586
    %v3415 = vunpack.c.l.bf16 %v2587
    %v3416 = vunpack.c.h.bf16 %v2587
    %v3417 = vunpack.c.l.bf16 %v2588
    %v3418 = vunpack.c.h.bf16 %v2588
    %v3419 = vunpack.c.l.bf16 %v2589
    %v3420 = vunpack.c.l.bf16 %v2590
    %v3421 = vunpack.c.h.bf16 %v2590
    %v3422 = vunpack.c.l.bf16 %v2591
    %v3423 = vunpack.c.h.bf16 %v2591
    %v3424 = vunpack.c.l.bf16 %v2592
    %v3425 = vunpack.c.h.bf16 %v2592
    %v3426 = vunpack.c.l.bf16 %v2593
    %v3427 = vunpack.c.l.bf16 %v2594
    %v3428 = vunpack.c.h.bf16 %v2594
    %v3429 = vunpack.c.l.bf16 %v2595
    %v3430 = vunpack.c.h.bf16 %v2595
    %v3431 = vunpack.c.l.bf16 %v2596
    %v3432 = vunpack.c.h.bf16 %v2596
    %v3433 = vunpack.c.l.bf16 %v2597
    %v3434 = vunpack.c.l.bf16 %v2598
    %v3435 = vunpack.c.h.bf16 %v2598
    %v3436 = vunpack.c.l.bf16 %v2599
    %v3437 = vunpack.c.h.bf16 %v2599
    %v3438 = vunpack.c.l.bf16 %v2600
    %v3439 = vunpack.c.h.bf16 %v2600
    %v3440 = vunpack.c.l.bf16 %v2601
    %v3441 = vunpack.c.l.bf16 %v2602
    %v3442 = vunpack.c.h.bf16 %v2602
    %v3443 = vunpack.c.l.bf16 %v2603
    %v3444 = vunpack.c.h.bf16 %v2603
    %v3445 = vunpack.c.l.bf16 %v2604
    %v3446 = vunpack.c.h.bf16 %v2604
    %v3447 = vunpack.c.l.bf16 %v2605
    %v3448 = vunpack.c.l.bf16 %v2606
    %v3449 = vunpack.c.h.bf16 %v2606
    %v3450 = vunpack.c.l.bf16 %v2607
    %v3451 = vunpack.c.h.bf16 %v2607
    %v3452 = vunpack.c.l.bf16 %v2608
    %v3453 = vunpack.c.h.bf16 %v2608
    %v3454 = vunpack.c.l.bf16 %v2609
    %v3455 = vunpack.c.l.bf16 %v2610
    %v3456 = vunpack.c.h.bf16 %v2610
    %v3457 = vunpack.c.l.bf16 %v2611
    %v3458 = vunpack.c.h.bf16 %v2611
    %v3459 = vunpack.c.l.bf16 %v2612
    %v3460 = vunpack.c.h.bf16 %v2612
    %v3461 = vunpack.c.l.bf16 %v2613
    %v3462 = vunpack.c.l.bf16 %v2614
    %v3463 = vunpack.c.h.bf16 %v2614
    %v3464 = vunpack.c.l.bf16 %v2615
    %v3465 = vunpack.c.h.bf16 %v2615
    %v3466 = vunpack.c.l.bf16 %v2616
    %v3467 = vunpack.c.h.bf16 %v2616
    %v3468 = vunpack.c.l.bf16 %v2617
    %v3469 = vunpack.c.l.bf16 %v2618
    %v3470 = vunpack.c.h.bf16 %v2618
    %v3471 = vunpack.c.l.bf16 %v2619
    %v3472 = vunpack.c.h.bf16 %v2619
    %v3473 = vunpack.c.l.bf16 %v2620
    %v3474 = vunpack.c.h.bf16 %v2620
    %v3475 = vunpack.c.l.bf16 %v2621
    %v3476 = vunpack.c.l.bf16 %v2622
    %v3477 = vunpack.c.h.bf16 %v2622
    %v3478 = vunpack.c.l.bf16 %v2623
    %v3479 = vunpack.c.h.bf16 %v2623
    %v3480 = vunpack.c.l.bf16 %v2624
    %v3481 = vunpack.c.h.bf16 %v2624
    %v3482 = vunpack.c.l.bf16 %v2625
    %v3483 = vunpack.c.l.bf16 %v2626
    %v3484 = vunpack.c.h.bf16 %v2626
    %v3485 = vunpack.c.l.bf16 %v2627
    %v3486 = vunpack.c.h.bf16 %v2627
    %v3487 = vunpack.c.l.bf16 %v2628
    %v3488 = vunpack.c.h.bf16 %v2628
    %v3489 = vunpack.c.l.bf16 %v2629
    %v3490 = vunpack.c.l.bf16 %v2630
    %v3491 = vunpack.c.h.bf16 %v2630
    %v3492 = vunpack.c.l.bf16 %v2631
    %v3493 = vunpack.c.h.bf16 %v2631
    %v3494 = vunpack.c.l.bf16 %v2632
    %v3495 = vunpack.c.h.bf16 %v2632
    %v3496 = vunpack.c.l.bf16 %v2633
    %v3497 = vunpack.c.l.bf16 %v2634
    %v3498 = vunpack.c.h.bf16 %v2634
    %v3499 = vunpack.c.l.bf16 %v2635
    %v3500 = vunpack.c.h.bf16 %v2635
    %v3501 = vunpack.c.l.bf16 %v2636
    %v3502 = vunpack.c.h.bf16 %v2636
    %v3503 = vunpack.c.l.bf16 %v2637
    %v3504 = vunpack.c.l.bf16 %v2638
    %v3505 = vunpack.c.h.bf16 %v2638
    %v3506 = vunpack.c.l.bf16 %v2639
    %v3507 = vunpack.c.h.bf16 %v2639
    %v3508 = vunpack.c.l.bf16 %v2640
    %v3509 = vunpack.c.h.bf16 %v2640
    %v3510 = vunpack.c.l.bf16 %v2641
    %v3511 = vunpack.c.l.bf16 %v2642
    %v3512 = vunpack.c.h.bf16 %v2642
    %v3513 = vunpack.c.l.bf16 %v2643
    %v3514 = vunpack.c.h.bf16 %v2643
    %v3515 = vunpack.c.l.bf16 %v2644
    %v3516 = vunpack.c.h.bf16 %v2644
    %v3517 = vunpack.c.l.bf16 %v2645
    %v3518 = vunpack.c.l.bf16 %v2646
    %v3519 = vunpack.c.h.bf16 %v2646
    %v3520 = vunpack.c.l.bf16 %v2647
    %v3521 = vunpack.c.h.bf16 %v2647
    %v3522 = vunpack.c.l.bf16 %v2648
    %v3523 = vunpack.c.h.bf16 %v2648
    %v3524 = vunpack.c.l.bf16 %v2649
    %v3525 = vunpack.c.l.bf16 %v2650
    %v3526 = vunpack.c.h.bf16 %v2650
    %v3527 = vunpack.c.l.bf16 %v2651
    %v3528 = vunpack.c.h.bf16 %v2651
    %v3529 = vunpack.c.l.bf16 %v2652
    %v3530 = vunpack.c.h.bf16 %v2652
    %v3531 = vunpack.c.l.bf16 %v2653
    %v3532 = vunpack.c.l.bf16 %v2654
    %v3533 = vunpack.c.h.bf16 %v2654
    %v3534 = vunpack.c.l.bf16 %v2655
    %v3535 = vunpack.c.h.bf16 %v2655
    %v3536 = vunpack.c.l.bf16 %v2656
    %v3537 = vunpack.c.h.bf16 %v2656
    %v3538 = vunpack.c.l.bf16 %v2657
    %v3539 = vunpack.c.l.bf16 %v2658
    %v3540 = vunpack.c.h.bf16 %v2658
    %v3541 = vunpack.c.l.bf16 %v2659
    %v3542 = vunpack.c.h.bf16 %v2659
    %v3543 = vunpack.c.l.bf16 %v2660
    %v3544 = vunpack.c.h.bf16 %v2660
    %v3545 = vunpack.c.l.bf16 %v2661
    %v3546 = vunpack.c.l.bf16 %v2662
    %v3547 = vunpack.c.h.bf16 %v2662
    %v3548 = vunpack.c.l.bf16 %v2663
    %v3549 = vunpack.c.h.bf16 %v2663
    %v3550 = vunpack.c.l.bf16 %v2664
    %v3551 = vunpack.c.h.bf16 %v2664
    %v3552 = vunpack.c.l.bf16 %v2665
    %v3553 = vunpack.c.l.bf16 %v2666
    %v3554 = vunpack.c.h.bf16 %v2666
    %v3555 = vunpack.c.l.bf16 %v2667
    %v3556 = vunpack.c.h.bf16 %v2667
    %v3557 = vunpack.c.l.bf16 %v2668
    %v3558 = vunpack.c.h.bf16 %v2668
    %v3559 = vunpack.c.l.bf16 %v2669
    %v3560 = vunpack.c.l.bf16 %v2670
    %v3561 = vunpack.c.h.bf16 %v2670
    %v3562 = vunpack.c.l.bf16 %v2671
    %v3563 = vunpack.c.h.bf16 %v2671
    %v3564 = vunpack.c.l.bf16 %v2672
    %v3565 = vunpack.c.h.bf16 %v2672
    %v3566 = vunpack.c.l.bf16 %v2673
    %v3567 = vunpack.c.l.bf16 %v2674
    %v3568 = vunpack.c.h.bf16 %v2674
    %v3569 = vunpack.c.l.bf16 %v2675
    %v3570 = vunpack.c.h.bf16 %v2675
    %v3571 = vunpack.c.l.bf16 %v2676
    %v3572 = vunpack.c.h.bf16 %v2676
    %v3573 = vunpack.c.l.bf16 %v2677
    %v3574 = vld [vmem:[#allocation16] sm:$0xff]
    %v3576 = vlaneseq
    %v3577 = vshrl.u32 %v3576, 7
    %v3578 = vsub.s32 0, %v3577
    %v3579 = vrot.slane %v3574, %v3578
    %v3580 = vlaneseq
    %v3581 = vshrl.u32 %v3580, 7
    %v3582 = vsub.s32 1, %v3581
    %v3583 = vrot.slane %v3574, %v3582
    %v3584 = vlaneseq
    %v3585 = vshrl.u32 %v3584, 7
    %v3586 = vsub.s32 2, %v3585
    %v3587 = vrot.slane %v3574, %v3586
    %v3588 = vlaneseq
    %v3589 = vshrl.u32 %v3588, 7
    %v3590 = vsub.s32 3, %v3589
    %v3591 = vrot.slane %v3574, %v3590
    %v3592 = vlaneseq
    %v3593 = vshrl.u32 %v3592, 7
    %v3594 = vsub.s32 4, %v3593
    %v3595 = vrot.slane %v3574, %v3594
    %v3596 = vlaneseq
    %v3597 = vshrl.u32 %v3596, 7
    %v3598 = vsub.s32 5, %v3597
    %v3599 = vrot.slane %v3574, %v3598
    %v3600 = vlaneseq
    %v3601 = vshrl.u32 %v3600, 7
    %v3602 = vsub.s32 6, %v3601
    %v3603 = vrot.slane %v3574, %v3602
    %3611 = vmatprep.subr.mxu0 %v2679
    %3612 = vmatpush1.msra.mxu0 %v2678
    %3613 = vmatprep.subr.mxu0 %v2686
    %3614 = vmatpush1.msra.mxu0 %v2685
    %3615 = vmatprep.subr.mxu0 %v2693
    %3616 = vmatpush1.msra.mxu0 %v2692
    %3617 = vmatprep.subr.mxu0 %v2700
    %3618 = vmatpush1.msra.mxu0 %v2699
    %3619 = vmatprep.subr.mxu0 %v2707
    %3620 = vmatpush1.msra.mxu0 %v2706
    %3621 = vmatprep.subr.mxu0 %v2714
    %3622 = vmatpush1.msra.mxu0 %v2713
    %3623 = vmatprep.subr.mxu0 %v2721
    %3624 = vmatpush1.msra.mxu0 %v2720
    %3625 = vmatprep.subr.mxu0 %v2728
    %3626 = vmatpush1.msra.mxu0 %v2727
    %3627 = vmatprep.subr.mxu0 %v2735
    %3628 = vmatpush1.msra.mxu0 %v2734
    %3629 = vmatprep.subr.mxu0 %v2742
    %3630 = vmatpush1.msra.mxu0 %v2741
    %3631 = vmatprep.subr.mxu0 %v2749
    %3632 = vmatpush1.msra.mxu0 %v2748
    %3633 = vmatprep.subr.mxu0 %v2756
    %3634 = vmatpush1.msra.mxu0 %v2755
    %3635 = vmatprep.subr.mxu0 %v2763
    %3636 = vmatpush1.msra.mxu0 %v2762
    %3637 = vmatprep.subr.mxu0 %v2770
    %3638 = vmatpush1.msra.mxu0 %v2769
    %3639 = vmatprep.subr.mxu0 %v2777
    %3640 = vmatpush1.msra.mxu0 %v2776
    %3641 = vmatprep.subr.mxu0 %v2784
    %3642 = vmatpush1.msra.mxu0 %v2783
    %3643 = vmatprep.subr.mxu0 %v2791
    %3644 = vmatpush1.msra.mxu0 %v2790
    %3645 = vmatprep.subr.mxu0 %v2798
    %3646 = vmatpush1.msra.mxu0 %v2797
    %3647 = vmatprep.subr.mxu0 %v2805
    %3648 = vmatpush1.msra.mxu0 %v2804
    %3649 = vmatprep.subr.mxu0 %v2812
    %3650 = vmatpush1.msra.mxu0 %v2811
    %3651 = vmatprep.subr.mxu0 %v2819
    %3652 = vmatpush1.msra.mxu0 %v2818
    %3653 = vmatprep.subr.mxu0 %v2826
    %3654 = vmatpush1.msra.mxu0 %v2825
    %3655 = vmatprep.subr.mxu0 %v2833
    %3656 = vmatpush1.msra.mxu0 %v2832
    %3657 = vmatprep.subr.mxu0 %v2840
    %3658 = vmatpush1.msra.mxu0 %v2839
    %3659 = vmatprep.subr.mxu0 %v2847
    %3660 = vmatpush1.msra.mxu0 %v2846
    %3661 = vmatprep.subr.mxu0 %v2854
    %3662 = vmatpush1.msra.mxu0 %v2853
    %3663 = vmatprep.subr.mxu0 %v2861
    %3664 = vmatpush1.msra.mxu0 %v2860
    %3665 = vmatprep.subr.mxu0 %v2868
    %3666 = vmatpush1.msra.mxu0 %v2867
    %3667 = vmatprep.subr.mxu0 %v2875
    %3668 = vmatpush1.msra.mxu0 %v2874
    %3669 = vmatprep.subr.mxu0 %v2882
    %3670 = vmatpush1.msra.mxu0 %v2881
    %3671 = vmatprep.subr.mxu0 %v2889
    %3672 = vmatpush1.msra.mxu0 %v2888
    %3673 = vmatprep.subr.mxu0 %v2896
    %3674 = vmatpush1.msra.mxu0 %v2895
    %3675 = vmatprep.mubr.f32.mxu0 %v2159
    %3676 = vmatmul.mubr.f32.gmra.mrb[0].mxu0 %v2158
    %v3677 = vpop.f32.mrb[0].mxu0
    %v3678 = vadd.f32 %v3579, %v3677
    %v3679 = vpop.f32.mrb[0].mxu0
    %v3680 = vadd.f32 %v3583, %v3679
    %3681 = vdwg.mxu0
    %3682 = vmatprep.subr.mxu0 %v2903
    %3683 = vmatpush1.msra.mxu0 %v2902
    %3684 = vmatprep.subr.mxu0 %v2910
    %3685 = vmatpush1.msra.mxu0 %v2909
    %3686 = vmatprep.subr.mxu0 %v2917
    %3687 = vmatpush1.msra.mxu0 %v2916
    %3688 = vmatprep.subr.mxu0 %v2924
    %3689 = vmatpush1.msra.mxu0 %v2923
    %3690 = vmatprep.subr.mxu0 %v2931
    %3691 = vmatpush1.msra.mxu0 %v2930
    %3692 = vmatprep.subr.mxu0 %v2938
    %3693 = vmatpush1.msra.mxu0 %v2937
    %3694 = vmatprep.subr.mxu0 %v2945
    %3695 = vmatpush1.msra.mxu0 %v2944
    %3696 = vmatprep.subr.mxu0 %v2952
    %3697 = vmatpush1.msra.mxu0 %v2951
    %3698 = vmatprep.subr.mxu0 %v2959
    %3699 = vmatpush1.msra.mxu0 %v2958
    %3700 = vmatprep.subr.mxu0 %v2966
    %3701 = vmatpush1.msra.mxu0 %v2965
    %3702 = vmatprep.subr.mxu0 %v2973
    %3703 = vmatpush1.msra.mxu0 %v2972
    %3704 = vmatprep.subr.mxu0 %v2980
    %3705 = vmatpush1.msra.mxu0 %v2979
    %3706 = vmatprep.subr.mxu0 %v2987
    %3707 = vmatpush1.msra.mxu0 %v2986
    %3708 = vmatprep.subr.mxu0 %v2994
    %3709 = vmatpush1.msra.mxu0 %v2993
    %3710 = vmatprep.subr.mxu0 %v3001
    %3711 = vmatpush1.msra.mxu0 %v3000
    %3712 = vmatprep.subr.mxu0 %v3008
    %3713 = vmatpush1.msra.mxu0 %v3007
    %3714 = vmatprep.subr.mxu0 %v3015
    %3715 = vmatpush1.msra.mxu0 %v3014
    %3716 = vmatprep.subr.mxu0 %v3022
    %3717 = vmatpush1.msra.mxu0 %v3021
    %3718 = vmatprep.subr.mxu0 %v3029
    %3719 = vmatpush1.msra.mxu0 %v3028
    %3720 = vmatprep.subr.mxu0 %v3036
    %3721 = vmatpush1.msra.mxu0 %v3035
    %3722 = vmatprep.subr.mxu0 %v3043
    %3723 = vmatpush1.msra.mxu0 %v3042
    %3724 = vmatprep.subr.mxu0 %v3050
    %3725 = vmatpush1.msra.mxu0 %v3049
    %3726 = vmatprep.subr.mxu0 %v3057
    %3727 = vmatpush1.msra.mxu0 %v3056
    %3728 = vmatprep.subr.mxu0 %v3064
    %3729 = vmatpush1.msra.mxu0 %v3063
    %3730 = vmatprep.subr.mxu0 %v3071
    %3731 = vmatpush1.msra.mxu0 %v3070
    %3732 = vmatprep.subr.mxu0 %v3078
    %3733 = vmatpush1.msra.mxu0 %v3077
    %3734 = vmatprep.subr.mxu0 %v3085
    %3735 = vmatpush1.msra.mxu0 %v3084
    %3736 = vmatprep.subr.mxu0 %v3092
    %3737 = vmatpush1.msra.mxu0 %v3091
    %3738 = vmatprep.subr.mxu0 %v3099
    %3739 = vmatpush1.msra.mxu0 %v3098
    %3740 = vmatprep.subr.mxu0 %v3106
    %3741 = vmatpush1.msra.mxu0 %v3105
    %3742 = vmatprep.subr.mxu0 %v3113
    %3743 = vmatpush1.msra.mxu0 %v3112
    %3744 = vmatprep.subr.mxu0 %v3120
    %3745 = vmatpush1.msra.mxu0 %v3119
    %3746 = vmatprep.mubr.f32.mxu0 %v2161
    %3747 = vmatmul.mubr.f32.gmra.mrb[0].mxu0 %v2160
    %v3748 = vpop.f32.mrb[0].mxu0
    %v3749 = vadd.f32 %v3678, %v3748
    %v3750 = vpop.f32.mrb[0].mxu0
    %v3751 = vadd.f32 %v3680, %v3750
    %3752 = vdwg.mxu0
    %3753 = vmatprep.subr.mxu0 %v3127
    %3754 = vmatpush1.msra.mxu0 %v3126
    %3755 = vmatprep.subr.mxu0 %v3134
    %3756 = vmatpush1.msra.mxu0 %v3133
    %3757 = vmatprep.subr.mxu0 %v3141
    %3758 = vmatpush1.msra.mxu0 %v3140
    %3759 = vmatprep.subr.mxu0 %v3148
    %3760 = vmatpush1.msra.mxu0 %v3147
    %3761 = vmatprep.subr.mxu0 %v3155
    %3762 = vmatpush1.msra.mxu0 %v3154
    %3763 = vmatprep.subr.mxu0 %v3162
    %3764 = vmatpush1.msra.mxu0 %v3161
    %3765 = vmatprep.subr.mxu0 %v3169
    %3766 = vmatpush1.msra.mxu0 %v3168
    %3767 = vmatprep.subr.mxu0 %v3176
    %3768 = vmatpush1.msra.mxu0 %v3175
    %3769 = vmatprep.subr.mxu0 %v3183
    %3770 = vmatpush1.msra.mxu0 %v3182
    %3771 = vmatprep.subr.mxu0 %v3190
    %3772 = vmatpush1.msra.mxu0 %v3189
    %3773 = vmatprep.subr.mxu0 %v3197
    %3774 = vmatpush1.msra.mxu0 %v3196
    %3775 = vmatprep.subr.mxu0 %v3204
    %3776 = vmatpush1.msra.mxu0 %v3203
    %3777 = vmatprep.subr.mxu0 %v3211
    %3778 = vmatpush1.msra.mxu0 %v3210
    %3779 = vmatprep.subr.mxu0 %v3218
    %3780 = vmatpush1.msra.mxu0 %v3217
    %3781 = vmatprep.subr.mxu0 %v3225
    %3782 = vmatpush1.msra.mxu0 %v3224
    %3783 = vmatprep.subr.mxu0 %v3232
    %3784 = vmatpush1.msra.mxu0 %v3231
    %3785 = vmatprep.subr.mxu0 %v3239
    %3786 = vmatpush1.msra.mxu0 %v3238
    %3787 = vmatprep.subr.mxu0 %v3246
    %3788 = vmatpush1.msra.mxu0 %v3245
    %3789 = vmatprep.subr.mxu0 %v3253
    %3790 = vmatpush1.msra.mxu0 %v3252
    %3791 = vmatprep.subr.mxu0 %v3260
    %3792 = vmatpush1.msra.mxu0 %v3259
    %3793 = vmatprep.subr.mxu0 %v3267
    %3794 = vmatpush1.msra.mxu0 %v3266
    %3795 = vmatprep.subr.mxu0 %v3274
    %3796 = vmatpush1.msra.mxu0 %v3273
    %3797 = vmatprep.subr.mxu0 %v3281
    %3798 = vmatpush1.msra.mxu0 %v3280
    %3799 = vmatprep.subr.mxu0 %v3288
    %3800 = vmatpush1.msra.mxu0 %v3287
    %3801 = vmatprep.subr.mxu0 %v3295
    %3802 = vmatpush1.msra.mxu0 %v3294
    %3803 = vmatprep.subr.mxu0 %v3302
    %3804 = vmatpush1.msra.mxu0 %v3301
    %3805 = vmatprep.subr.mxu0 %v3309
    %3806 = vmatpush1.msra.mxu0 %v3308
    %3807 = vmatprep.subr.mxu0 %v3316
    %3808 = vmatpush1.msra.mxu0 %v3315
    %3809 = vmatprep.subr.mxu0 %v3323
    %3810 = vmatpush1.msra.mxu0 %v3322
    %3811 = vmatprep.subr.mxu0 %v3330
    %3812 = vmatpush1.msra.mxu0 %v3329
    %3813 = vmatprep.subr.mxu0 %v3337
    %3814 = vmatpush1.msra.mxu0 %v3336
    %3815 = vmatprep.subr.mxu0 %v3344
    %3816 = vmatpush1.msra.mxu0 %v3343
    %3817 = vmatprep.mubr.f32.mxu0 %v2163
    %3818 = vmatmul.mubr.f32.gmra.mrb[0].mxu0 %v2162
    %v3819 = vpop.f32.mrb[0].mxu0
    %v3820 = vadd.f32 %v3749, %v3819
    %v3821 = vpop.f32.mrb[0].mxu0
    %v3822 = vadd.f32 %v3751, %v3821
    %3823 = vdwg.mxu0
    %3824 = vmatprep.subr.mxu0 %v3351
    %3825 = vmatpush1.msra.mxu0 %v3350
    %3826 = vmatprep.subr.mxu0 %v3358
    %3827 = vmatpush1.msra.mxu0 %v3357
    %3828 = vmatprep.subr.mxu0 %v3365
    %3829 = vmatpush1.msra.mxu0 %v3364
    %3830 = vmatprep.subr.mxu0 %v3372
    %3831 = vmatpush1.msra.mxu0 %v3371
    %3832 = vmatprep.subr.mxu0 %v3379
    %3833 = vmatpush1.msra.mxu0 %v3378
    %3834 = vmatprep.subr.mxu0 %v3386
    %3835 = vmatpush1.msra.mxu0 %v3385
    %3836 = vmatprep.subr.mxu0 %v3393
    %3837 = vmatpush1.msra.mxu0 %v3392
    %3838 = vmatprep.subr.mxu0 %v3400
    %3839 = vmatpush1.msra.mxu0 %v3399
    %3840 = vmatprep.subr.mxu0 %v3407
    %3841 = vmatpush1.msra.mxu0 %v3406
    %3842 = vmatprep.subr.mxu0 %v3414
    %3843 = vmatpush1.msra.mxu0 %v3413
    %3844 = vmatprep.subr.mxu0 %v3421
    %3845 = vmatpush1.msra.mxu0 %v3420
    %3846 = vmatprep.subr.mxu0 %v3428
    %3847 = vmatpush1.msra.mxu0 %v3427
    %3848 = vmatprep.subr.mxu0 %v3435
    %3849 = vmatpush1.msra.mxu0 %v3434
    %3850 = vmatprep.subr.mxu0 %v3442
    %3851 = vmatpush1.msra.mxu0 %v3441
    %3852 = vmatprep.subr.mxu0 %v3449
    %3853 = vmatpush1.msra.mxu0 %v3448
    %3854 = vmatprep.subr.mxu0 %v3456
    %3855 = vmatpush1.msra.mxu0 %v3455
    %3856 = vmatprep.subr.mxu0 %v3463
    %3857 = vmatpush1.msra.mxu0 %v3462
    %3858 = vmatprep.subr.mxu0 %v3470
    %3859 = vmatpush1.msra.mxu0 %v3469
    %3860 = vmatprep.subr.mxu0 %v3477
    %3861 = vmatpush1.msra.mxu0 %v3476
    %3862 = vmatprep.subr.mxu0 %v3484
    %3863 = vmatpush1.msra.mxu0 %v3483
    %3864 = vmatprep.subr.mxu0 %v3491
    %3865 = vmatpush1.msra.mxu0 %v3490
    %3866 = vmatprep.subr.mxu0 %v3498
    %3867 = vmatpush1.msra.mxu0 %v3497
    %3868 = vmatprep.subr.mxu0 %v3505
    %3869 = vmatpush1.msra.mxu0 %v3504
    %3870 = vmatprep.subr.mxu0 %v3512
    %3871 = vmatpush1.msra.mxu0 %v3511
    %3872 = vmatprep.subr.mxu0 %v3519
    %3873 = vmatpush1.msra.mxu0 %v3518
    %3874 = vmatprep.subr.mxu0 %v3526
    %3875 = vmatpush1.msra.mxu0 %v3525
    %3876 = vmatprep.subr.mxu0 %v3533
    %3877 = vmatpush1.msra.mxu0 %v3532
    %3878 = vmatprep.subr.mxu0 %v3540
    %3879 = vmatpush1.msra.mxu0 %v3539
    %3880 = vmatprep.subr.mxu0 %v3547
    %3881 = vmatpush1.msra.mxu0 %v3546
    %3882 = vmatprep.subr.mxu0 %v3554
    %3883 = vmatpush1.msra.mxu0 %v3553
    %3884 = vmatprep.subr.mxu0 %v3561
    %3885 = vmatpush1.msra.mxu0 %v3560
    %3886 = vmatprep.subr.mxu0 %v3568
    %3887 = vmatpush1.msra.mxu0 %v3567
    %3888 = vmatprep.mubr.f32.mxu0 %v2165
    %3889 = vmatmul.mubr.f32.gmra.mrb[0].mxu0 %v2164
    %v3890 = vpop.f32.mrb[0].mxu0
    %v3891 = vadd.f32 %v3820, %v3890
    %v3892 = vpop.f32.mrb[0].mxu0
    %v3893 = vadd.f32 %v3822, %v3892
    %3894 = vdwg.mxu0
    %3895 = vmatprep.subr.mxu0 %v2681
    %3896 = vmatpush1.msra.mxu0 %v2680
    %3897 = vmatprep.subr.mxu0 %v2688
    %3898 = vmatpush1.msra.mxu0 %v2687
    %3899 = vmatprep.subr.mxu0 %v2695
    %3900 = vmatpush1.msra.mxu0 %v2694
    %3901 = vmatprep.subr.mxu0 %v2702
    %3902 = vmatpush1.msra.mxu0 %v2701
    %3903 = vmatprep.subr.mxu0 %v2709
    %3904 = vmatpush1.msra.mxu0 %v2708
    %3905 = vmatprep.subr.mxu0 %v2716
    %3906 = vmatpush1.msra.mxu0 %v2715
    %3907 = vmatprep.subr.mxu0 %v2723
    %3908 = vmatpush1.msra.mxu0 %v2722
    %3909 = vmatprep.subr.mxu0 %v2730
    %3910 = vmatpush1.msra.mxu0 %v2729
    %3911 = vmatprep.subr.mxu0 %v2737
    %3912 = vmatpush1.msra.mxu0 %v2736
    %3913 = vmatprep.subr.mxu0 %v2744
    %3914 = vmatpush1.msra.mxu0 %v2743
    %3915 = vmatprep.subr.mxu0 %v2751
    %3916 = vmatpush1.msra.mxu0 %v2750
    %3917 = vmatprep.subr.mxu0 %v2758
    %3918 = vmatpush1.msra.mxu0 %v2757
    %3919 = vmatprep.subr.mxu0 %v2765
    %3920 = vmatpush1.msra.mxu0 %v2764
    %3921 = vmatprep.subr.mxu0 %v2772
    %3922 = vmatpush1.msra.mxu0 %v2771
    %3923 = vmatprep.subr.mxu0 %v2779
    %3924 = vmatpush1.msra.mxu0 %v2778
    %3925 = vmatprep.subr.mxu0 %v2786
    %3926 = vmatpush1.msra.mxu0 %v2785
    %3927 = vmatprep.subr.mxu0 %v2793
    %3928 = vmatpush1.msra.mxu0 %v2792
    %3929 = vmatprep.subr.mxu0 %v2800
    %3930 = vmatpush1.msra.mxu0 %v2799
    %3931 = vmatprep.subr.mxu0 %v2807
    %3932 = vmatpush1.msra.mxu0 %v2806
    %3933 = vmatprep.subr.mxu0 %v2814
    %3934 = vmatpush1.msra.mxu0 %v2813
    %3935 = vmatprep.subr.mxu0 %v2821
    %3936 = vmatpush1.msra.mxu0 %v2820
    %3937 = vmatprep.subr.mxu0 %v2828
    %3938 = vmatpush1.msra.mxu0 %v2827
    %3939 = vmatprep.subr.mxu0 %v2835
    %3940 = vmatpush1.msra.mxu0 %v2834
    %3941 = vmatprep.subr.mxu0 %v2842
    %3942 = vmatpush1.msra.mxu0 %v2841
    %3943 = vmatprep.subr.mxu0 %v2849
    %3944 = vmatpush1.msra.mxu0 %v2848
    %3945 = vmatprep.subr.mxu0 %v2856
    %3946 = vmatpush1.msra.mxu0 %v2855
    %3947 = vmatprep.subr.mxu0 %v2863
    %3948 = vmatpush1.msra.mxu0 %v2862
    %3949 = vmatprep.subr.mxu0 %v2870
    %3950 = vmatpush1.msra.mxu0 %v2869
    %3951 = vmatprep.subr.mxu0 %v2877
    %3952 = vmatpush1.msra.mxu0 %v2876
    %3953 = vmatprep.subr.mxu0 %v2884
    %3954 = vmatpush1.msra.mxu0 %v2883
    %3955 = vmatprep.subr.mxu0 %v2891
    %3956 = vmatpush1.msra.mxu0 %v2890
    %3957 = vmatprep.subr.mxu0 %v2898
    %3958 = vmatpush1.msra.mxu0 %v2897
    %3959 = vmatprep.mubr.f32.mxu0 %v2159
    %3960 = vmatmul.mubr.f32.gmra.mrb[0].mxu0 %v2158
    %v3961 = vpop.f32.mrb[0].mxu0
    %v3962 = vadd.f32 %v3587, %v3961
    %v3963 = vpop.f32.mrb[0].mxu0
    %v3964 = vadd.f32 %v3591, %v3963
    %3965 = vdwg.mxu0
    %3966 = vmatprep.subr.mxu0 %v2905
    %3967 = vmatpush1.msra.mxu0 %v2904
    %3968 = vmatprep.subr.mxu0 %v2912
    %3969 = vmatpush1.msra.mxu0 %v2911
    %3970 = vmatprep.subr.mxu0 %v2919
    %3971 = vmatpush1.msra.mxu0 %v2918
    %3972 = vmatprep.subr.mxu0 %v2926
    %3973 = vmatpush1.msra.mxu0 %v2925
    %3974 = vmatprep.subr.mxu0 %v2933
    %3975 = vmatpush1.msra.mxu0 %v2932
    %3976 = vmatprep.subr.mxu0 %v2940
    %3977 = vmatpush1.msra.mxu0 %v2939
    %3978 = vmatprep.subr.mxu0 %v2947
    %3979 = vmatpush1.msra.mxu0 %v2946
    %3980 = vmatprep.subr.mxu0 %v2954
    %3981 = vmatpush1.msra.mxu0 %v2953
    %3982 = vmatprep.subr.mxu0 %v2961
    %3983 = vmatpush1.msra.mxu0 %v2960
    %3984 = vmatprep.subr.mxu0 %v2968
    %3985 = vmatpush1.msra.mxu0 %v2967
    %3986 = vmatprep.subr.mxu0 %v2975
    %3987 = vmatpush1.msra.mxu0 %v2974
    %3988 = vmatprep.subr.mxu0 %v2982
    %3989 = vmatpush1.msra.mxu0 %v2981
    %3990 = vmatprep.subr.mxu0 %v2989
    %3991 = vmatpush1.msra.mxu0 %v2988
    %3992 = vmatprep.subr.mxu0 %v2996
    %3993 = vmatpush1.msra.mxu0 %v2995
    %3994 = vmatprep.subr.mxu0 %v3003
    %3995 = vmatpush1.msra.mxu0 %v3002
    %3996 = vmatprep.subr.mxu0 %v3010
    %3997 = vmatpush1.msra.mxu0 %v3009
    %3998 = vmatprep.subr.mxu0 %v3017
    %3999 = vmatpush1.msra.mxu0 %v3016
    %4000 = vmatprep.subr.mxu0 %v3024
    %4001 = vmatpush1.msra.mxu0 %v3023
    %4002 = vmatprep.subr.mxu0 %v3031
    %4003 = vmatpush1.msra.mxu0 %v3030
    %4004 = vmatprep.subr.mxu0 %v3038
    %4005 = vmatpush1.msra.mxu0 %v3037
    %4006 = vmatprep.subr.mxu0 %v3045
    %4007 = vmatpush1.msra.mxu0 %v3044
    %4008 = vmatprep.subr.mxu0 %v3052
    %4009 = vmatpush1.msra.mxu0 %v3051
    %4010 = vmatprep.subr.mxu0 %v3059
    %4011 = vmatpush1.msra.mxu0 %v3058
    %4012 = vmatprep.subr.mxu0 %v3066
    %4013 = vmatpush1.msra.mxu0 %v3065
    %4014 = vmatprep.subr.mxu0 %v3073
    %4015 = vmatpush1.msra.mxu0 %v3072
    %4016 = vmatprep.subr.mxu0 %v3080
    %4017 = vmatpush1.msra.mxu0 %v3079
    %4018 = vmatprep.subr.mxu0 %v3087
    %4019 = vmatpush1.msra.mxu0 %v3086
    %4020 = vmatprep.subr.mxu0 %v3094
    %4021 = vmatpush1.msra.mxu0 %v3093
    %4022 = vmatprep.subr.mxu0 %v3101
    %4023 = vmatpush1.msra.mxu0 %v3100
    %4024 = vmatprep.subr.mxu0 %v3108
    %4025 = vmatpush1.msra.mxu0 %v3107
    %4026 = vmatprep.subr.mxu0 %v3115
    %4027 = vmatpush1.msra.mxu0 %v3114
    %4028 = vmatprep.subr.mxu0 %v3122
    %4029 = vmatpush1.msra.mxu0 %v3121
    %4030 = vmatprep.mubr.f32.mxu0 %v2161
    %4031 = vmatmul.mubr.f32.gmra.mrb[0].mxu0 %v2160
    %v4032 = vpop.f32.mrb[0].mxu0
    %v4033 = vadd.f32 %v3962, %v4032
    %v4034 = vpop.f32.mrb[0].mxu0
    %v4035 = vadd.f32 %v3964, %v4034
    %4036 = vdwg.mxu0
    %4037 = vmatprep.subr.mxu0 %v3129
    %4038 = vmatpush1.msra.mxu0 %v3128
    %4039 = vmatprep.subr.mxu0 %v3136
    %4040 = vmatpush1.msra.mxu0 %v3135
    %4041 = vmatprep.subr.mxu0 %v3143
    %4042 = vmatpush1.msra.mxu0 %v3142
    %4043 = vmatprep.subr.mxu0 %v3150
    %4044 = vmatpush1.msra.mxu0 %v3149
    %4045 = vmatprep.subr.mxu0 %v3157
    %4046 = vmatpush1.msra.mxu0 %v3156
    %4047 = vmatprep.subr.mxu0 %v3164
    %4048 = vmatpush1.msra.mxu0 %v3163
    %4049 = vmatprep.subr.mxu0 %v3171
    %4050 = vmatpush1.msra.mxu0 %v3170
    %4051 = vmatprep.subr.mxu0 %v3178
    %4052 = vmatpush1.msra.mxu0 %v3177
    %4053 = vmatprep.subr.mxu0 %v3185
    %4054 = vmatpush1.msra.mxu0 %v3184
    %4055 = vmatprep.subr.mxu0 %v3192
    %4056 = vmatpush1.msra.mxu0 %v3191
    %4057 = vmatprep.subr.mxu0 %v3199
    %4058 = vmatpush1.msra.mxu0 %v3198
    %4059 = vmatprep.subr.mxu0 %v3206
    %4060 = vmatpush1.msra.mxu0 %v3205
    %4061 = vmatprep.subr.mxu0 %v3213
    %4062 = vmatpush1.msra.mxu0 %v3212
    %4063 = vmatprep.subr.mxu0 %v3220
    %4064 = vmatpush1.msra.mxu0 %v3219
    %4065 = vmatprep.subr.mxu0 %v3227
    %4066 = vmatpush1.msra.mxu0 %v3226
    %4067 = vmatprep.subr.mxu0 %v3234
    %4068 = vmatpush1.msra.mxu0 %v3233
    %4069 = vmatprep.subr.mxu0 %v3241
    %4070 = vmatpush1.msra.mxu0 %v3240
    %4071 = vmatprep.subr.mxu0 %v3248
    %4072 = vmatpush1.msra.mxu0 %v3247
    %4073 = vmatprep.subr.mxu0 %v3255
    %4074 = vmatpush1.msra.mxu0 %v3254
    %4075 = vmatprep.subr.mxu0 %v3262
    %4076 = vmatpush1.msra.mxu0 %v3261
    %4077 = vmatprep.subr.mxu0 %v3269
    %4078 = vmatpush1.msra.mxu0 %v3268
    %4079 = vmatprep.subr.mxu0 %v3276
    %4080 = vmatpush1.msra.mxu0 %v3275
    %4081 = vmatprep.subr.mxu0 %v3283
    %4082 = vmatpush1.msra.mxu0 %v3282
    %4083 = vmatprep.subr.mxu0 %v3290
    %4084 = vmatpush1.msra.mxu0 %v3289
    %4085 = vmatprep.subr.mxu0 %v3297
    %4086 = vmatpush1.msra.mxu0 %v3296
    %4087 = vmatprep.subr.mxu0 %v3304
    %4088 = vmatpush1.msra.mxu0 %v3303
    %4089 = vmatprep.subr.mxu0 %v3311
    %4090 = vmatpush1.msra.mxu0 %v3310
    %4091 = vmatprep.subr.mxu0 %v3318
    %4092 = vmatpush1.msra.mxu0 %v3317
    %4093 = vmatprep.subr.mxu0 %v3325
    %4094 = vmatpush1.msra.mxu0 %v3324
    %4095 = vmatprep.subr.mxu0 %v3332
    %4096 = vmatpush1.msra.mxu0 %v3331
    %4097 = vmatprep.subr.mxu0 %v3339
    %4098 = vmatpush1.msra.mxu0 %v3338
    %4099 = vmatprep.subr.mxu0 %v3346
    %4100 = vmatpush1.msra.mxu0 %v3345
    %4101 = vmatprep.mubr.f32.mxu0 %v2163
    %4102 = vmatmul.mubr.f32.gmra.mrb[0].mxu0 %v2162
    %v4103 = vpop.f32.mrb[0].mxu0
    %v4104 = vadd.f32 %v4033, %v4103
    %v4105 = vpop.f32.mrb[0].mxu0
    %v4106 = vadd.f32 %v4035, %v4105
    %4107 = vdwg.mxu0
    %4108 = vmatprep.subr.mxu0 %v3353
    %4109 = vmatpush1.msra.mxu0 %v3352
    %4110 = vmatprep.subr.mxu0 %v3360
    %4111 = vmatpush1.msra.mxu0 %v3359
    %4112 = vmatprep.subr.mxu0 %v3367
    %4113 = vmatpush1.msra.mxu0 %v3366
    %4114 = vmatprep.subr.mxu0 %v3374
    %4115 = vmatpush1.msra.mxu0 %v3373
    %4116 = vmatprep.subr.mxu0 %v3381
    %4117 = vmatpush1.msra.mxu0 %v3380
    %4118 = vmatprep.subr.mxu0 %v3388
    %4119 = vmatpush1.msra.mxu0 %v3387
    %4120 = vmatprep.subr.mxu0 %v3395
    %4121 = vmatpush1.msra.mxu0 %v3394
    %4122 = vmatprep.subr.mxu0 %v3402
    %4123 = vmatpush1.msra.mxu0 %v3401
    %4124 = vmatprep.subr.mxu0 %v3409
    %4125 = vmatpush1.msra.mxu0 %v3408
    %4126 = vmatprep.subr.mxu0 %v3416
    %4127 = vmatpush1.msra.mxu0 %v3415
    %4128 = vmatprep.subr.mxu0 %v3423
    %4129 = vmatpush1.msra.mxu0 %v3422
    %4130 = vmatprep.subr.mxu0 %v3430
    %4131 = vmatpush1.msra.mxu0 %v3429
    %4132 = vmatprep.subr.mxu0 %v3437
    %4133 = vmatpush1.msra.mxu0 %v3436
    %4134 = vmatprep.subr.mxu0 %v3444
    %4135 = vmatpush1.msra.mxu0 %v3443
    %4136 = vmatprep.subr.mxu0 %v3451
    %4137 = vmatpush1.msra.mxu0 %v3450
    %4138 = vmatprep.subr.mxu0 %v3458
    %4139 = vmatpush1.msra.mxu0 %v3457
    %4140 = vmatprep.subr.mxu0 %v3465
    %4141 = vmatpush1.msra.mxu0 %v3464
    %4142 = vmatprep.subr.mxu0 %v3472
    %4143 = vmatpush1.msra.mxu0 %v3471
    %4144 = vmatprep.subr.mxu0 %v3479
    %4145 = vmatpush1.msra.mxu0 %v3478
    %4146 = vmatprep.subr.mxu0 %v3486
    %4147 = vmatpush1.msra.mxu0 %v3485
    %4148 = vmatprep.subr.mxu0 %v3493
    %4149 = vmatpush1.msra.mxu0 %v3492
    %4150 = vmatprep.subr.mxu0 %v3500
    %4151 = vmatpush1.msra.mxu0 %v3499
    %4152 = vmatprep.subr.mxu0 %v3507
    %4153 = vmatpush1.msra.mxu0 %v3506
    %4154 = vmatprep.subr.mxu0 %v3514
    %4155 = vmatpush1.msra.mxu0 %v3513
    %4156 = vmatprep.subr.mxu0 %v3521
    %4157 = vmatpush1.msra.mxu0 %v3520
    %4158 = vmatprep.subr.mxu0 %v3528
    %4159 = vmatpush1.msra.mxu0 %v3527
    %4160 = vmatprep.subr.mxu0 %v3535
    %4161 = vmatpush1.msra.mxu0 %v3534
    %4162 = vmatprep.subr.mxu0 %v3542
    %4163 = vmatpush1.msra.mxu0 %v3541
    %4164 = vmatprep.subr.mxu0 %v3549
    %4165 = vmatpush1.msra.mxu0 %v3548
    %4166 = vmatprep.subr.mxu0 %v3556
    %4167 = vmatpush1.msra.mxu0 %v3555
    %4168 = vmatprep.subr.mxu0 %v3563
    %4169 = vmatpush1.msra.mxu0 %v3562
    %4170 = vmatprep.subr.mxu0 %v3570
    %4171 = vmatpush1.msra.mxu0 %v3569
    %4172 = vmatprep.mubr.f32.mxu0 %v2165
    %4173 = vmatmul.mubr.f32.gmra.mrb[0].mxu0 %v2164
    %v4174 = vpop.f32.mrb[0].mxu0
    %v4175 = vadd.f32 %v4104, %v4174
    %v4176 = vpop.f32.mrb[0].mxu0
    %v4177 = vadd.f32 %v4106, %v4176
    %4178 = vdwg.mxu0
    %4179 = vmatprep.subr.mxu0 %v2683
    %4180 = vmatpush1.msra.mxu0 %v2682
    %4181 = vmatprep.subr.mxu0 %v2690
    %4182 = vmatpush1.msra.mxu0 %v2689
    %4183 = vmatprep.subr.mxu0 %v2697
    %4184 = vmatpush1.msra.mxu0 %v2696
    %4185 = vmatprep.subr.mxu0 %v2704
    %4186 = vmatpush1.msra.mxu0 %v2703
    %4187 = vmatprep.subr.mxu0 %v2711
    %4188 = vmatpush1.msra.mxu0 %v2710
    %4189 = vmatprep.subr.mxu0 %v2718
    %4190 = vmatpush1.msra.mxu0 %v2717
    %4191 = vmatprep.subr.mxu0 %v2725
    %4192 = vmatpush1.msra.mxu0 %v2724
    %4193 = vmatprep.subr.mxu0 %v2732
    %4194 = vmatpush1.msra.mxu0 %v2731
    %4195 = vmatprep.subr.mxu0 %v2739
    %4196 = vmatpush1.msra.mxu0 %v2738
    %4197 = vmatprep.subr.mxu0 %v2746
    %4198 = vmatpush1.msra.mxu0 %v2745
    %4199 = vmatprep.subr.mxu0 %v2753
    %4200 = vmatpush1.msra.mxu0 %v2752
    %4201 = vmatprep.subr.mxu0 %v2760
    %4202 = vmatpush1.msra.mxu0 %v2759
    %4203 = vmatprep.subr.mxu0 %v2767
    %4204 = vmatpush1.msra.mxu0 %v2766
    %4205 = vmatprep.subr.mxu0 %v2774
    %4206 = vmatpush1.msra.mxu0 %v2773
    %4207 = vmatprep.subr.mxu0 %v2781
    %4208 = vmatpush1.msra.mxu0 %v2780
    %4209 = vmatprep.subr.mxu0 %v2788
    %4210 = vmatpush1.msra.mxu0 %v2787
    %4211 = vmatprep.subr.mxu0 %v2795
    %4212 = vmatpush1.msra.mxu0 %v2794
    %4213 = vmatprep.subr.mxu0 %v2802
    %4214 = vmatpush1.msra.mxu0 %v2801
    %4215 = vmatprep.subr.mxu0 %v2809
    %4216 = vmatpush1.msra.mxu0 %v2808
    %4217 = vmatprep.subr.mxu0 %v2816
    %4218 = vmatpush1.msra.mxu0 %v2815
    %4219 = vmatprep.subr.mxu0 %v2823
    %4220 = vmatpush1.msra.mxu0 %v2822
    %4221 = vmatprep.subr.mxu0 %v2830
    %4222 = vmatpush1.msra.mxu0 %v2829
    %4223 = vmatprep.subr.mxu0 %v2837
    %4224 = vmatpush1.msra.mxu0 %v2836
    %4225 = vmatprep.subr.mxu0 %v2844
    %4226 = vmatpush1.msra.mxu0 %v2843
    %4227 = vmatprep.subr.mxu0 %v2851
    %4228 = vmatpush1.msra.mxu0 %v2850
    %4229 = vmatprep.subr.mxu0 %v2858
    %4230 = vmatpush1.msra.mxu0 %v2857
    %4231 = vmatprep.subr.mxu0 %v2865
    %4232 = vmatpush1.msra.mxu0 %v2864
    %4233 = vmatprep.subr.mxu0 %v2872
    %4234 = vmatpush1.msra.mxu0 %v2871
    %4235 = vmatprep.subr.mxu0 %v2879
    %4236 = vmatpush1.msra.mxu0 %v2878
    %4237 = vmatprep.subr.mxu0 %v2886
    %4238 = vmatpush1.msra.mxu0 %v2885
    %4239 = vmatprep.subr.mxu0 %v2893
    %4240 = vmatpush1.msra.mxu0 %v2892
    %4241 = vmatprep.subr.mxu0 %v2900
    %4242 = vmatpush1.msra.mxu0 %v2899
    %4243 = vmatprep.mubr.f32.mxu0 %v2159
    %4244 = vmatmul.mubr.f32.gmra.mrb[0].mxu0 %v2158
    %v4245 = vpop.f32.mrb[0].mxu0
    %v4246 = vadd.f32 %v3595, %v4245
    %v4247 = vpop.f32.mrb[0].mxu0
    %v4248 = vadd.f32 %v3599, %v4247
    %4249 = vdwg.mxu0
    %4250 = vmatprep.subr.mxu0 %v2907
    %4251 = vmatpush1.msra.mxu0 %v2906
    %4252 = vmatprep.subr.mxu0 %v2914
    %4253 = vmatpush1.msra.mxu0 %v2913
    %4254 = vmatprep.subr.mxu0 %v2921
    %4255 = vmatpush1.msra.mxu0 %v2920
    %4256 = vmatprep.subr.mxu0 %v2928
    %4257 = vmatpush1.msra.mxu0 %v2927
    %4258 = vmatprep.subr.mxu0 %v2935
    %4259 = vmatpush1.msra.mxu0 %v2934
    %4260 = vmatprep.subr.mxu0 %v2942
    %4261 = vmatpush1.msra.mxu0 %v2941
    %4262 = vmatprep.subr.mxu0 %v2949
    %4263 = vmatpush1.msra.mxu0 %v2948
    %4264 = vmatprep.subr.mxu0 %v2956
    %4265 = vmatpush1.msra.mxu0 %v2955
    %4266 = vmatprep.subr.mxu0 %v2963
    %4267 = vmatpush1.msra.mxu0 %v2962
    %4268 = vmatprep.subr.mxu0 %v2970
    %4269 = vmatpush1.msra.mxu0 %v2969
    %4270 = vmatprep.subr.mxu0 %v2977
    %4271 = vmatpush1.msra.mxu0 %v2976
    %4272 = vmatprep.subr.mxu0 %v2984
    %4273 = vmatpush1.msra.mxu0 %v2983
    %4274 = vmatprep.subr.mxu0 %v2991
    %4275 = vmatpush1.msra.mxu0 %v2990
    %4276 = vmatprep.subr.mxu0 %v2998
    %4277 = vmatpush1.msra.mxu0 %v2997
    %4278 = vmatprep.subr.mxu0 %v3005
    %4279 = vmatpush1.msra.mxu0 %v3004
    %4280 = vmatprep.subr.mxu0 %v3012
    %4281 = vmatpush1.msra.mxu0 %v3011
    %4282 = vmatprep.subr.mxu0 %v3019
    %4283 = vmatpush1.msra.mxu0 %v3018
    %4284 = vmatprep.subr.mxu0 %v3026
    %4285 = vmatpush1.msra.mxu0 %v3025
    %4286 = vmatprep.subr.mxu0 %v3033
    %4287 = vmatpush1.msra.mxu0 %v3032
    %4288 = vmatprep.subr.mxu0 %v3040
    %4289 = vmatpush1.msra.mxu0 %v3039
    %4290 = vmatprep.subr.mxu0 %v3047
    %4291 = vmatpush1.msra.mxu0 %v3046
    %4292 = vmatprep.subr.mxu0 %v3054
    %4293 = vmatpush1.msra.mxu0 %v3053
    %4294 = vmatprep.subr.mxu0 %v3061
    %4295 = vmatpush1.msra.mxu0 %v3060
    %4296 = vmatprep.subr.mxu0 %v3068
    %4297 = vmatpush1.msra.mxu0 %v3067
    %4298 = vmatprep.subr.mxu0 %v3075
    %4299 = vmatpush1.msra.mxu0 %v3074
    %4300 = vmatprep.subr.mxu0 %v3082
    %4301 = vmatpush1.msra.mxu0 %v3081
    %4302 = vmatprep.subr.mxu0 %v3089
    %4303 = vmatpush1.msra.mxu0 %v3088
    %4304 = vmatprep.subr.mxu0 %v3096
    %4305 = vmatpush1.msra.mxu0 %v3095
    %4306 = vmatprep.subr.mxu0 %v3103
    %4307 = vmatpush1.msra.mxu0 %v3102
    %4308 = vmatprep.subr.mxu0 %v3110
    %4309 = vmatpush1.msra.mxu0 %v3109
    %4310 = vmatprep.subr.mxu0 %v3117
    %4311 = vmatpush1.msra.mxu0 %v3116
    %4312 = vmatprep.subr.mxu0 %v3124
    %4313 = vmatpush1.msra.mxu0 %v3123
    %4314 = vmatprep.mubr.f32.mxu0 %v2161
    %4315 = vmatmul.mubr.f32.gmra.mrb[0].mxu0 %v2160
    %v4316 = vpop.f32.mrb[0].mxu0
    %v4317 = vadd.f32 %v4246, %v4316
    %v4318 = vpop.f32.mrb[0].mxu0
    %v4319 = vadd.f32 %v4248, %v4318
    %4320 = vdwg.mxu0
    %4321 = vmatprep.subr.mxu0 %v3131
    %4322 = vmatpush1.msra.mxu0 %v3130
    %4323 = vmatprep.subr.mxu0 %v3138
    %4324 = vmatpush1.msra.mxu0 %v3137
    %4325 = vmatprep.subr.mxu0 %v3145
    %4326 = vmatpush1.msra.mxu0 %v3144
    %4327 = vmatprep.subr.mxu0 %v3152
    %4328 = vmatpush1.msra.mxu0 %v3151
    %4329 = vmatprep.subr.mxu0 %v3159
    %4330 = vmatpush1.msra.mxu0 %v3158
    %4331 = vmatprep.subr.mxu0 %v3166
    %4332 = vmatpush1.msra.mxu0 %v3165
    %4333 = vmatprep.subr.mxu0 %v3173
    %4334 = vmatpush1.msra.mxu0 %v3172
    %4335 = vmatprep.subr.mxu0 %v3180
    %4336 = vmatpush1.msra.mxu0 %v3179
    %4337 = vmatprep.subr.mxu0 %v3187
    %4338 = vmatpush1.msra.mxu0 %v3186
    %4339 = vmatprep.subr.mxu0 %v3194
    %4340 = vmatpush1.msra.mxu0 %v3193
    %4341 = vmatprep.subr.mxu0 %v3201
    %4342 = vmatpush1.msra.mxu0 %v3200
    %4343 = vmatprep.subr.mxu0 %v3208
    %4344 = vmatpush1.msra.mxu0 %v3207
    %4345 = vmatprep.subr.mxu0 %v3215
    %4346 = vmatpush1.msra.mxu0 %v3214
    %4347 = vmatprep.subr.mxu0 %v3222
    %4348 = vmatpush1.msra.mxu0 %v3221
    %4349 = vmatprep.subr.mxu0 %v3229
    %4350 = vmatpush1.msra.mxu0 %v3228
    %4351 = vmatprep.subr.mxu0 %v3236
    %4352 = vmatpush1.msra.mxu0 %v3235
    %4353 = vmatprep.subr.mxu0 %v3243
    %4354 = vmatpush1.msra.mxu0 %v3242
    %4355 = vmatprep.subr.mxu0 %v3250
    %4356 = vmatpush1.msra.mxu0 %v3249
    %4357 = vmatprep.subr.mxu0 %v3257
    %4358 = vmatpush1.msra.mxu0 %v3256
    %4359 = vmatprep.subr.mxu0 %v3264
    %4360 = vmatpush1.msra.mxu0 %v3263
    %4361 = vmatprep.subr.mxu0 %v3271
    %4362 = vmatpush1.msra.mxu0 %v3270
    %4363 = vmatprep.subr.mxu0 %v3278
    %4364 = vmatpush1.msra.mxu0 %v3277
    %4365 = vmatprep.subr.mxu0 %v3285
    %4366 = vmatpush1.msra.mxu0 %v3284
    %4367 = vmatprep.subr.mxu0 %v3292
    %4368 = vmatpush1.msra.mxu0 %v3291
    %4369 = vmatprep.subr.mxu0 %v3299
    %4370 = vmatpush1.msra.mxu0 %v3298
    %4371 = vmatprep.subr.mxu0 %v3306
    %4372 = vmatpush1.msra.mxu0 %v3305
    %4373 = vmatprep.subr.mxu0 %v3313
    %4374 = vmatpush1.msra.mxu0 %v3312
    %4375 = vmatprep.subr.mxu0 %v3320
    %4376 = vmatpush1.msra.mxu0 %v3319
    %4377 = vmatprep.subr.mxu0 %v3327
    %4378 = vmatpush1.msra.mxu0 %v3326
    %4379 = vmatprep.subr.mxu0 %v3334
    %4380 = vmatpush1.msra.mxu0 %v3333
    %4381 = vmatprep.subr.mxu0 %v3341
    %4382 = vmatpush1.msra.mxu0 %v3340
    %4383 = vmatprep.subr.mxu0 %v3348
    %4384 = vmatpush1.msra.mxu0 %v3347
    %4385 = vmatprep.mubr.f32.mxu0 %v2163
    %4386 = vmatmul.mubr.f32.gmra.mrb[0].mxu0 %v2162
    %v4387 = vpop.f32.mrb[0].mxu0
    %v4388 = vadd.f32 %v4317, %v4387
    %v4389 = vpop.f32.mrb[0].mxu0
    %v4390 = vadd.f32 %v4319, %v4389
    %4391 = vdwg.mxu0
    %4392 = vmatprep.subr.mxu0 %v3355
    %4393 = vmatpush1.msra.mxu0 %v3354
    %4394 = vmatprep.subr.mxu0 %v3362
    %4395 = vmatpush1.msra.mxu0 %v3361
    %4396 = vmatprep.subr.mxu0 %v3369
    %4397 = vmatpush1.msra.mxu0 %v3368
    %4398 = vmatprep.subr.mxu0 %v3376
    %4399 = vmatpush1.msra.mxu0 %v3375
    %4400 = vmatprep.subr.mxu0 %v3383
    %4401 = vmatpush1.msra.mxu0 %v3382
    %4402 = vmatprep.subr.mxu0 %v3390
    %4403 = vmatpush1.msra.mxu0 %v3389
    %4404 = vmatprep.subr.mxu0 %v3397
    %4405 = vmatpush1.msra.mxu0 %v3396
    %4406 = vmatprep.subr.mxu0 %v3404
    %4407 = vmatpush1.msra.mxu0 %v3403
    %4408 = vmatprep.subr.mxu0 %v3411
    %4409 = vmatpush1.msra.mxu0 %v3410
    %4410 = vmatprep.subr.mxu0 %v3418
    %4411 = vmatpush1.msra.mxu0 %v3417
    %4412 = vmatprep.subr.mxu0 %v3425
    %4413 = vmatpush1.msra.mxu0 %v3424
    %4414 = vmatprep.subr.mxu0 %v3432
    %4415 = vmatpush1.msra.mxu0 %v3431
    %4416 = vmatprep.subr.mxu0 %v3439
    %4417 = vmatpush1.msra.mxu0 %v3438
    %4418 = vmatprep.subr.mxu0 %v3446
    %4419 = vmatpush1.msra.mxu0 %v3445
    %4420 = vmatprep.subr.mxu0 %v3453
    %4421 = vmatpush1.msra.mxu0 %v3452
    %4422 = vmatprep.subr.mxu0 %v3460
    %4423 = vmatpush1.msra.mxu0 %v3459
    %4424 = vmatprep.subr.mxu0 %v3467
    %4425 = vmatpush1.msra.mxu0 %v3466
    %4426 = vmatprep.subr.mxu0 %v3474
    %4427 = vmatpush1.msra.mxu0 %v3473
    %4428 = vmatprep.subr.mxu0 %v3481
    %4429 = vmatpush1.msra.mxu0 %v3480
    %4430 = vmatprep.subr.mxu0 %v3488
    %4431 = vmatpush1.msra.mxu0 %v3487
    %4432 = vmatprep.subr.mxu0 %v3495
    %4433 = vmatpush1.msra.mxu0 %v3494
    %4434 = vmatprep.subr.mxu0 %v3502
    %4435 = vmatpush1.msra.mxu0 %v3501
    %4436 = vmatprep.subr.mxu0 %v3509
    %4437 = vmatpush1.msra.mxu0 %v3508
    %4438 = vmatprep.subr.mxu0 %v3516
    %4439 = vmatpush1.msra.mxu0 %v3515
    %4440 = vmatprep.subr.mxu0 %v3523
    %4441 = vmatpush1.msra.mxu0 %v3522
    %4442 = vmatprep.subr.mxu0 %v3530
    %4443 = vmatpush1.msra.mxu0 %v3529
    %4444 = vmatprep.subr.mxu0 %v3537
    %4445 = vmatpush1.msra.mxu0 %v3536
    %4446 = vmatprep.subr.mxu0 %v3544
    %4447 = vmatpush1.msra.mxu0 %v3543
    %4448 = vmatprep.subr.mxu0 %v3551
    %4449 = vmatpush1.msra.mxu0 %v3550
    %4450 = vmatprep.subr.mxu0 %v3558
    %4451 = vmatpush1.msra.mxu0 %v3557
    %4452 = vmatprep.subr.mxu0 %v3565
    %4453 = vmatpush1.msra.mxu0 %v3564
    %4454 = vmatprep.subr.mxu0 %v3572
    %4455 = vmatpush1.msra.mxu0 %v3571
    %4456 = vmatprep.mubr.f32.mxu0 %v2165
    %4457 = vmatmul.mubr.f32.gmra.mrb[0].mxu0 %v2164
    %v4458 = vpop.f32.mrb[0].mxu0
    %v4459 = vadd.f32 %v4388, %v4458
    %v4460 = vpop.f32.mrb[0].mxu0
    %v4461 = vadd.f32 %v4390, %v4460
    %4462 = vdwg.mxu0
    %4463 = vmatprep.subr.mxu0 0.0
    %4464 = vmatpush1.msra.mxu0 %v2684
    %4465 = vmatprep.subr.mxu0 0.0
    %4466 = vmatpush1.msra.mxu0 %v2691
    %4467 = vmatprep.subr.mxu0 0.0
    %4468 = vmatpush1.msra.mxu0 %v2698
    %4469 = vmatprep.subr.mxu0 0.0
    %4470 = vmatpush1.msra.mxu0 %v2705
    %4471 = vmatprep.subr.mxu0 0.0
    %4472 = vmatpush1.msra.mxu0 %v2712
    %4473 = vmatprep.subr.mxu0 0.0
    %4474 = vmatpush1.msra.mxu0 %v2719
    %4475 = vmatprep.subr.mxu0 0.0
    %4476 = vmatpush1.msra.mxu0 %v2726
    %4477 = vmatprep.subr.mxu0 0.0
    %4478 = vmatpush1.msra.mxu0 %v2733
    %4479 = vmatprep.subr.mxu0 0.0
    %4480 = vmatpush1.msra.mxu0 %v2740
    %4481 = vmatprep.subr.mxu0 0.0
    %4482 = vmatpush1.msra.mxu0 %v2747
    %4483 = vmatprep.subr.mxu0 0.0
    %4484 = vmatpush1.msra.mxu0 %v2754
    %4485 = vmatprep.subr.mxu0 0.0
    %4486 = vmatpush1.msra.mxu0 %v2761
    %4487 = vmatprep.subr.mxu0 0.0
    %4488 = vmatpush1.msra.mxu0 %v2768
    %4489 = vmatprep.subr.mxu0 0.0
    %4490 = vmatpush1.msra.mxu0 %v2775
    %4491 = vmatprep.subr.mxu0 0.0
    %4492 = vmatpush1.msra.mxu0 %v2782
    %4493 = vmatprep.subr.mxu0 0.0
    %4494 = vmatpush1.msra.mxu0 %v2789
    %4495 = vmatprep.subr.mxu0 0.0
    %4496 = vmatpush1.msra.mxu0 %v2796
    %4497 = vmatprep.subr.mxu0 0.0
    %4498 = vmatpush1.msra.mxu0 %v2803
    %4499 = vmatprep.subr.mxu0 0.0
    %4500 = vmatpush1.msra.mxu0 %v2810
    %4501 = vmatprep.subr.mxu0 0.0
    %4502 = vmatpush1.msra.mxu0 %v2817
    %4503 = vmatprep.subr.mxu0 0.0
    %4504 = vmatpush1.msra.mxu0 %v2824
    %4505 = vmatprep.subr.mxu0 0.0
    %4506 = vmatpush1.msra.mxu0 %v2831
    %4507 = vmatprep.subr.mxu0 0.0
    %4508 = vmatpush1.msra.mxu0 %v2838
    %4509 = vmatprep.subr.mxu0 0.0
    %4510 = vmatpush1.msra.mxu0 %v2845
    %4511 = vmatprep.subr.mxu0 0.0
    %4512 = vmatpush1.msra.mxu0 %v2852
    %4513 = vmatprep.subr.mxu0 0.0
    %4514 = vmatpush1.msra.mxu0 %v2859
    %4515 = vmatprep.subr.mxu0 0.0
    %4516 = vmatpush1.msra.mxu0 %v2866
    %4517 = vmatprep.subr.mxu0 0.0
    %4518 = vmatpush1.msra.mxu0 %v2873
    %4519 = vmatprep.subr.mxu0 0.0
    %4520 = vmatpush1.msra.mxu0 %v2880
    %4521 = vmatprep.subr.mxu0 0.0
    %4522 = vmatpush1.msra.mxu0 %v2887
    %4523 = vmatprep.subr.mxu0 0.0
    %4524 = vmatpush1.msra.mxu0 %v2894
    %4525 = vmatprep.subr.mxu0 0.0
    %4526 = vmatpush1.msra.mxu0 %v2901
    %4527 = vmatprep.mubr.f32.mxu0 %v2159
    %4528 = vmatmul.mubr.f32.gmra.mrb[0].mxu0 %v2158
    %v4529 = vpop.f32.mrb[0].mxu0
    %v4530 = vadd.f32 %v3603, %v4529
    %v4531 = vpop.f32.mrb[0].mxu0
    %4532 = vdwg.mxu0
    %4533 = vmatprep.subr.mxu0 0.0
    %4534 = vmatpush1.msra.mxu0 %v2908
    %4535 = vmatprep.subr.mxu0 0.0
    %4536 = vmatpush1.msra.mxu0 %v2915
    %4537 = vmatprep.subr.mxu0 0.0
    %4538 = vmatpush1.msra.mxu0 %v2922
    %4539 = vmatprep.subr.mxu0 0.0
    %4540 = vmatpush1.msra.mxu0 %v2929
    %4541 = vmatprep.subr.mxu0 0.0
    %4542 = vmatpush1.msra.mxu0 %v2936
    %4543 = vmatprep.subr.mxu0 0.0
    %4544 = vmatpush1.msra.mxu0 %v2943
    %4545 = vmatprep.subr.mxu0 0.0
    %4546 = vmatpush1.msra.mxu0 %v2950
    %4547 = vmatprep.subr.mxu0 0.0
    %4548 = vmatpush1.msra.mxu0 %v2957
    %4549 = vmatprep.subr.mxu0 0.0
    %4550 = vmatpush1.msra.mxu0 %v2964
    %4551 = vmatprep.subr.mxu0 0.0
    %4552 = vmatpush1.msra.mxu0 %v2971
    %4553 = vmatprep.subr.mxu0 0.0
    %4554 = vmatpush1.msra.mxu0 %v2978
    %4555 = vmatprep.subr.mxu0 0.0
    %4556 = vmatpush1.msra.mxu0 %v2985
    %4557 = vmatprep.subr.mxu0 0.0
    %4558 = vmatpush1.msra.mxu0 %v2992
    %4559 = vmatprep.subr.mxu0 0.0
    %4560 = vmatpush1.msra.mxu0 %v2999
    %4561 = vmatprep.subr.mxu0 0.0
    %4562 = vmatpush1.msra.mxu0 %v3006
    %4563 = vmatprep.subr.mxu0 0.0
    %4564 = vmatpush1.msra.mxu0 %v3013
    %4565 = vmatprep.subr.mxu0 0.0
    %4566 = vmatpush1.msra.mxu0 %v3020
    %4567 = vmatprep.subr.mxu0 0.0
    %4568 = vmatpush1.msra.mxu0 %v3027
    %4569 = vmatprep.subr.mxu0 0.0
    %4570 = vmatpush1.msra.mxu0 %v3034
    %4571 = vmatprep.subr.mxu0 0.0
    %4572 = vmatpush1.msra.mxu0 %v3041
    %4573 = vmatprep.subr.mxu0 0.0
    %4574 = vmatpush1.msra.mxu0 %v3048
    %4575 = vmatprep.subr.mxu0 0.0
    %4576 = vmatpush1.msra.mxu0 %v3055
    %4577 = vmatprep.subr.mxu0 0.0
    %4578 = vmatpush1.msra.mxu0 %v3062
    %4579 = vmatprep.subr.mxu0 0.0
    %4580 = vmatpush1.msra.mxu0 %v3069
    %4581 = vmatprep.subr.mxu0 0.0
    %4582 = vmatpush1.msra.mxu0 %v3076
    %4583 = vmatprep.subr.mxu0 0.0
    %4584 = vmatpush1.msra.mxu0 %v3083
    %4585 = vmatprep.subr.mxu0 0.0
    %4586 = vmatpush1.msra.mxu0 %v3090
    %4587 = vmatprep.subr.mxu0 0.0
    %4588 = vmatpush1.msra.mxu0 %v3097
    %4589 = vmatprep.subr.mxu0 0.0
    %4590 = vmatpush1.msra.mxu0 %v3104
    %4591 = vmatprep.subr.mxu0 0.0
    %4592 = vmatpush1.msra.mxu0 %v3111
    %4593 = vmatprep.subr.mxu0 0.0
    %4594 = vmatpush1.msra.mxu0 %v3118
    %4595 = vmatprep.subr.mxu0 0.0
    %4596 = vmatpush1.msra.mxu0 %v3125
    %4597 = vmatprep.mubr.f32.mxu0 %v2161
    %4598 = vmatmul.mubr.f32.gmra.mrb[0].mxu0 %v2160
    %v4599 = vpop.f32.mrb[0].mxu0
    %v4600 = vadd.f32 %v4530, %v4599
    %v4601 = vpop.f32.mrb[0].mxu0
    %4602 = vdwg.mxu0
    %4603 = vmatprep.subr.mxu0 0.0
    %4604 = vmatpush1.msra.mxu0 %v3132
    %4605 = vmatprep.subr.mxu0 0.0
    %4606 = vmatpush1.msra.mxu0 %v3139
    %4607 = vmatprep.subr.mxu0 0.0
    %4608 = vmatpush1.msra.mxu0 %v3146
    %4609 = vmatprep.subr.mxu0 0.0
    %4610 = vmatpush1.msra.mxu0 %v3153
    %4611 = vmatprep.subr.mxu0 0.0
    %4612 = vmatpush1.msra.mxu0 %v3160
    %4613 = vmatprep.subr.mxu0 0.0
    %4614 = vmatpush1.msra.mxu0 %v3167
    %4615 = vmatprep.subr.mxu0 0.0
    %4616 = vmatpush1.msra.mxu0 %v3174
    %4617 = vmatprep.subr.mxu0 0.0
    %4618 = vmatpush1.msra.mxu0 %v3181
    %4619 = vmatprep.subr.mxu0 0.0
    %4620 = vmatpush1.msra.mxu0 %v3188
    %4621 = vmatprep.subr.mxu0 0.0
    %4622 = vmatpush1.msra.mxu0 %v3195
    %4623 = vmatprep.subr.mxu0 0.0
    %4624 = vmatpush1.msra.mxu0 %v3202
    %4625 = vmatprep.subr.mxu0 0.0
    %4626 = vmatpush1.msra.mxu0 %v3209
    %4627 = vmatprep.subr.mxu0 0.0
    %4628 = vmatpush1.msra.mxu0 %v3216
    %4629 = vmatprep.subr.mxu0 0.0
    %4630 = vmatpush1.msra.mxu0 %v3223
    %4631 = vmatprep.subr.mxu0 0.0
    %4632 = vmatpush1.msra.mxu0 %v3230
    %4633 = vmatprep.subr.mxu0 0.0
    %4634 = vmatpush1.msra.mxu0 %v3237
    %4635 = vmatprep.subr.mxu0 0.0
    %4636 = vmatpush1.msra.mxu0 %v3244
    %4637 = vmatprep.subr.mxu0 0.0
    %4638 = vmatpush1.msra.mxu0 %v3251
    %4639 = vmatprep.subr.mxu0 0.0
    %4640 = vmatpush1.msra.mxu0 %v3258
    %4641 = vmatprep.subr.mxu0 0.0
    %4642 = vmatpush1.msra.mxu0 %v3265
    %4643 = vmatprep.subr.mxu0 0.0
    %4644 = vmatpush1.msra.mxu0 %v3272
    %4645 = vmatprep.subr.mxu0 0.0
    %4646 = vmatpush1.msra.mxu0 %v3279
    %4647 = vmatprep.subr.mxu0 0.0
    %4648 = vmatpush1.msra.mxu0 %v3286
    %4649 = vmatprep.subr.mxu0 0.0
    %4650 = vmatpush1.msra.mxu0 %v3293
    %4651 = vmatprep.subr.mxu0 0.0
    %4652 = vmatpush1.msra.mxu0 %v3300
    %4653 = vmatprep.subr.mxu0 0.0
    %4654 = vmatpush1.msra.mxu0 %v3307
    %4655 = vmatprep.subr.mxu0 0.0
    %4656 = vmatpush1.msra.mxu0 %v3314
    %4657 = vmatprep.subr.mxu0 0.0
    %4658 = vmatpush1.msra.mxu0 %v3321
    %4659 = vmatprep.subr.mxu0 0.0
    %4660 = vmatpush1.msra.mxu0 %v3328
    %4661 = vmatprep.subr.mxu0 0.0
    %4662 = vmatpush1.msra.mxu0 %v3335
    %4663 = vmatprep.subr.mxu0 0.0
    %4664 = vmatpush1.msra.mxu0 %v3342
    %4665 = vmatprep.subr.mxu0 0.0
    %4666 = vmatpush1.msra.mxu0 %v3349
    %4667 = vmatprep.mubr.f32.mxu0 %v2163
    %4668 = vmatmul.mubr.f32.gmra.mrb[0].mxu0 %v2162
    %v4669 = vpop.f32.mrb[0].mxu0
    %v4670 = vadd.f32 %v4600, %v4669
    %v4671 = vpop.f32.mrb[0].mxu0
    %4672 = vdwg.mxu0
    %4673 = vmatprep.subr.mxu0 0.0
    %4674 = vmatpush1.msra.mxu0 %v3356
    %4675 = vmatprep.subr.mxu0 0.0
    %4676 = vmatpush1.msra.mxu0 %v3363
    %4677 = vmatprep.subr.mxu0 0.0
    %4678 = vmatpush1.msra.mxu0 %v3370
    %4679 = vmatprep.subr.mxu0 0.0
    %4680 = vmatpush1.msra.mxu0 %v3377
    %4681 = vmatprep.subr.mxu0 0.0
    %4682 = vmatpush1.msra.mxu0 %v3384
    %4683 = vmatprep.subr.mxu0 0.0
    %4684 = vmatpush1.msra.mxu0 %v3391
    %4685 = vmatprep.subr.mxu0 0.0
    %4686 = vmatpush1.msra.mxu0 %v3398
    %4687 = vmatprep.subr.mxu0 0.0
    %4688 = vmatpush1.msra.mxu0 %v3405
    %4689 = vmatprep.subr.mxu0 0.0
    %4690 = vmatpush1.msra.mxu0 %v3412
    %4691 = vmatprep.subr.mxu0 0.0
    %4692 = vmatpush1.msra.mxu0 %v3419
    %4693 = vmatprep.subr.mxu0 0.0
    %4694 = vmatpush1.msra.mxu0 %v3426
    %4695 = vmatprep.subr.mxu0 0.0
    %4696 = vmatpush1.msra.mxu0 %v3433
    %4697 = vmatprep.subr.mxu0 0.0
    %4698 = vmatpush1.msra.mxu0 %v3440
    %4699 = vmatprep.subr.mxu0 0.0
    %4700 = vmatpush1.msra.mxu0 %v3447
    %4701 = vmatprep.subr.mxu0 0.0
    %4702 = vmatpush1.msra.mxu0 %v3454
    %4703 = vmatprep.subr.mxu0 0.0
    %4704 = vmatpush1.msra.mxu0 %v3461
    %4705 = vmatprep.subr.mxu0 0.0
    %4706 = vmatpush1.msra.mxu0 %v3468
    %4707 = vmatprep.subr.mxu0 0.0
    %4708 = vmatpush1.msra.mxu0 %v3475
    %4709 = vmatprep.subr.mxu0 0.0
    %4710 = vmatpush1.msra.mxu0 %v3482
    %4711 = vmatprep.subr.mxu0 0.0
    %4712 = vmatpush1.msra.mxu0 %v3489
    %4713 = vmatprep.subr.mxu0 0.0
    %4714 = vmatpush1.msra.mxu0 %v3496
    %4715 = vmatprep.subr.mxu0 0.0
    %4716 = vmatpush1.msra.mxu0 %v3503
    %4717 = vmatprep.subr.mxu0 0.0
    %4718 = vmatpush1.msra.mxu0 %v3510
    %4719 = vmatprep.subr.mxu0 0.0
    %4720 = vmatpush1.msra.mxu0 %v3517
    %4721 = vmatprep.subr.mxu0 0.0
    %4722 = vmatpush1.msra.mxu0 %v3524
    %4723 = vmatprep.subr.mxu0 0.0
    %4724 = vmatpush1.msra.mxu0 %v3531
    %4725 = vmatprep.subr.mxu0 0.0
    %4726 = vmatpush1.msra.mxu0 %v3538
    %4727 = vmatprep.subr.mxu0 0.0
    %4728 = vmatpush1.msra.mxu0 %v3545
    %4729 = vmatprep.subr.mxu0 0.0
    %4730 = vmatpush1.msra.mxu0 %v3552
    %4731 = vmatprep.subr.mxu0 0.0
    %4732 = vmatpush1.msra.mxu0 %v3559
    %4733 = vmatprep.subr.mxu0 0.0
    %4734 = vmatpush1.msra.mxu0 %v3566
    %4735 = vmatprep.subr.mxu0 0.0
    %4736 = vmatpush1.msra.mxu0 %v3573
    %4737 = vmatprep.mubr.f32.mxu0 %v2165
    %4738 = vmatmul.mubr.f32.gmra.mrb[0].mxu0 %v2164
    %v4739 = vpop.f32.mrb[0].mxu0
    %v4740 = vadd.f32 %v4670, %v4739
    %v4741 = vpop.f32.mrb[0].mxu0
    %4742 = vdwg.mxu0
    %v4743 = vtanh.pop %v3891
    %v4744 = vtanh.pop %v3893
    %v4745 = vtanh.pop %v4175
    %v4746 = vtanh.pop %v4177
    %v4747 = vtanh.pop %v4459
    %v4748 = vtanh.pop %v4461
    %v4749 = vtanh.pop %v4740
    %4750 = vst [vmem:[%s11] sm:$0xff] %v4743
    %4751 = vst [vmem:[%s11 + $0x8] sm:$0xff] %v4744
    %4752 = vst [vmem:[%s11 + $0x10] sm:$0xff] %v4745
    %4753 = vst [vmem:[%s11 + $0x18] sm:$0xff] %v4746
    %4754 = vst [vmem:[%s11 + $0x20] sm:$0xff] %v4747
    %4755 = vst [vmem:[%s11 + $0x28] sm:$0xff] %v4748
    %4756 = vst [vmem:[%s11 + $0x30] sm:$0xff] %v4749
    // Predicated region
    $region86: #{generator_forward.1} parent=1 // pred_check
      _
    $region87: #{generator_forward.1} parent=1 // pred_check_branch
      %4758 = sbr.rel (0) target = $region89
    $region88: #{generator_forward.1} parent=1 // pred_region
      _
    $region89: #{generator_forward.1} parent=1 // pred_fallthru
      _
    // Predicated region
    $region90: #{generator_forward.1} parent=1 // pred_check
      _
    $region91: #{generator_forward.1} parent=1 // pred_check_branch
      %4760 = sbr.rel (0) target = $region93
    $region92: #{generator_forward.1} parent=1 // pred_region
      _
    $region93: #{generator_forward.1} parent=1 // pred_fallthru
      _
    %4761 = vsyncpa [#allocation3], 1
    %4762 = vsyncpa [#allocation5], 1
    %4763 = vsyncpa [#allocation8], 1
    %4764 = vsyncpa [#allocation11], 1
    %4765 = vsyncpa [#allocation14], 1
    %4766 = vsyncpa [#allocation17], 1

</llo_original>
